<compile_context>
chip_gen: v5e
topology: v5e:2x2
jax: 0.10.0
libtpu: 0.0.40
codegen_flags: <defaults>
</compile_context>

<pallas_src>
import numpy as np
import jax
import jax.numpy as jnp
from jax.experimental import pallas as pl
from jax.experimental.pallas import tpu as pltpu

H, W = 16, 16              # input spatial size (small example shapes)
OUT_H, OUT_W = 720, 1280   # hard-coded by the module's F.interpolate call
C_IMG = 3
TILE_H = 240               # 720 = 3 * 240; (3,240,1280) f32 block = 3.69 MiB


def overlay_kernel(params_ref, x_ref, R_ref, S_ref, out_ref):
    # params_ref: (28,) f32 SMEM -> [0:27] conv weight (c*9+ky*3+kx), [27] bias
    # x_ref:   (7, H+2, W+2) VMEM  zero-padded stacked input (img|overlay|alpha)
    # R_ref:   (TILE_H, H)  one-hot row selector for this output row tile
    # S_ref:   (W, OUT_W)   one-hot column selector (constant across the grid)
    # out_ref: (3, TILE_H, OUT_W)
    x = x_ref[...]                                         # (7, H+2, W+2)

    # --- inner net: Conv2d(3 -> 1, kernel 3x3, padding=1) + sigmoid ----------
    logits = jnp.full((H, W), params_ref[27], dtype=jnp.float32)
    for c in range(3):
        for ky in range(3):
            for kx in range(3):
                wv = params_ref[c * 9 + ky * 3 + kx]
                logits = logits + wv * x[c, ky:ky + H, kx:kx + W]
    prob = jax.nn.sigmoid(logits)                          # (H, W)

    # --- alpha[prob > 0.5] = 0, composite once on the stacked (3,H,W) block --
    img = x[0:3, 1:H + 1, 1:W + 1]                         # (3, H, W)
    ovl = x[3:6, 1:H + 1, 1:W + 1]                         # (3, H, W)
    alpha = x[6, 1:H + 1, 1:W + 1]                         # (H, W)
    a_eff = jnp.where(prob > 0.5, jnp.float32(0.0), alpha)
    comp = img + a_eff * (ovl - img)                       # (3, H, W)

    # --- nearest resize: one column-expansion matmul + per-channel row expand
    cols = jnp.dot(comp.reshape(C_IMG * H, W), S_ref[...],
                   preferred_element_type=jnp.float32)     # (3H, OUT_W)
    R = R_ref[...]                                         # (TILE_H, H)
    for c in range(C_IMG):
        out_ref[c] = jnp.dot(R, cols[c * H:(c + 1) * H, :],
                             preferred_element_type=jnp.float32)


def overlay_forward(input_stacked, w, b):
    """input_stacked: (N, 7, H, W) f32, w: (1, 3, 3, 3), b: (1,)."""
    N = input_stacked.shape[0]

    # Single stacked HBM input; the only wrapper-side op is a tiny zero-pad that
    # provides the 3x3 conv halo (img/overlay/alpha are sliced inside the kernel).
    x = jnp.pad(input_stacked, ((0, 0), (0, 0), (1, 1), (1, 1))).astype(jnp.float32)
    params = jnp.concatenate([w.reshape(-1), b.reshape(-1)]).astype(jnp.float32)

    # PyTorch mode='nearest': src = floor(dst * in_size / out_size)
    row_src = np.floor(np.arange(OUT_H) * (H / OUT_H)).astype(np.int32)
    col_src = np.floor(np.arange(OUT_W) * (W / OUT_W)).astype(np.int32)
    R = jnp.asarray(np.eye(H, dtype=np.float32)[row_src])        # (OUT_H, H)
    S = jnp.asarray(np.eye(W, dtype=np.float32)[col_src].T)      # (W, OUT_W)

    n_tiles = OUT_H // TILE_H
    grid_spec = pltpu.PrefetchScalarGridSpec(
        num_scalar_prefetch=0,
        grid=(N, n_tiles),
        in_specs=[
            pl.BlockSpec(memory_space=pltpu.MemorySpace.SMEM),              # params
            pl.BlockSpec((None, 7, H + 2, W + 2), lambda n, j: (n, 0, 0, 0)),  # stacked
            pl.BlockSpec((TILE_H, H), lambda n, j: (j, 0)),                 # R row tile
            pl.BlockSpec((W, OUT_W), lambda n, j: (0, 0)),                  # S (resident)
        ],
        out_specs=pl.BlockSpec((None, 3, TILE_H, OUT_W), lambda n, j: (n, 0, j, 0)),
    )

    return pl.pallas_call(
        overlay_kernel,
        out_shape=jax.ShapeDtypeStruct((N, 3, OUT_H, OUT_W), jnp.float32),
        grid_spec=grid_spec,
        compiler_params=pltpu.CompilerParams(
            dimension_semantics=("parallel", "parallel"),
        ),
    )(params, x, R, S)


def reference_forward(input_stacked, w, b):
    img = input_stacked[:, 0:3]
    ovl = input_stacked[:, 3:6]
    alpha = input_stacked[:, 6:7]
    logits = jax.lax.conv_general_dilated(
        img, w, window_strides=(1, 1), padding=((1, 1), (1, 1)),
        dimension_numbers=("NCHW", "OIHW", "NCHW")) + b.reshape(1, 1, 1, 1)
    prob = jax.nn.sigmoid(logits)
    a_eff = jnp.where(prob > 0.5, 0.0, alpha)
    comp = ovl * a_eff + img * (1.0 - a_eff)
    r = np.floor(np.arange(OUT_H) * (H / OUT_H)).astype(np.int32)
    c = np.floor(np.arange(OUT_W) * (W / OUT_W)).astype(np.int32)
    return comp[:, :, r, :][:, :, :, c]


if __name__ == "__main__":
    key = jax.random.PRNGKey(0)
    k_in, k_w = jax.random.split(key)
    N = 2
    # (N, 7, H, W): channels 0:3 image, 3:6 overlay, 6 alpha
    input_stacked = jax.random.uniform(k_in, (N, 7, H, W), dtype=jnp.float32)
    w = jax.random.normal(k_w, (1, 3, 3, 3), dtype=jnp.float32) * 0.5
    b = jnp.zeros((1,), dtype=jnp.float32)

    out = overlay_forward(input_stacked, w, b)
    out = jax.block_until_ready(out)

    ref = reference_forward(input_stacked, w, b)
    assert out.shape == (N, 3, OUT_H, OUT_W), out.shape
    np.testing.assert_allclose(np.asarray(out), np.asarray(ref), atol=1e-4, rtol=1e-4)

    print("KERNEL_OK")
</pallas_src>

<mosaic_0001>
module attributes {stable_mosaic.version = 11 : i64} {
  func.func @overlay_kernel(%arg0: i32, %arg1: i32, %arg2: memref<28xf32, #tpu.memory_space<smem>>, %arg3: memref<1x7x18x18xf32, #tpu.memory_space<vmem>>, %arg4: memref<240x16xf32, #tpu.memory_space<vmem>>, %arg5: memref<16x1280xf32, #tpu.memory_space<vmem>>, %arg6: memref<1x3x240x1280xf32, #tpu.memory_space<vmem>>) attributes {dimension_semantics = [#tpu.dimension_semantics<parallel>, #tpu.dimension_semantics<parallel>], iteration_bounds = array<i64: 2, 3>, scalar_prefetch = 0 : i64, scratch_operands = 0 : i64, tpu.core_type = #tpu.core_type<tc>, window_params = [{transform_indices = @transform_0, window_bounds = array<i64: 28>}, {transform_indices = @transform_1, window_bounds = array<i64: 1, 7, 18, 18>}, {transform_indices = @transform_2, window_bounds = array<i64: 240, 16>}, {pipeline_mode = #tpu.pipeline_mode<synchronous>, transform_indices = @transform_3, window_bounds = array<i64: 16, 1280>}, {transform_indices = @transform_4, window_bounds = array<i64: 1, 3, 240, 1280>}]} {
    %c0 = arith.constant 0 : index
    %c0_0 = arith.constant 0 : index
    %c0_1 = arith.constant 0 : index
    %c0_2 = arith.constant 0 : index
    %0 = vector.load %arg3[%c0, %c0_0, %c0_1, %c0_2] : memref<1x7x18x18xf32, #tpu.memory_space<vmem>>, vector<1x7x18x18xf32>
    %1 = vector.shape_cast %0 : vector<1x7x18x18xf32> to vector<7x18x18xf32>
    %c27 = arith.constant 27 : index
    %2 = memref.load %arg2[%c27] : memref<28xf32, #tpu.memory_space<smem>>
    %3 = vector.broadcast %2 : f32 to vector<16x16xf32>
    %c0_3 = arith.constant 0 : index
    %4 = memref.load %arg2[%c0_3] : memref<28xf32, #tpu.memory_space<smem>>
    %5 = vector.extract_strided_slice %1 {offsets = [0, 0, 0], sizes = [1, 16, 16], strides = [1, 1, 1]} : vector<7x18x18xf32> to vector<1x16x16xf32>
    %6 = vector.shape_cast %5 : vector<1x16x16xf32> to vector<16x16xf32>
    %7 = vector.broadcast %4 : f32 to vector<16x16xf32>
    %8 = arith.mulf %7, %6 : vector<16x16xf32>
    %9 = arith.addf %3, %8 : vector<16x16xf32>
    %c1 = arith.constant 1 : index
    %10 = memref.load %arg2[%c1] : memref<28xf32, #tpu.memory_space<smem>>
    %11 = vector.extract_strided_slice %1 {offsets = [0, 0, 1], sizes = [1, 16, 16], strides = [1, 1, 1]} : vector<7x18x18xf32> to vector<1x16x16xf32>
    %12 = vector.shape_cast %11 : vector<1x16x16xf32> to vector<16x16xf32>
    %13 = vector.broadcast %10 : f32 to vector<16x16xf32>
    %14 = arith.mulf %13, %12 : vector<16x16xf32>
    %15 = arith.addf %9, %14 : vector<16x16xf32>
    %c2 = arith.constant 2 : index
    %16 = memref.load %arg2[%c2] : memref<28xf32, #tpu.memory_space<smem>>
    %17 = vector.extract_strided_slice %1 {offsets = [0, 0, 2], sizes = [1, 16, 16], strides = [1, 1, 1]} : vector<7x18x18xf32> to vector<1x16x16xf32>
    %18 = vector.shape_cast %17 : vector<1x16x16xf32> to vector<16x16xf32>
    %19 = vector.broadcast %16 : f32 to vector<16x16xf32>
    %20 = arith.mulf %19, %18 : vector<16x16xf32>
    %21 = arith.addf %15, %20 : vector<16x16xf32>
    %c3 = arith.constant 3 : index
    %22 = memref.load %arg2[%c3] : memref<28xf32, #tpu.memory_space<smem>>
    %23 = vector.extract_strided_slice %1 {offsets = [0, 1, 0], sizes = [1, 16, 16], strides = [1, 1, 1]} : vector<7x18x18xf32> to vector<1x16x16xf32>
    %24 = vector.shape_cast %23 : vector<1x16x16xf32> to vector<16x16xf32>
    %25 = vector.broadcast %22 : f32 to vector<16x16xf32>
    %26 = arith.mulf %25, %24 : vector<16x16xf32>
    %27 = arith.addf %21, %26 : vector<16x16xf32>
    %c4 = arith.constant 4 : index
    %28 = memref.load %arg2[%c4] : memref<28xf32, #tpu.memory_space<smem>>
    %29 = vector.extract_strided_slice %1 {offsets = [0, 1, 1], sizes = [1, 16, 16], strides = [1, 1, 1]} : vector<7x18x18xf32> to vector<1x16x16xf32>
    %30 = vector.shape_cast %29 : vector<1x16x16xf32> to vector<16x16xf32>
    %31 = vector.broadcast %28 : f32 to vector<16x16xf32>
    %32 = arith.mulf %31, %30 : vector<16x16xf32>
    %33 = arith.addf %27, %32 : vector<16x16xf32>
    %c5 = arith.constant 5 : index
    %34 = memref.load %arg2[%c5] : memref<28xf32, #tpu.memory_space<smem>>
    %35 = vector.extract_strided_slice %1 {offsets = [0, 1, 2], sizes = [1, 16, 16], strides = [1, 1, 1]} : vector<7x18x18xf32> to vector<1x16x16xf32>
    %36 = vector.shape_cast %35 : vector<1x16x16xf32> to vector<16x16xf32>
    %37 = vector.broadcast %34 : f32 to vector<16x16xf32>
    %38 = arith.mulf %37, %36 : vector<16x16xf32>
    %39 = arith.addf %33, %38 : vector<16x16xf32>
    %c6 = arith.constant 6 : index
    %40 = memref.load %arg2[%c6] : memref<28xf32, #tpu.memory_space<smem>>
    %41 = vector.extract_strided_slice %1 {offsets = [0, 2, 0], sizes = [1, 16, 16], strides = [1, 1, 1]} : vector<7x18x18xf32> to vector<1x16x16xf32>
    %42 = vector.shape_cast %41 : vector<1x16x16xf32> to vector<16x16xf32>
    %43 = vector.broadcast %40 : f32 to vector<16x16xf32>
    %44 = arith.mulf %43, %42 : vector<16x16xf32>
    %45 = arith.addf %39, %44 : vector<16x16xf32>
    %c7 = arith.constant 7 : index
    %46 = memref.load %arg2[%c7] : memref<28xf32, #tpu.memory_space<smem>>
    %47 = vector.extract_strided_slice %1 {offsets = [0, 2, 1], sizes = [1, 16, 16], strides = [1, 1, 1]} : vector<7x18x18xf32> to vector<1x16x16xf32>
    %48 = vector.shape_cast %47 : vector<1x16x16xf32> to vector<16x16xf32>
    %49 = vector.broadcast %46 : f32 to vector<16x16xf32>
    %50 = arith.mulf %49, %48 : vector<16x16xf32>
    %51 = arith.addf %45, %50 : vector<16x16xf32>
    %c8 = arith.constant 8 : index
    %52 = memref.load %arg2[%c8] : memref<28xf32, #tpu.memory_space<smem>>
    %53 = vector.extract_strided_slice %1 {offsets = [0, 2, 2], sizes = [1, 16, 16], strides = [1, 1, 1]} : vector<7x18x18xf32> to vector<1x16x16xf32>
    %54 = vector.shape_cast %53 : vector<1x16x16xf32> to vector<16x16xf32>
    %55 = vector.broadcast %52 : f32 to vector<16x16xf32>
    %56 = arith.mulf %55, %54 : vector<16x16xf32>
    %57 = arith.addf %51, %56 : vector<16x16xf32>
    %c9 = arith.constant 9 : index
    %58 = memref.load %arg2[%c9] : memref<28xf32, #tpu.memory_space<smem>>
    %59 = vector.extract_strided_slice %1 {offsets = [1, 0, 0], sizes = [1, 16, 16], strides = [1, 1, 1]} : vector<7x18x18xf32> to vector<1x16x16xf32>
    %60 = vector.shape_cast %59 : vector<1x16x16xf32> to vector<16x16xf32>
    %61 = vector.broadcast %58 : f32 to vector<16x16xf32>
    %62 = arith.mulf %61, %60 : vector<16x16xf32>
    %63 = arith.addf %57, %62 : vector<16x16xf32>
    %c10 = arith.constant 10 : index
    %64 = memref.load %arg2[%c10] : memref<28xf32, #tpu.memory_space<smem>>
    %65 = vector.extract_strided_slice %1 {offsets = [1, 0, 1], sizes = [1, 16, 16], strides = [1, 1, 1]} : vector<7x18x18xf32> to vector<1x16x16xf32>
    %66 = vector.shape_cast %65 : vector<1x16x16xf32> to vector<16x16xf32>
    %67 = vector.broadcast %64 : f32 to vector<16x16xf32>
    %68 = arith.mulf %67, %66 : vector<16x16xf32>
    %69 = arith.addf %63, %68 : vector<16x16xf32>
    %c11 = arith.constant 11 : index
    %70 = memref.load %arg2[%c11] : memref<28xf32, #tpu.memory_space<smem>>
    %71 = vector.extract_strided_slice %1 {offsets = [1, 0, 2], sizes = [1, 16, 16], strides = [1, 1, 1]} : vector<7x18x18xf32> to vector<1x16x16xf32>
    %72 = vector.shape_cast %71 : vector<1x16x16xf32> to vector<16x16xf32>
    %73 = vector.broadcast %70 : f32 to vector<16x16xf32>
    %74 = arith.mulf %73, %72 : vector<16x16xf32>
    %75 = arith.addf %69, %74 : vector<16x16xf32>
    %c12 = arith.constant 12 : index
    %76 = memref.load %arg2[%c12] : memref<28xf32, #tpu.memory_space<smem>>
    %77 = vector.extract_strided_slice %1 {offsets = [1, 1, 0], sizes = [1, 16, 16], strides = [1, 1, 1]} : vector<7x18x18xf32> to vector<1x16x16xf32>
    %78 = vector.shape_cast %77 : vector<1x16x16xf32> to vector<16x16xf32>
    %79 = vector.broadcast %76 : f32 to vector<16x16xf32>
    %80 = arith.mulf %79, %78 : vector<16x16xf32>
    %81 = arith.addf %75, %80 : vector<16x16xf32>
    %c13 = arith.constant 13 : index
    %82 = memref.load %arg2[%c13] : memref<28xf32, #tpu.memory_space<smem>>
    %83 = vector.extract_strided_slice %1 {offsets = [1, 1, 1], sizes = [1, 16, 16], strides = [1, 1, 1]} : vector<7x18x18xf32> to vector<1x16x16xf32>
    %84 = vector.shape_cast %83 : vector<1x16x16xf32> to vector<16x16xf32>
    %85 = vector.broadcast %82 : f32 to vector<16x16xf32>
    %86 = arith.mulf %85, %84 : vector<16x16xf32>
    %87 = arith.addf %81, %86 : vector<16x16xf32>
    %c14 = arith.constant 14 : index
    %88 = memref.load %arg2[%c14] : memref<28xf32, #tpu.memory_space<smem>>
    %89 = vector.extract_strided_slice %1 {offsets = [1, 1, 2], sizes = [1, 16, 16], strides = [1, 1, 1]} : vector<7x18x18xf32> to vector<1x16x16xf32>
    %90 = vector.shape_cast %89 : vector<1x16x16xf32> to vector<16x16xf32>
    %91 = vector.broadcast %88 : f32 to vector<16x16xf32>
    %92 = arith.mulf %91, %90 : vector<16x16xf32>
    %93 = arith.addf %87, %92 : vector<16x16xf32>
    %c15 = arith.constant 15 : index
    %94 = memref.load %arg2[%c15] : memref<28xf32, #tpu.memory_space<smem>>
    %95 = vector.extract_strided_slice %1 {offsets = [1, 2, 0], sizes = [1, 16, 16], strides = [1, 1, 1]} : vector<7x18x18xf32> to vector<1x16x16xf32>
    %96 = vector.shape_cast %95 : vector<1x16x16xf32> to vector<16x16xf32>
    %97 = vector.broadcast %94 : f32 to vector<16x16xf32>
    %98 = arith.mulf %97, %96 : vector<16x16xf32>
    %99 = arith.addf %93, %98 : vector<16x16xf32>
    %c16 = arith.constant 16 : index
    %100 = memref.load %arg2[%c16] : memref<28xf32, #tpu.memory_space<smem>>
    %101 = vector.extract_strided_slice %1 {offsets = [1, 2, 1], sizes = [1, 16, 16], strides = [1, 1, 1]} : vector<7x18x18xf32> to vector<1x16x16xf32>
    %102 = vector.shape_cast %101 : vector<1x16x16xf32> to vector<16x16xf32>
    %103 = vector.broadcast %100 : f32 to vector<16x16xf32>
    %104 = arith.mulf %103, %102 : vector<16x16xf32>
    %105 = arith.addf %99, %104 : vector<16x16xf32>
    %c17 = arith.constant 17 : index
    %106 = memref.load %arg2[%c17] : memref<28xf32, #tpu.memory_space<smem>>
    %107 = vector.extract_strided_slice %1 {offsets = [1, 2, 2], sizes = [1, 16, 16], strides = [1, 1, 1]} : vector<7x18x18xf32> to vector<1x16x16xf32>
    %108 = vector.shape_cast %107 : vector<1x16x16xf32> to vector<16x16xf32>
    %109 = vector.broadcast %106 : f32 to vector<16x16xf32>
    %110 = arith.mulf %109, %108 : vector<16x16xf32>
    %111 = arith.addf %105, %110 : vector<16x16xf32>
    %c18 = arith.constant 18 : index
    %112 = memref.load %arg2[%c18] : memref<28xf32, #tpu.memory_space<smem>>
    %113 = vector.extract_strided_slice %1 {offsets = [2, 0, 0], sizes = [1, 16, 16], strides = [1, 1, 1]} : vector<7x18x18xf32> to vector<1x16x16xf32>
    %114 = vector.shape_cast %113 : vector<1x16x16xf32> to vector<16x16xf32>
    %115 = vector.broadcast %112 : f32 to vector<16x16xf32>
    %116 = arith.mulf %115, %114 : vector<16x16xf32>
    %117 = arith.addf %111, %116 : vector<16x16xf32>
    %c19 = arith.constant 19 : index
    %118 = memref.load %arg2[%c19] : memref<28xf32, #tpu.memory_space<smem>>
    %119 = vector.extract_strided_slice %1 {offsets = [2, 0, 1], sizes = [1, 16, 16], strides = [1, 1, 1]} : vector<7x18x18xf32> to vector<1x16x16xf32>
    %120 = vector.shape_cast %119 : vector<1x16x16xf32> to vector<16x16xf32>
    %121 = vector.broadcast %118 : f32 to vector<16x16xf32>
    %122 = arith.mulf %121, %120 : vector<16x16xf32>
    %123 = arith.addf %117, %122 : vector<16x16xf32>
    %c20 = arith.constant 20 : index
    %124 = memref.load %arg2[%c20] : memref<28xf32, #tpu.memory_space<smem>>
    %125 = vector.extract_strided_slice %1 {offsets = [2, 0, 2], sizes = [1, 16, 16], strides = [1, 1, 1]} : vector<7x18x18xf32> to vector<1x16x16xf32>
    %126 = vector.shape_cast %125 : vector<1x16x16xf32> to vector<16x16xf32>
    %127 = vector.broadcast %124 : f32 to vector<16x16xf32>
    %128 = arith.mulf %127, %126 : vector<16x16xf32>
    %129 = arith.addf %123, %128 : vector<16x16xf32>
    %c21 = arith.constant 21 : index
    %130 = memref.load %arg2[%c21] : memref<28xf32, #tpu.memory_space<smem>>
    %131 = vector.extract_strided_slice %1 {offsets = [2, 1, 0], sizes = [1, 16, 16], strides = [1, 1, 1]} : vector<7x18x18xf32> to vector<1x16x16xf32>
    %132 = vector.shape_cast %131 : vector<1x16x16xf32> to vector<16x16xf32>
    %133 = vector.broadcast %130 : f32 to vector<16x16xf32>
    %134 = arith.mulf %133, %132 : vector<16x16xf32>
    %135 = arith.addf %129, %134 : vector<16x16xf32>
    %c22 = arith.constant 22 : index
    %136 = memref.load %arg2[%c22] : memref<28xf32, #tpu.memory_space<smem>>
    %137 = vector.extract_strided_slice %1 {offsets = [2, 1, 1], sizes = [1, 16, 16], strides = [1, 1, 1]} : vector<7x18x18xf32> to vector<1x16x16xf32>
    %138 = vector.shape_cast %137 : vector<1x16x16xf32> to vector<16x16xf32>
    %139 = vector.broadcast %136 : f32 to vector<16x16xf32>
    %140 = arith.mulf %139, %138 : vector<16x16xf32>
    %141 = arith.addf %135, %140 : vector<16x16xf32>
    %c23 = arith.constant 23 : index
    %142 = memref.load %arg2[%c23] : memref<28xf32, #tpu.memory_space<smem>>
    %143 = vector.extract_strided_slice %1 {offsets = [2, 1, 2], sizes = [1, 16, 16], strides = [1, 1, 1]} : vector<7x18x18xf32> to vector<1x16x16xf32>
    %144 = vector.shape_cast %143 : vector<1x16x16xf32> to vector<16x16xf32>
    %145 = vector.broadcast %142 : f32 to vector<16x16xf32>
    %146 = arith.mulf %145, %144 : vector<16x16xf32>
    %147 = arith.addf %141, %146 : vector<16x16xf32>
    %c24 = arith.constant 24 : index
    %148 = memref.load %arg2[%c24] : memref<28xf32, #tpu.memory_space<smem>>
    %149 = vector.extract_strided_slice %1 {offsets = [2, 2, 0], sizes = [1, 16, 16], strides = [1, 1, 1]} : vector<7x18x18xf32> to vector<1x16x16xf32>
    %150 = vector.shape_cast %149 : vector<1x16x16xf32> to vector<16x16xf32>
    %151 = vector.broadcast %148 : f32 to vector<16x16xf32>
    %152 = arith.mulf %151, %150 : vector<16x16xf32>
    %153 = arith.addf %147, %152 : vector<16x16xf32>
    %c25 = arith.constant 25 : index
    %154 = memref.load %arg2[%c25] : memref<28xf32, #tpu.memory_space<smem>>
    %155 = vector.extract_strided_slice %1 {offsets = [2, 2, 1], sizes = [1, 16, 16], strides = [1, 1, 1]} : vector<7x18x18xf32> to vector<1x16x16xf32>
    %156 = vector.shape_cast %155 : vector<1x16x16xf32> to vector<16x16xf32>
    %157 = vector.broadcast %154 : f32 to vector<16x16xf32>
    %158 = arith.mulf %157, %156 : vector<16x16xf32>
    %159 = arith.addf %153, %158 : vector<16x16xf32>
    %c26 = arith.constant 26 : index
    %160 = memref.load %arg2[%c26] : memref<28xf32, #tpu.memory_space<smem>>
    %161 = vector.extract_strided_slice %1 {offsets = [2, 2, 2], sizes = [1, 16, 16], strides = [1, 1, 1]} : vector<7x18x18xf32> to vector<1x16x16xf32>
    %162 = vector.shape_cast %161 : vector<1x16x16xf32> to vector<16x16xf32>
    %163 = vector.broadcast %160 : f32 to vector<16x16xf32>
    %164 = arith.mulf %163, %162 : vector<16x16xf32>
    %165 = arith.addf %159, %164 : vector<16x16xf32>
    %166 = arith.negf %165 : vector<16x16xf32>
    %167 = math.exp %166 : vector<16x16xf32>
    %cst = arith.constant 1.000000e+00 : f32
    %168 = vector.broadcast %cst : f32 to vector<16x16xf32>
    %169 = arith.addf %168, %167 : vector<16x16xf32>
    %170 = arith.divf %168, %169 : vector<16x16xf32>
    %171 = vector.extract_strided_slice %1 {offsets = [0, 1, 1], sizes = [3, 16, 16], strides = [1, 1, 1]} : vector<7x18x18xf32> to vector<3x16x16xf32>
    %172 = vector.extract_strided_slice %1 {offsets = [3, 1, 1], sizes = [3, 16, 16], strides = [1, 1, 1]} : vector<7x18x18xf32> to vector<3x16x16xf32>
    %173 = vector.extract_strided_slice %1 {offsets = [6, 1, 1], sizes = [1, 16, 16], strides = [1, 1, 1]} : vector<7x18x18xf32> to vector<1x16x16xf32>
    %174 = vector.shape_cast %173 : vector<1x16x16xf32> to vector<16x16xf32>
    %cst_4 = arith.constant 5.000000e-01 : f32
    %175 = vector.broadcast %cst_4 : f32 to vector<16x16xf32>
    %176 = arith.cmpf ogt, %170, %175 : vector<16x16xf32>
    %cst_5 = arith.constant 0.000000e+00 : f32
    %177 = vector.broadcast %cst_5 : f32 to vector<16x16xf32>
    %178 = arith.select %176, %177, %174 : vector<16x16xi1>, vector<16x16xf32>
    %179 = arith.subf %172, %171 : vector<3x16x16xf32>
    %180 = vector.shape_cast %178 : vector<16x16xf32> to vector<1x16x16xf32>
    %181 = vector.broadcast %180 : vector<1x16x16xf32> to vector<3x16x16xf32>
    %182 = arith.mulf %181, %179 : vector<3x16x16xf32>
    %183 = arith.addf %171, %182 : vector<3x16x16xf32>
    %184 = vector.shape_cast %183 : vector<3x16x16xf32> to vector<48x16xf32>
    %c0_6 = arith.constant 0 : index
    %c0_7 = arith.constant 0 : index
    %185 = vector.load %arg5[%c0_6, %c0_7] : memref<16x1280xf32, #tpu.memory_space<vmem>>, vector<16x1280xf32>
    %cst_8 = arith.constant dense<0.000000e+00> : vector<48x1280xf32>
    %186 = tpu.matmul %184, %185, %cst_8 {dimension_numbers = #tpu.dot_dimension_numbers<[1], [0], [0], [1], [0, 0, 1, 1], [], []>} : vector<48x16xf32>, vector<16x1280xf32>, vector<48x1280xf32> -> vector<48x1280xf32>
    %c0_9 = arith.constant 0 : index
    %c0_10 = arith.constant 0 : index
    %187 = vector.load %arg4[%c0_9, %c0_10] : memref<240x16xf32, #tpu.memory_space<vmem>>, vector<240x16xf32>
    %188 = vector.extract_strided_slice %186 {offsets = [0, 0], sizes = [16, 1280], strides = [1, 1]} : vector<48x1280xf32> to vector<16x1280xf32>
    %cst_11 = arith.constant dense<0.000000e+00> : vector<240x1280xf32>
    %189 = tpu.matmul %187, %188, %cst_11 {dimension_numbers = #tpu.dot_dimension_numbers<[1], [0], [0], [1], [0, 0, 1, 1], [], []>} : vector<240x16xf32>, vector<16x1280xf32>, vector<240x1280xf32> -> vector<240x1280xf32>
    %c0_12 = arith.constant 0 : index
    %c0_13 = arith.constant 0 : index
    %c0_14 = arith.constant 0 : index
    %c0_15 = arith.constant 0 : index
    %190 = vector.load %arg6[%c0_12, %c0_13, %c0_14, %c0_15] : memref<1x3x240x1280xf32, #tpu.memory_space<vmem>>, vector<1x1x240x1280xf32>
    %191 = vector.shape_cast %190 : vector<1x1x240x1280xf32> to vector<240x1280xf32>
    %192 = vector.shape_cast %189 : vector<240x1280xf32> to vector<1x1x240x1280xf32>
    tpu.vector_store %arg6[%c0_12, %c0_13, %c0_14, %c0_15], %192 {strides = array<i32>} : memref<1x3x240x1280xf32, #tpu.memory_space<vmem>>, vector<1x1x240x1280xf32>,
    %193 = vector.extract_strided_slice %186 {offsets = [16, 0], sizes = [16, 1280], strides = [1, 1]} : vector<48x1280xf32> to vector<16x1280xf32>
    %cst_16 = arith.constant dense<0.000000e+00> : vector<240x1280xf32>
    %194 = tpu.matmul %187, %193, %cst_16 {dimension_numbers = #tpu.dot_dimension_numbers<[1], [0], [0], [1], [0, 0, 1, 1], [], []>} : vector<240x16xf32>, vector<16x1280xf32>, vector<240x1280xf32> -> vector<240x1280xf32>
    %c0_17 = arith.constant 0 : index
    %c1_18 = arith.constant 1 : index
    %c0_19 = arith.constant 0 : index
    %c0_20 = arith.constant 0 : index
    %195 = vector.load %arg6[%c0_17, %c1_18, %c0_19, %c0_20] : memref<1x3x240x1280xf32, #tpu.memory_space<vmem>>, vector<1x1x240x1280xf32>
    %196 = vector.shape_cast %195 : vector<1x1x240x1280xf32> to vector<240x1280xf32>
    %197 = vector.shape_cast %194 : vector<240x1280xf32> to vector<1x1x240x1280xf32>
    tpu.vector_store %arg6[%c0_17, %c1_18, %c0_19, %c0_20], %197 {strides = array<i32>} : memref<1x3x240x1280xf32, #tpu.memory_space<vmem>>, vector<1x1x240x1280xf32>,
    %198 = vector.extract_strided_slice %186 {offsets = [32, 0], sizes = [16, 1280], strides = [1, 1]} : vector<48x1280xf32> to vector<16x1280xf32>
    %cst_21 = arith.constant dense<0.000000e+00> : vector<240x1280xf32>
    %199 = tpu.matmul %187, %198, %cst_21 {dimension_numbers = #tpu.dot_dimension_numbers<[1], [0], [0], [1], [0, 0, 1, 1], [], []>} : vector<240x16xf32>, vector<16x1280xf32>, vector<240x1280xf32> -> vector<240x1280xf32>
    %c0_22 = arith.constant 0 : index
    %c2_23 = arith.constant 2 : index
    %c0_24 = arith.constant 0 : index
    %c0_25 = arith.constant 0 : index
    %200 = vector.load %arg6[%c0_22, %c2_23, %c0_24, %c0_25] : memref<1x3x240x1280xf32, #tpu.memory_space<vmem>>, vector<1x1x240x1280xf32>
    %201 = vector.shape_cast %200 : vector<1x1x240x1280xf32> to vector<240x1280xf32>
    %202 = vector.shape_cast %199 : vector<240x1280xf32> to vector<1x1x240x1280xf32>
    tpu.vector_store %arg6[%c0_22, %c2_23, %c0_24, %c0_25], %202 {strides = array<i32>} : memref<1x3x240x1280xf32, #tpu.memory_space<vmem>>, vector<1x1x240x1280xf32>,
    return
  }
  func.func @transform_0(%arg0: i32, %arg1: i32) -> i32 {
    %c0_i32 = arith.constant 0 : i32
    %c0_i32_0 = arith.constant 0 : i32
    return %c0_i32 : i32
  }
  func.func @transform_1(%arg0: i32, %arg1: i32) -> (i32, i32, i32, i32) {
    %c0_i32 = arith.constant 0 : i32
    %c0_i32_0 = arith.constant 0 : i32
    %c0_i32_1 = arith.constant 0 : i32
    %c0_i32_2 = arith.constant 0 : i32
    return %arg0, %c0_i32, %c0_i32_0, %c0_i32_1 : i32, i32, i32, i32
  }
  func.func @transform_2(%arg0: i32, %arg1: i32) -> (i32, i32) {
    %c0_i32 = arith.constant 0 : i32
    %c0_i32_0 = arith.constant 0 : i32
    return %arg1, %c0_i32 : i32, i32
  }
  func.func @transform_3(%arg0: i32, %arg1: i32) -> (i32, i32) {
    %c0_i32 = arith.constant 0 : i32
    %c0_i32_0 = arith.constant 0 : i32
    %c0_i32_1 = arith.constant 0 : i32
    return %c0_i32, %c0_i32_0 : i32, i32
  }
  func.func @transform_4(%arg0: i32, %arg1: i32) -> (i32, i32, i32, i32) {
    %c0_i32 = arith.constant 0 : i32
    %c0_i32_0 = arith.constant 0 : i32
    %c0_i32_1 = arith.constant 0 : i32
    return %arg0, %c0_i32, %arg1, %c0_i32_0 : i32, i32, i32, i32
  }
}

</mosaic_0001>

<llo_original>
// kernel: tpu_custom_call.1
$region0: #{tpu_custom_call.1}
  #allocation0 [shape = 'u32[]', space=smem, size = 0x4, offset = 0x4, fixed_abs, tag = 'smem constant byte address 0x4 - core index']
  #allocation1 [shape = 'u32[72,128]{1,0:T(1,128)}', space=vmem, size = 0x9000, scoped, tag = 'internal scratch']
  #allocation8 [shape = 's32[]', space=sflag, size = 0x4, offset = 0, fixed_abs, tag = 'sflag constant byte address 0x0 - dummy sync flag']
  %s0 = inlined_call_operand.hbm [shape: f32[28], index: 0, kind: input, shape index: {}]
  %s1 = inlined_call_operand.vmem [shape: f32[2,7,18,18], index: 1, kind: input, shape index: {}]
  %s2 = inlined_call_operand.vmem [shape: f32[720,16], index: 2, kind: input, shape index: {}]
  %s3 = inlined_call_operand.hbm [shape: f32[16,1280], index: 3, kind: input, shape index: {}]
  %s4 = inlined_call_operand.hbm [shape: f32[2,3,720,1280], index: 4, kind: output, shape index: {}]
  %s5 = sld [smem:[#allocation0]]
  $region57: #{tpu_custom_call.1} parent=0
    _
  %s7 = ssub.s32 1, %s5
  %s8 = scalar_select 0, %s7, %s5
  $region1: #{tpu_custom_call.1} parent=0
    #allocation2 [shape = 'u8[512]{0}', space=smem, size = 0x200, scoped, tag = 'input window, operand 0, single buffered']
    #allocation3 [shape = 's32[2]{0}', space=sflag, size = 0x8, scoped, tag = 'scoped memory for tpu_custom_call.1']
    #allocation4 [shape = 's32[2]{0}', space=sflag, size = 0x8, scoped, tag = 'scoped memory for tpu_custom_call.1']
    #allocation5 [shape = 's32[2]{0}', space=sflag, size = 0x8, scoped, tag = 'scoped memory for tpu_custom_call.1']
    #allocation6 [shape = 'u8[81920]{0}', space=vmem, size = 0x14000, scoped, tag = 'input window, operand 3, single buffered']
    #allocation7 [shape = 'u8[7372800]{0}', space=vmem, size = 0x708000, scoped, tag = 'output window, operand 0']
    %9 = vsyncpa [#allocation5], 0
    %10 = vsyncpa [#allocation3], 0
    %11 = vsyncpa [#allocation4], 0
    %s12 = scalar_lea.sflag [#allocation4], 1
    %13 = vsyncpa %s12, 0
    loop: start=0, step=1, limit=8
    $region2: #{tpu_custom_call.1} parent=1 // loop_pre_header
      _
    $region3: #{tpu_custom_call.1} parent=1 // loop_header
      %s15 = sphi 0, %s19
      %p16 = scmp.ge.s32.totalorder %s15, 8
      %s22 = sphi 0, %s34
      %s23 = sphi 0, %s30
      %s24 = sphi 0, %s22
      %s25 = sphi 0, %s23
      %s26 = sphi 0, %s24
      %s27 = sphi 0, %s25
      %s35 = sphi 0, %s35
      %s37 = sphi 0, %s35
      %s38 = sphi 0, %s37
      %s52 = sphi 0, %s38
      %s58 = sphi 0, %s60
      %s61 = sphi 0, %s58
      %s62 = sphi 0, %s61
      %s78 = sphi 0, %s62
      %s84 = sphi 0, %s86
      %s87 = sphi 0, %s84
      %s88 = sphi 0, %s87
      %s104 = sphi 0, %s88
      %s108 = sphi 0, %s108
      %s110 = sphi 0, %s108
      %s111 = sphi 0, %s110
      %s125 = sphi 0, %s111
      %s133 = sphi 0, %s135
      %s136 = sphi 0, %s133
      %s137 = sphi 0, %s136
      %s153 = sphi 0, %s137
    $region4: #{tpu_custom_call.1} parent=1 // loop_header_branch
      %18 = sbr.rel (%p16) target = $region8
    $region5: #{tpu_custom_call.1} parent=1 // loop_body
      %s20 = ssub.s32 %s15, 1
      %s21 = ssub.s32 %s15, 2
      %s28 = sadd.s32 1, %s23
      %p29 = scmp.ge.s32.totalorder %s28, 3
      %s30 = scalar_select %p29, 0, %s28
      %s31 = sadd.s32 1, %s22
      %s32 = scalar_select %p29, %s31, %s22
      %p33 = scmp.ge.s32.totalorder %s32, 2
      %s34 = scalar_select %p33, 0, %s32
      %s36 = sadd.s32 %s35, 1
      %p39 = scmp.eq.s32.totalorder %s15, 5
      %p40 = scmp.ne.s32.totalorder %s35, %s37
      %p41 = scmp.eq.s32.totalorder %s15, 0
      %p42 = por %p40, %p41
      %p43 = scmp.ne.s32.totalorder %s35, %s37
      %p44 = scmp.eq.s32.totalorder %s20, 5
      %p45 = por %p43, %p44
      %p46 = scmp.ne.s32.totalorder %s37, %s38
      %p47 = scmp.eq.s32.totalorder %s20, 0
      %p48 = por %p46, %p47
      %p49 = scmp.ne.s32.totalorder %s37, %s38
      %p50 = scmp.eq.s32.totalorder %s21, 5
      %p51 = por %p49, %p50
      %p53 = scmp.ne.s32.totalorder %s38, %s52
      %p54 = scmp.eq.s32.totalorder %s21, 0
      %p55 = por %p53, %p54
      %s56 = ssub.s32 %s22, %s34
      %p57 = scmp.eq.s32.totalorder %s56, 0
      %s59 = sadd.s32 %s58, 1
      %s60 = scalar_select %p57, %s58, %s59
      %p63 = pneg %p57
      %p64 = scmp.eq.s32.totalorder %s15, 5
      %p65 = por %p63, %p64
      %p66 = scmp.ne.s32.totalorder %s58, %s61
      %p67 = scmp.eq.s32.totalorder %s15, 0
      %p68 = por %p66, %p67
      %p69 = scmp.ne.s32.totalorder %s58, %s61
      %p70 = scmp.eq.s32.totalorder %s20, 5
      %p71 = por %p69, %p70
      %p72 = scmp.ne.s32.totalorder %s61, %s62
      %p73 = scmp.eq.s32.totalorder %s20, 0
      %p74 = por %p72, %p73
      %p75 = scmp.ne.s32.totalorder %s61, %s62
      %p76 = scmp.eq.s32.totalorder %s21, 5
      %p77 = por %p75, %p76
      %p79 = scmp.ne.s32.totalorder %s62, %s78
      %p80 = scmp.eq.s32.totalorder %s21, 0
      %p81 = por %p79, %p80
      %s82 = ssub.s32 %s23, %s30
      %p83 = scmp.eq.s32.totalorder %s82, 0
      %s85 = sadd.s32 %s84, 1
      %s86 = scalar_select %p83, %s84, %s85
      %p89 = pneg %p83
      %p90 = scmp.eq.s32.totalorder %s15, 5
      %p91 = por %p89, %p90
      %p92 = scmp.ne.s32.totalorder %s84, %s87
      %p93 = scmp.eq.s32.totalorder %s15, 0
      %p94 = por %p92, %p93
      %p95 = scmp.ne.s32.totalorder %s84, %s87
      %p96 = scmp.eq.s32.totalorder %s20, 5
      %p97 = por %p95, %p96
      %p98 = scmp.ne.s32.totalorder %s87, %s88
      %p99 = scmp.eq.s32.totalorder %s20, 0
      %p100 = por %p98, %p99
      %p101 = scmp.ne.s32.totalorder %s87, %s88
      %p102 = scmp.eq.s32.totalorder %s21, 5
      %p103 = por %p101, %p102
      %p105 = scmp.ne.s32.totalorder %s88, %s104
      %p106 = scmp.eq.s32.totalorder %s21, 0
      %p107 = por %p105, %p106
      %s109 = sadd.s32 %s108, 1
      %p112 = scmp.eq.s32.totalorder %s15, 5
      %p113 = scmp.ne.s32.totalorder %s108, %s110
      %p114 = scmp.eq.s32.totalorder %s15, 0
      %p115 = por %p113, %p114
      %p116 = scmp.ne.s32.totalorder %s108, %s110
      %p117 = scmp.eq.s32.totalorder %s20, 5
      %p118 = por %p116, %p117
      %p119 = scmp.ne.s32.totalorder %s110, %s111
      %p120 = scmp.eq.s32.totalorder %s20, 0
      %p121 = por %p119, %p120
      %p122 = scmp.ne.s32.totalorder %s110, %s111
      %p123 = scmp.eq.s32.totalorder %s21, 5
      %p124 = por %p122, %p123
      %p126 = scmp.ne.s32.totalorder %s111, %s125
      %p127 = scmp.eq.s32.totalorder %s21, 0
      %p128 = por %p126, %p127
      %s129 = ssub.s32 %s22, %s34
      %s130 = ssub.s32 %s23, %s30
      %s131 = sor.u32 %s129, %s130
      %p132 = scmp.eq.s32.totalorder %s131, 0
      %s134 = sadd.s32 %s133, 1
      %s135 = scalar_select %p132, %s133, %s134
      %p138 = pneg %p132
      %p139 = scmp.eq.s32.totalorder %s15, 5
      %p140 = por %p138, %p139
      %p141 = scmp.ne.s32.totalorder %s133, %s136
      %p142 = scmp.eq.s32.totalorder %s15, 0
      %p143 = por %p141, %p142
      %p144 = scmp.ne.s32.totalorder %s133, %s136
      %p145 = scmp.eq.s32.totalorder %s20, 5
      %p146 = por %p144, %p145
      %p147 = scmp.ne.s32.totalorder %s136, %s137
      %p148 = scmp.eq.s32.totalorder %s20, 0
      %p149 = por %p147, %p148
      %p150 = scmp.ne.s32.totalorder %s136, %s137
      %p151 = scmp.eq.s32.totalorder %s21, 5
      %p152 = por %p150, %p151
      %p154 = scmp.ne.s32.totalorder %s137, %s153
      %p155 = scmp.eq.s32.totalorder %s21, 0
      %p156 = por %p154, %p155
      %p157 = scmp.le.s32.totalorder 1, %s15
      %p158 = scmp.lt.s32.totalorder %s15, 7
      %p159 = pnand %p157, %p158
      %p160 = pneg %p159
      // Predicated region
      $region9: #{tpu_custom_call.1} parent=5 // pred_check
        _
      $region10: #{tpu_custom_call.1} parent=5 // pred_check_branch
        %162 = sbr.rel (%p159) target = $region12
      $region11: #{tpu_custom_call.1} parent=5 // pred_region
        %s163 = ssub.s32 %s15, 1
        // Predicated region
        $region13: #{tpu_custom_call.1} parent=11 // pred_check
          %p164 = pneg %p48
        $region14: #{tpu_custom_call.1} parent=11 // pred_check_branch
          %166 = sbr.rel (%p164) target = $region16
        $region15: #{tpu_custom_call.1} parent=11 // pred_region
          %168 = vsyncadd [#allocation5], 0
          %s170 = sshll.u32 %s0, 4
          %s171 = int_to_ptr.hbm [resolvable:$true] %s170
          %173 = dma.hbm_to_smem %s171, 16, [#allocation2], [#allocation5]
        $region16: #{tpu_custom_call.1} parent=11 // pred_fallthru
          _
        // Predicated region
        $region17: #{tpu_custom_call.1} parent=11 // pred_check
          %p174 = pneg %p121
        $region18: #{tpu_custom_call.1} parent=11 // pred_check_branch
          %176 = sbr.rel (%p174) target = $region20
        $region19: #{tpu_custom_call.1} parent=11 // pred_region
          %178 = vsyncadd [#allocation3], 0
          %s179 = sshll.u32 %s3, 4
          %s180 = int_to_ptr.hbm [resolvable:$true] %s179
          %s181 = sshll.u32 [#allocation6], 4
          %s182 = int_to_ptr.vmem [resolvable:$true] %s181
          %187 = dma.hbm_to_vmem [thread:$0]  %s180, 2560, %s182, [#allocation3], 1280, 1280, 80
        $region20: #{tpu_custom_call.1} parent=11 // pred_fallthru
          _
      $region12: #{tpu_custom_call.1} parent=5 // pred_fallthru
        _
      %p188 = scmp.lt.s32.totalorder %s15, 6
      // Predicated region
      $region21: #{tpu_custom_call.1} parent=5 // pred_check
        %p189 = pneg %p188
      $region22: #{tpu_custom_call.1} parent=5 // pred_check_branch
        %191 = sbr.rel (%p189) target = $region24
      $region23: #{tpu_custom_call.1} parent=5 // pred_region
        // Predicated region
        $region25: #{tpu_custom_call.1} parent=23 // pred_check
          %p192 = pneg %p68
        $region26: #{tpu_custom_call.1} parent=23 // pred_check_branch
          %194 = sbr.rel (%p192) target = $region28
        $region27: #{tpu_custom_call.1} parent=23 // pred_region
          %p195 = scmp.lt.s32.totalorder %s22, 1
          %s196 = scalar_select %p195, %s22, 1
          %s197 = smul.addr %s196, 21
          %s198 = smul.addr %s197, 8
          %s199 = scalar_lea.vmem %s1, %s198
        $region28: #{tpu_custom_call.1} parent=23 // pred_fallthru
          _
        // Predicated region
        $region29: #{tpu_custom_call.1} parent=23 // pred_check
          %p200 = pneg %p94
        $region30: #{tpu_custom_call.1} parent=23 // pred_check_branch
          %202 = sbr.rel (%p200) target = $region32
        $region31: #{tpu_custom_call.1} parent=23 // pred_region
          %s203 = smul.u32 30, %s23
          %p204 = scmp.lt.s32.totalorder %s203, 89
          %s205 = scalar_select %p204, %s203, 89
          %s206 = smul.addr %s205, 8
          %s207 = scalar_lea.vmem %s2, %s206
          %s208 = smul.u32 30, %s23
        $region32: #{tpu_custom_call.1} parent=23 // pred_fallthru
          _
      $region24: #{tpu_custom_call.1} parent=5 // pred_fallthru
        _
      %p209 = scmp.le.s32.totalorder 1, %s15
      %p210 = scmp.lt.s32.totalorder %s15, 7
      %p211 = pnand %p209, %p210
      %p212 = pneg %p211
      // Predicated region
      $region33: #{tpu_custom_call.1} parent=5 // pred_check
        _
      $region34: #{tpu_custom_call.1} parent=5 // pred_check_branch
        %214 = sbr.rel (%p211) target = $region36
      $region35: #{tpu_custom_call.1} parent=5 // pred_region
        %s215 = ssub.s32 %s15, 1
        // Predicated region
        $region37: #{tpu_custom_call.1} parent=35 // pred_check
          %p216 = pneg %p48
        $region38: #{tpu_custom_call.1} parent=35 // pred_check_branch
          %218 = sbr.rel (%p216) target = $region40
        $region39: #{tpu_custom_call.1} parent=35 // pred_region
          %220 = dma.done [#allocation5], 16
        $region40: #{tpu_custom_call.1} parent=35 // pred_fallthru
          _
        // Predicated region
        $region41: #{tpu_custom_call.1} parent=35 // pred_check
          %p221 = pneg %p121
        $region42: #{tpu_custom_call.1} parent=35 // pred_check_branch
          %223 = sbr.rel (%p221) target = $region44
        $region43: #{tpu_custom_call.1} parent=35 // pred_region
          %225 = dma.done [#allocation3], 2560
        $region44: #{tpu_custom_call.1} parent=35 // pred_fallthru
          _
        %226 = sfence
        %p227 = pneg %p48
        %p228 = pneg %p45
        %p229 = scmp.lt.s32.totalorder %s24, 1
        %s230 = scalar_select %p229, %s24, 1
        %s231 = smul.addr %s230, 21
        %s232 = smul.addr %s231, 8
        %s233 = scalar_lea.vmem %s1, %s232
        %p234 = pneg %p74
        %p235 = pneg %p71
        %s236 = smul.u32 30, %s25
        %p237 = scmp.lt.s32.totalorder %s236, 89
        %s238 = scalar_select %p237, %s236, 89
        %s239 = smul.addr %s238, 8
        %s240 = scalar_lea.vmem %s2, %s239
        %p241 = pneg %p100
        %p242 = pneg %p97
        %p243 = pneg %p121
        %p244 = pneg %p118
        %p245 = pneg %p149
        %p246 = pneg %p146
        %s247 = sand.u32 %s136, 1
        %s248 = scalar_lea.sflag [#allocation4], %s247
        %s249 = sand.u32 %s136, 1
        %s250 = smul.addr %s249, 7200
        %s251 = scalar_lea.vmem [#allocation7], %s250
        %p252 = scmp.lt.s32.totalorder %s24, 1
        %s253 = scalar_select %p252, %s24, 1
        %s254 = smul.addr %s253, 21
        %s255 = smul.addr %s254, 8
        %s256 = scalar_lea.vmem %s1, %s255
        %s257 = smul.u32 30, %s25
        %p258 = scmp.lt.s32.totalorder %s257, 89
        %s259 = scalar_select %p258, %s257, 89
        %s260 = smul.addr %s259, 8
        %s261 = scalar_lea.vmem %s2, %s260
        %s262 = smul.u32 30, %s25
        %s263 = smul.u32 30, %s25
        %v264 = vld [vmem:[%s256] sm:$0xff]
        %v265 = vld [vmem:[%s256 + $0x8] sm:$0xff]
        %v266 = vld [vmem:[%s256 + $0x10] sm:$0x3]
        %v267 = vld [vmem:[%s256 + $0x18] sm:$0xff]
        %v268 = vld [vmem:[%s256 + $0x20] sm:$0xff]
        %v269 = vld [vmem:[%s256 + $0x28] sm:$0x3]
        %v270 = vld [vmem:[%s256 + $0x30] sm:$0xff]
        %v271 = vld [vmem:[%s256 + $0x38] sm:$0xff]
        %v272 = vld [vmem:[%s256 + $0x40] sm:$0x3]
        %v273 = vld [vmem:[%s256 + $0x48] sm:$0xff]
        %v274 = vld [vmem:[%s256 + $0x50] sm:$0xff]
        %v275 = vld [vmem:[%s256 + $0x58] sm:$0x3]
        %v276 = vld [vmem:[%s256 + $0x60] sm:$0xff]
        %v277 = vld [vmem:[%s256 + $0x68] sm:$0xff]
        %v278 = vld [vmem:[%s256 + $0x70] sm:$0x3]
        %v279 = vld [vmem:[%s256 + $0x78] sm:$0xff]
        %v280 = vld [vmem:[%s256 + $0x80] sm:$0xff]
        %v281 = vld [vmem:[%s256 + $0x88] sm:$0x3]
        %v282 = vld [vmem:[%s256 + $0x90] sm:$0xff]
        %v283 = vld [vmem:[%s256 + $0x98] sm:$0xff]
        %v284 = vld [vmem:[%s256 + $0xa0] sm:$0x3]
        %s285 = sld [smem:[#allocation2 + $0x1b]]
        %v286 = vstv %s285
        %s287 = sld [smem:[#allocation2]]
        %v288 = vstv %s287
        %v289 = vmul.f32 %v288, %v264
        %v290 = vmul.f32 %v288, %v265
        %v291 = vadd.f32 %v286, %v289
        %v292 = vadd.f32 %v286, %v290
        %s293 = sld [smem:[#allocation2 + $0x1]]
        %v294 = vstv %s293
        %v295 = vmul.f32 %v294, %v264
        %v296 = vmul.f32 %v294, %v265
        %299 = vrot.lane.b32.xlu0 %v295, 127
        %v300 = vpop.permute.xlu0 %299
        %301 = vrot.lane.b32.xlu0 %v296, 127
        %v302 = vpop.permute.xlu0 %301
        %v305 = vadd.f32 %v291, %v300
        %v306 = vadd.f32 %v292, %v302
        %s307 = sld [smem:[#allocation2 + $0x2]]
        %v308 = vstv %s307
        %v309 = vmul.f32 %v308, %v264
        %v310 = vmul.f32 %v308, %v265
        %313 = vrot.lane.b32.xlu0 %v309, 126
        %v314 = vpop.permute.xlu0 %313
        %315 = vrot.lane.b32.xlu0 %v310, 126
        %v316 = vpop.permute.xlu0 %315
        %v319 = vadd.f32 %v305, %v314
        %v320 = vadd.f32 %v306, %v316
        %s321 = sld [smem:[#allocation2 + $0x3]]
        %v322 = vstv %s321
        %v323 = vmul.f32 %v322, %v264
        %v324 = vmul.f32 %v322, %v265
        %v325 = vmul.f32 %v322, %v266
        %vm329 = vcmask 1046528
        %v330 = vrot.slane %v323, 1
        %v331 = vrot.slane %v324, 1
        %v332 = vsel %vm329, %v330, %v331
        %v333 = vrot.slane %v325, 1
        %v334 = vsel %vm329, %v331, %v333
        %v337 = vadd.f32 %v319, %v332
        %v338 = vadd.f32 %v320, %v334
        %s339 = sld [smem:[#allocation2 + $0x4]]
        %v340 = vstv %s339
        %v341 = vmul.f32 %v340, %v264
        %v342 = vmul.f32 %v340, %v265
        %v343 = vmul.f32 %v340, %v266
        %v347 = vrot.slane %v341, 1
        %v348 = vrot.slane %v342, 1
        %v349 = vsel %vm329, %v347, %v348
        %v350 = vrot.slane %v343, 1
        %v351 = vsel %vm329, %v348, %v350
        %352 = vrot.lane.b32.xlu0 %v349, 127
        %v353 = vpop.permute.xlu0 %352
        %354 = vrot.lane.b32.xlu0 %v351, 127
        %v355 = vpop.permute.xlu0 %354
        %v358 = vadd.f32 %v337, %v353
        %v359 = vadd.f32 %v338, %v355
        %s360 = sld [smem:[#allocation2 + $0x5]]
        %v361 = vstv %s360
        %v362 = vmul.f32 %v361, %v264
        %v363 = vmul.f32 %v361, %v265
        %v364 = vmul.f32 %v361, %v266
        %v368 = vrot.slane %v362, 1
        %v369 = vrot.slane %v363, 1
        %v370 = vsel %vm329, %v368, %v369
        %v371 = vrot.slane %v364, 1
        %v372 = vsel %vm329, %v369, %v371
        %373 = vrot.lane.b32.xlu0 %v370, 126
        %v374 = vpop.permute.xlu0 %373
        %375 = vrot.lane.b32.xlu0 %v372, 126
        %v376 = vpop.permute.xlu0 %375
        %v379 = vadd.f32 %v358, %v374
        %v380 = vadd.f32 %v359, %v376
        %s381 = sld [smem:[#allocation2 + $0x6]]
        %v382 = vstv %s381
        %v383 = vmul.f32 %v382, %v264
        %v384 = vmul.f32 %v382, %v265
        %v385 = vmul.f32 %v382, %v266
        %vm389 = vcmask 1045504
        %v390 = vrot.slane %v383, 2
        %v391 = vrot.slane %v384, 2
        %v392 = vsel %vm389, %v390, %v391
        %v393 = vrot.slane %v385, 2
        %v394 = vsel %vm389, %v391, %v393
        %v397 = vadd.f32 %v379, %v392
        %v398 = vadd.f32 %v380, %v394
        %s399 = sld [smem:[#allocation2 + $0x7]]
        %v400 = vstv %s399
        %v401 = vmul.f32 %v400, %v264
        %v402 = vmul.f32 %v400, %v265
        %v403 = vmul.f32 %v400, %v266
        %v407 = vrot.slane %v401, 2
        %v408 = vrot.slane %v402, 2
        %v409 = vsel %vm389, %v407, %v408
        %v410 = vrot.slane %v403, 2
        %v411 = vsel %vm389, %v408, %v410
        %412 = vrot.lane.b32.xlu0 %v409, 127
        %v413 = vpop.permute.xlu0 %412
        %414 = vrot.lane.b32.xlu0 %v411, 127
        %v415 = vpop.permute.xlu0 %414
        %v418 = vadd.f32 %v397, %v413
        %v419 = vadd.f32 %v398, %v415
        %s420 = sld [smem:[#allocation2 + $0x8]]
        %v421 = vstv %s420
        %v422 = vmul.f32 %v421, %v264
        %v423 = vmul.f32 %v421, %v265
        %v424 = vmul.f32 %v421, %v266
        %v428 = vrot.slane %v422, 2
        %v429 = vrot.slane %v423, 2
        %v430 = vsel %vm389, %v428, %v429
        %v431 = vrot.slane %v424, 2
        %v432 = vsel %vm389, %v429, %v431
        %433 = vrot.lane.b32.xlu0 %v430, 126
        %v434 = vpop.permute.xlu0 %433
        %435 = vrot.lane.b32.xlu0 %v432, 126
        %v436 = vpop.permute.xlu0 %435
        %v439 = vadd.f32 %v418, %v434
        %v440 = vadd.f32 %v419, %v436
        %s441 = sld [smem:[#allocation2 + $0x9]]
        %v442 = vstv %s441
        %v443 = vmul.f32 %v442, %v267
        %v444 = vmul.f32 %v442, %v268
        %v445 = vadd.f32 %v439, %v443
        %v446 = vadd.f32 %v440, %v444
        %s447 = sld [smem:[#allocation2 + $0xa]]
        %v448 = vstv %s447
        %v449 = vmul.f32 %v448, %v267
        %v450 = vmul.f32 %v448, %v268
        %453 = vrot.lane.b32.xlu0 %v449, 127
        %v454 = vpop.permute.xlu0 %453
        %455 = vrot.lane.b32.xlu0 %v450, 127
        %v456 = vpop.permute.xlu0 %455
        %v459 = vadd.f32 %v445, %v454
        %v460 = vadd.f32 %v446, %v456
        %s461 = sld [smem:[#allocation2 + $0xb]]
        %v462 = vstv %s461
        %v463 = vmul.f32 %v462, %v267
        %v464 = vmul.f32 %v462, %v268
        %467 = vrot.lane.b32.xlu0 %v463, 126
        %v468 = vpop.permute.xlu0 %467
        %469 = vrot.lane.b32.xlu0 %v464, 126
        %v470 = vpop.permute.xlu0 %469
        %v473 = vadd.f32 %v459, %v468
        %v474 = vadd.f32 %v460, %v470
        %s475 = sld [smem:[#allocation2 + $0xc]]
        %v476 = vstv %s475
        %v477 = vmul.f32 %v476, %v267
        %v478 = vmul.f32 %v476, %v268
        %v479 = vmul.f32 %v476, %v269
        %v483 = vrot.slane %v477, 1
        %v484 = vrot.slane %v478, 1
        %v485 = vsel %vm329, %v483, %v484
        %v486 = vrot.slane %v479, 1
        %v487 = vsel %vm329, %v484, %v486
        %v490 = vadd.f32 %v473, %v485
        %v491 = vadd.f32 %v474, %v487
        %s492 = sld [smem:[#allocation2 + $0xd]]
        %v493 = vstv %s492
        %v494 = vmul.f32 %v493, %v267
        %v495 = vmul.f32 %v493, %v268
        %v496 = vmul.f32 %v493, %v269
        %v500 = vrot.slane %v494, 1
        %v501 = vrot.slane %v495, 1
        %v502 = vsel %vm329, %v500, %v501
        %v503 = vrot.slane %v496, 1
        %v504 = vsel %vm329, %v501, %v503
        %505 = vrot.lane.b32.xlu0 %v502, 127
        %v506 = vpop.permute.xlu0 %505
        %507 = vrot.lane.b32.xlu0 %v504, 127
        %v508 = vpop.permute.xlu0 %507
        %v511 = vadd.f32 %v490, %v506
        %v512 = vadd.f32 %v491, %v508
        %s513 = sld [smem:[#allocation2 + $0xe]]
        %v514 = vstv %s513
        %v515 = vmul.f32 %v514, %v267
        %v516 = vmul.f32 %v514, %v268
        %v517 = vmul.f32 %v514, %v269
        %v521 = vrot.slane %v515, 1
        %v522 = vrot.slane %v516, 1
        %v523 = vsel %vm329, %v521, %v522
        %v524 = vrot.slane %v517, 1
        %v525 = vsel %vm329, %v522, %v524
        %526 = vrot.lane.b32.xlu0 %v523, 126
        %v527 = vpop.permute.xlu0 %526
        %528 = vrot.lane.b32.xlu0 %v525, 126
        %v529 = vpop.permute.xlu0 %528
        %v532 = vadd.f32 %v511, %v527
        %v533 = vadd.f32 %v512, %v529
        %s534 = sld [smem:[#allocation2 + $0xf]]
        %v535 = vstv %s534
        %v536 = vmul.f32 %v535, %v267
        %v537 = vmul.f32 %v535, %v268
        %v538 = vmul.f32 %v535, %v269
        %v542 = vrot.slane %v536, 2
        %v543 = vrot.slane %v537, 2
        %v544 = vsel %vm389, %v542, %v543
        %v545 = vrot.slane %v538, 2
        %v546 = vsel %vm389, %v543, %v545
        %v549 = vadd.f32 %v532, %v544
        %v550 = vadd.f32 %v533, %v546
        %s551 = sld [smem:[#allocation2 + $0x10]]
        %v552 = vstv %s551
        %v553 = vmul.f32 %v552, %v267
        %v554 = vmul.f32 %v552, %v268
        %v555 = vmul.f32 %v552, %v269
        %v559 = vrot.slane %v553, 2
        %v560 = vrot.slane %v554, 2
        %v561 = vsel %vm389, %v559, %v560
        %v562 = vrot.slane %v555, 2
        %v563 = vsel %vm389, %v560, %v562
        %564 = vrot.lane.b32.xlu0 %v561, 127
        %v565 = vpop.permute.xlu0 %564
        %566 = vrot.lane.b32.xlu0 %v563, 127
        %v567 = vpop.permute.xlu0 %566
        %v570 = vadd.f32 %v549, %v565
        %v571 = vadd.f32 %v550, %v567
        %s572 = sld [smem:[#allocation2 + $0x11]]
        %v573 = vstv %s572
        %v574 = vmul.f32 %v573, %v267
        %v575 = vmul.f32 %v573, %v268
        %v576 = vmul.f32 %v573, %v269
        %v580 = vrot.slane %v574, 2
        %v581 = vrot.slane %v575, 2
        %v582 = vsel %vm389, %v580, %v581
        %v583 = vrot.slane %v576, 2
        %v584 = vsel %vm389, %v581, %v583
        %585 = vrot.lane.b32.xlu0 %v582, 126
        %v586 = vpop.permute.xlu0 %585
        %587 = vrot.lane.b32.xlu0 %v584, 126
        %v588 = vpop.permute.xlu0 %587
        %v591 = vadd.f32 %v570, %v586
        %v592 = vadd.f32 %v571, %v588
        %s593 = sld [smem:[#allocation2 + $0x12]]
        %v594 = vstv %s593
        %v595 = vmul.f32 %v594, %v270
        %v596 = vmul.f32 %v594, %v271
        %v597 = vadd.f32 %v591, %v595
        %v598 = vadd.f32 %v592, %v596
        %s599 = sld [smem:[#allocation2 + $0x13]]
        %v600 = vstv %s599
        %v601 = vmul.f32 %v600, %v270
        %v602 = vmul.f32 %v600, %v271
        %605 = vrot.lane.b32.xlu0 %v601, 127
        %v606 = vpop.permute.xlu0 %605
        %607 = vrot.lane.b32.xlu0 %v602, 127
        %v608 = vpop.permute.xlu0 %607
        %v611 = vadd.f32 %v597, %v606
        %v612 = vadd.f32 %v598, %v608
        %s613 = sld [smem:[#allocation2 + $0x14]]
        %v614 = vstv %s613
        %v615 = vmul.f32 %v614, %v270
        %v616 = vmul.f32 %v614, %v271
        %619 = vrot.lane.b32.xlu0 %v615, 126
        %v620 = vpop.permute.xlu0 %619
        %621 = vrot.lane.b32.xlu0 %v616, 126
        %v622 = vpop.permute.xlu0 %621
        %v625 = vadd.f32 %v611, %v620
        %v626 = vadd.f32 %v612, %v622
        %s627 = sld [smem:[#allocation2 + $0x15]]
        %v628 = vstv %s627
        %v629 = vmul.f32 %v628, %v270
        %v630 = vmul.f32 %v628, %v271
        %v631 = vmul.f32 %v628, %v272
        %v635 = vrot.slane %v629, 1
        %v636 = vrot.slane %v630, 1
        %v637 = vsel %vm329, %v635, %v636
        %v638 = vrot.slane %v631, 1
        %v639 = vsel %vm329, %v636, %v638
        %v642 = vadd.f32 %v625, %v637
        %v643 = vadd.f32 %v626, %v639
        %s644 = sld [smem:[#allocation2 + $0x16]]
        %v645 = vstv %s644
        %v646 = vmul.f32 %v645, %v270
        %v647 = vmul.f32 %v645, %v271
        %v648 = vmul.f32 %v645, %v272
        %v652 = vrot.slane %v646, 1
        %v653 = vrot.slane %v647, 1
        %v654 = vsel %vm329, %v652, %v653
        %v655 = vrot.slane %v648, 1
        %v656 = vsel %vm329, %v653, %v655
        %657 = vrot.lane.b32.xlu0 %v654, 127
        %v658 = vpop.permute.xlu0 %657
        %659 = vrot.lane.b32.xlu0 %v656, 127
        %v660 = vpop.permute.xlu0 %659
        %v663 = vadd.f32 %v642, %v658
        %v664 = vadd.f32 %v643, %v660
        %s665 = sld [smem:[#allocation2 + $0x17]]
        %v666 = vstv %s665
        %v667 = vmul.f32 %v666, %v270
        %v668 = vmul.f32 %v666, %v271
        %v669 = vmul.f32 %v666, %v272
        %v673 = vrot.slane %v667, 1
        %v674 = vrot.slane %v668, 1
        %v675 = vsel %vm329, %v673, %v674
        %v676 = vrot.slane %v669, 1
        %v677 = vsel %vm329, %v674, %v676
        %678 = vrot.lane.b32.xlu0 %v675, 126
        %v679 = vpop.permute.xlu0 %678
        %680 = vrot.lane.b32.xlu0 %v677, 126
        %v681 = vpop.permute.xlu0 %680
        %v684 = vadd.f32 %v663, %v679
        %v685 = vadd.f32 %v664, %v681
        %s686 = sld [smem:[#allocation2 + $0x18]]
        %v687 = vstv %s686
        %v688 = vmul.f32 %v687, %v270
        %v689 = vmul.f32 %v687, %v271
        %v690 = vmul.f32 %v687, %v272
        %v694 = vrot.slane %v688, 2
        %v695 = vrot.slane %v689, 2
        %v696 = vsel %vm389, %v694, %v695
        %v697 = vrot.slane %v690, 2
        %v698 = vsel %vm389, %v695, %v697
        %v701 = vadd.f32 %v684, %v696
        %v702 = vadd.f32 %v685, %v698
        %s703 = sld [smem:[#allocation2 + $0x19]]
        %v704 = vstv %s703
        %v705 = vmul.f32 %v704, %v270
        %v706 = vmul.f32 %v704, %v271
        %v707 = vmul.f32 %v704, %v272
        %v711 = vrot.slane %v705, 2
        %v712 = vrot.slane %v706, 2
        %v713 = vsel %vm389, %v711, %v712
        %v714 = vrot.slane %v707, 2
        %v715 = vsel %vm389, %v712, %v714
        %716 = vrot.lane.b32.xlu0 %v713, 127
        %v717 = vpop.permute.xlu0 %716
        %718 = vrot.lane.b32.xlu0 %v715, 127
        %v719 = vpop.permute.xlu0 %718
        %v722 = vadd.f32 %v701, %v717
        %v723 = vadd.f32 %v702, %v719
        %s724 = sld [smem:[#allocation2 + $0x1a]]
        %v725 = vstv %s724
        %v726 = vmul.f32 %v725, %v270
        %v727 = vmul.f32 %v725, %v271
        %v728 = vmul.f32 %v725, %v272
        %v732 = vrot.slane %v726, 2
        %v733 = vrot.slane %v727, 2
        %v734 = vsel %vm389, %v732, %v733
        %v735 = vrot.slane %v728, 2
        %v736 = vsel %vm389, %v733, %v735
        %737 = vrot.lane.b32.xlu0 %v734, 126
        %v738 = vpop.permute.xlu0 %737
        %739 = vrot.lane.b32.xlu0 %v736, 126
        %v740 = vpop.permute.xlu0 %739
        %v743 = vadd.f32 %v722, %v738
        %v744 = vadd.f32 %v723, %v740
        %v745 = vxor.u32 %v743, 2147483648
        %v746 = vxor.u32 %v744, 2147483648
        %v747 = vmul.f32 %v745, 1.442695
        %v748 = vpow.pop %v747
        %v749 = vmul.f32 %v746, 1.442695
        %v750 = vpow.pop %v749
        %v751 = vadd.f32 %v748, 1.0
        %v752 = vadd.f32 %v750, 1.0
        %v753 = vrcp.pop %v751
        %v754 = vmul.f32 %v751, %v753
        %v755 = vsub.f32 1.0, %v754
        %v756 = vmul.f32 %v753, %v755
        %v757 = vadd.f32 %v753, %v756
        %vm758 = vweird.f32 %v751
        %vm759 = vweird.f32 %v753
        %vm760 = vmor %vm758, %vm759
        %v761 = vsel %vm760, %v753, %v757
        %v762 = vand.u32 2147483647, %v751
        %vm763 = vcmp.eq.f32.partialorder %v762, 8.507059e+37
        %v764 = vand.u32 %v751, 2147483648
        %v765 = vor.u32 1.1754944e-38, %v764
        %v766 = vsel %vm763, %v765, %v761
        %v767 = vmul.f32 1.0, %v766
        %v768 = vrcp.pop %v752
        %v769 = vmul.f32 %v752, %v768
        %v770 = vsub.f32 1.0, %v769
        %v771 = vmul.f32 %v768, %v770
        %v772 = vadd.f32 %v768, %v771
        %vm773 = vweird.f32 %v752
        %vm774 = vweird.f32 %v768
        %vm775 = vmor %vm773, %vm774
        %v776 = vsel %vm775, %v768, %v772
        %v777 = vand.u32 2147483647, %v752
        %vm778 = vcmp.eq.f32.partialorder %v777, 8.507059e+37
        %v779 = vand.u32 %v752, 2147483648
        %v780 = vor.u32 1.1754944e-38, %v779
        %v781 = vsel %vm778, %v780, %v776
        %v782 = vmul.f32 1.0, %v781
        %vm783 = vcmp.gt.f32.partialorder %v767, 0.5
        %vm784 = vcmp.gt.f32.partialorder %v782, 0.5
        %v788 = vrot.slane %v282, 1
        %v789 = vrot.slane %v283, 1
        %v790 = vsel %vm329, %v788, %v789
        %v791 = vrot.slane %v284, 1
        %v792 = vsel %vm329, %v789, %v791
        %793 = vrot.lane.b32.xlu0 %v790, 127
        %v794 = vpop.permute.xlu0 %793
        %795 = vrot.lane.b32.xlu0 %v792, 127
        %v796 = vpop.permute.xlu0 %795
        %v799 = vsel %vm783, 0.0, %v794
        %v800 = vsel %vm784, 0.0, %v796
        %v801 = vsub.f32 %v273, %v264
        %v802 = vsub.f32 %v274, %v265
        %v803 = vsub.f32 %v275, %v266
        %v804 = vsub.f32 %v276, %v267
        %v805 = vsub.f32 %v277, %v268
        %v806 = vsub.f32 %v278, %v269
        %v807 = vsub.f32 %v279, %v270
        %v808 = vsub.f32 %v280, %v271
        %v809 = vsub.f32 %v281, %v272
        %v819 = vrot.slane %v801, 1
        %v820 = vrot.slane %v802, 1
        %v821 = vsel %vm329, %v819, %v820
        %v822 = vrot.slane %v803, 1
        %v823 = vsel %vm329, %v820, %v822
        %v824 = vrot.slane %v804, 1
        %v825 = vrot.slane %v805, 1
        %v826 = vsel %vm329, %v824, %v825
        %v827 = vrot.slane %v806, 1
        %v828 = vsel %vm329, %v825, %v827
        %v829 = vrot.slane %v807, 1
        %v830 = vrot.slane %v808, 1
        %v831 = vsel %vm329, %v829, %v830
        %v832 = vrot.slane %v809, 1
        %v833 = vsel %vm329, %v830, %v832
        %834 = vrot.lane.b32.xlu0 %v821, 127
        %v835 = vpop.permute.xlu0 %834
        %836 = vrot.lane.b32.xlu0 %v823, 127
        %v837 = vpop.permute.xlu0 %836
        %838 = vrot.lane.b32.xlu0 %v826, 127
        %v839 = vpop.permute.xlu0 %838
        %840 = vrot.lane.b32.xlu0 %v828, 127
        %v841 = vpop.permute.xlu0 %840
        %842 = vrot.lane.b32.xlu0 %v831, 127
        %v843 = vpop.permute.xlu0 %842
        %844 = vrot.lane.b32.xlu0 %v833, 127
        %v845 = vpop.permute.xlu0 %844
        %v852 = vmul.f32 %v799, %v835
        %v853 = vmul.f32 %v800, %v837
        %v854 = vmul.f32 %v799, %v839
        %v855 = vmul.f32 %v800, %v841
        %v856 = vmul.f32 %v799, %v843
        %v857 = vmul.f32 %v800, %v845
        %vm864 = vcmask 1040384
        %v865 = vrot.slane %v852, 7
        %v866 = vrot.slane %v853, 7
        %v867 = vsel %vm864, %v865, %v866
        %v868 = vrot.slane %v854, 7
        %v869 = vrot.slane %v855, 7
        %v870 = vsel %vm864, %v868, %v869
        %v871 = vrot.slane %v856, 7
        %v872 = vrot.slane %v857, 7
        %v873 = vsel %vm864, %v871, %v872
        %874 = vrot.lane.b32.xlu0 %v865, 1
        %v875 = vpop.permute.xlu0 %874
        %876 = vrot.lane.b32.xlu0 %v867, 1
        %v877 = vpop.permute.xlu0 %876
        %878 = vrot.lane.b32.xlu0 %v866, 1
        %v879 = vpop.permute.xlu0 %878
        %880 = vrot.lane.b32.xlu0 %v868, 1
        %v881 = vpop.permute.xlu0 %880
        %882 = vrot.lane.b32.xlu0 %v870, 1
        %v883 = vpop.permute.xlu0 %882
        %884 = vrot.lane.b32.xlu0 %v869, 1
        %v885 = vpop.permute.xlu0 %884
        %886 = vrot.lane.b32.xlu0 %v871, 1
        %v887 = vpop.permute.xlu0 %886
        %888 = vrot.lane.b32.xlu0 %v873, 1
        %v889 = vpop.permute.xlu0 %888
        %890 = vrot.lane.b32.xlu0 %v872, 1
        %v891 = vpop.permute.xlu0 %890
        %v901 = vadd.f32 %v264, %v875
        %v902 = vadd.f32 %v265, %v877
        %v903 = vadd.f32 %v266, %v879
        %v904 = vadd.f32 %v267, %v881
        %v905 = vadd.f32 %v268, %v883
        %v906 = vadd.f32 %v269, %v885
        %v907 = vadd.f32 %v270, %v887
        %v908 = vadd.f32 %v271, %v889
        %v909 = vadd.f32 %v272, %v891
        %v919 = vrot.slane %v901, 1
        %v920 = vrot.slane %v902, 1
        %v921 = vsel %vm329, %v919, %v920
        %v922 = vrot.slane %v903, 1
        %v923 = vsel %vm329, %v920, %v922
        %v924 = vrot.slane %v904, 1
        %v925 = vrot.slane %v905, 1
        %v926 = vsel %vm329, %v924, %v925
        %v927 = vrot.slane %v906, 1
        %v928 = vsel %vm329, %v925, %v927
        %v929 = vrot.slane %v907, 1
        %v930 = vrot.slane %v908, 1
        %v931 = vsel %vm329, %v929, %v930
        %v932 = vrot.slane %v909, 1
        %v933 = vsel %vm329, %v930, %v932
        %v934 = vld [vmem:[#allocation6] sm:$0xff]
        %v935 = vld [vmem:[#allocation6 + $0x8] sm:$0xff]
        %v936 = vld [vmem:[#allocation6 + $0x10] sm:$0xff]
        %v937 = vld [vmem:[#allocation6 + $0x18] sm:$0xff]
        %v938 = vld [vmem:[#allocation6 + $0x20] sm:$0xff]
        %v939 = vld [vmem:[#allocation6 + $0x28] sm:$0xff]
        %v940 = vld [vmem:[#allocation6 + $0x30] sm:$0xff]
        %v941 = vld [vmem:[#allocation6 + $0x38] sm:$0xff]
        %v942 = vld [vmem:[#allocation6 + $0x40] sm:$0xff]
        %v943 = vld [vmem:[#allocation6 + $0x48] sm:$0xff]
        %v944 = vld [vmem:[#allocation6 + $0x50] sm:$0xff]
        %v945 = vld [vmem:[#allocation6 + $0x58] sm:$0xff]
        %v946 = vld [vmem:[#allocation6 + $0x60] sm:$0xff]
        %v947 = vld [vmem:[#allocation6 + $0x68] sm:$0xff]
        %v948 = vld [vmem:[#allocation6 + $0x70] sm:$0xff]
        %v949 = vld [vmem:[#allocation6 + $0x78] sm:$0xff]
        %v950 = vld [vmem:[#allocation6 + $0x80] sm:$0xff]
        %v951 = vld [vmem:[#allocation6 + $0x88] sm:$0xff]
        %v952 = vld [vmem:[#allocation6 + $0x90] sm:$0xff]
        %v953 = vld [vmem:[#allocation6 + $0x98] sm:$0xff]
        %954 = vrot.lane.b32.xlu0 %v921, 127
        %v955 = vpop.permute.xlu0 %954
        %956 = vrot.lane.b32.xlu0 %v923, 127
        %v957 = vpop.permute.xlu0 %956
        %958 = vrot.lane.b32.xlu0 %v926, 127
        %v959 = vpop.permute.xlu0 %958
        %960 = vrot.lane.b32.xlu0 %v928, 127
        %v961 = vpop.permute.xlu0 %960
        %962 = vrot.lane.b32.xlu0 %v931, 127
        %v963 = vpop.permute.xlu0 %962
        %964 = vrot.lane.b32.xlu0 %v933, 127
        %v965 = vpop.permute.xlu0 %964
        %vm966 = vcmask 130048
        %v967 = vsel %vm966, %v955, 0
        %v969 = vsel %vm966, %v957, 0
        %v971 = vsel %vm966, %v959, 0
        %v973 = vsel %vm966, %v961, 0
        %v975 = vsel %vm966, %v963, 0
        %v977 = vsel %vm966, %v965, 0
        %979 = vmatpush.msra.mxu0 0.0
        %980 = vmatpush.msra.mxu0 0.0
        %981 = vmatpush.msra.mxu0 0.0
        %982 = vmatpush.msra.mxu0 0.0
        %983 = vmatpush.msra.mxu0 0.0
        %984 = vmatpush.msra.mxu0 0.0
        %985 = vmatpush.msra.mxu0 0.0
        %986 = vmatpush.msra.mxu0 0.0
        %987 = vmatpush.msra.mxu0 0.0
        %988 = vmatpush.msra.mxu0 0.0
        %989 = vmatpush.msra.mxu0 0.0
        %990 = vmatpush.msra.mxu0 0.0
        %991 = vmatpush.msra.mxu0 0.0
        %992 = vmatpush.msra.mxu0 0.0
        %993 = vmatpush.msra.mxu0 %v944
        %994 = vmatpush.msra.mxu0 %v934
        %995 = vmatmul.f32.gmra.mxu0 %v967
        %v996 = vpop.f32.mrf.mxu0
        %v997 = vadd.f32 0.0, %v996
        %998 = vmatmul.f32.gmra.mxu0 %v969
        %v999 = vpop.f32.mrf.mxu0
        %v1000 = vadd.f32 0.0, %v999
        %1001 = vmatmul.f32.gmra.mxu0 %v971
        %v1002 = vpop.f32.mrf.mxu0
        %v1003 = vadd.f32 0.0, %v1002
        %1004 = vmatmul.f32.gmra.mxu0 %v973
        %v1005 = vpop.f32.mrf.mxu0
        %v1006 = vadd.f32 0.0, %v1005
        %1007 = vmatmul.f32.gmra.mxu0 %v975
        %v1008 = vpop.f32.mrf.mxu0
        %v1009 = vadd.f32 0.0, %v1008
        %1010 = vmatmul.f32.gmra.mxu0 %v977
        %v1011 = vpop.f32.mrf.mxu0
        %v1012 = vadd.f32 0.0, %v1011
        %1013 = vdwg.mxu0
        %1014 = vmatpush.msra.mxu0 0.0
        %1015 = vmatpush.msra.mxu0 0.0
        %1016 = vmatpush.msra.mxu0 0.0
        %1017 = vmatpush.msra.mxu0 0.0
        %1018 = vmatpush.msra.mxu0 0.0
        %1019 = vmatpush.msra.mxu0 0.0
        %1020 = vmatpush.msra.mxu0 0.0
        %1021 = vmatpush.msra.mxu0 0.0
        %1022 = vmatpush.msra.mxu0 0.0
        %1023 = vmatpush.msra.mxu0 0.0
        %1024 = vmatpush.msra.mxu0 0.0
        %1025 = vmatpush.msra.mxu0 0.0
        %1026 = vmatpush.msra.mxu0 0.0
        %1027 = vmatpush.msra.mxu0 0.0
        %1028 = vmatpush.msra.mxu0 %v945
        %1029 = vmatpush.msra.mxu0 %v935
        %1030 = vmatmul.f32.gmra.mxu0 %v967
        %v1031 = vpop.f32.mrf.mxu0
        %v1032 = vadd.f32 0.0, %v1031
        %1033 = vmatmul.f32.gmra.mxu0 %v969
        %v1034 = vpop.f32.mrf.mxu0
        %v1035 = vadd.f32 0.0, %v1034
        %1036 = vmatmul.f32.gmra.mxu0 %v971
        %v1037 = vpop.f32.mrf.mxu0
        %v1038 = vadd.f32 0.0, %v1037
        %1039 = vmatmul.f32.gmra.mxu0 %v973
        %v1040 = vpop.f32.mrf.mxu0
        %v1041 = vadd.f32 0.0, %v1040
        %1042 = vmatmul.f32.gmra.mxu0 %v975
        %v1043 = vpop.f32.mrf.mxu0
        %v1044 = vadd.f32 0.0, %v1043
        %1045 = vmatmul.f32.gmra.mxu0 %v977
        %v1046 = vpop.f32.mrf.mxu0
        %v1047 = vadd.f32 0.0, %v1046
        %1048 = vdwg.mxu0
        %1049 = vmatpush.msra.mxu0 0.0
        %1050 = vmatpush.msra.mxu0 0.0
        %1051 = vmatpush.msra.mxu0 0.0
        %1052 = vmatpush.msra.mxu0 0.0
        %1053 = vmatpush.msra.mxu0 0.0
        %1054 = vmatpush.msra.mxu0 0.0
        %1055 = vmatpush.msra.mxu0 0.0
        %1056 = vmatpush.msra.mxu0 0.0
        %1057 = vmatpush.msra.mxu0 0.0
        %1058 = vmatpush.msra.mxu0 0.0
        %1059 = vmatpush.msra.mxu0 0.0
        %1060 = vmatpush.msra.mxu0 0.0
        %1061 = vmatpush.msra.mxu0 0.0
        %1062 = vmatpush.msra.mxu0 0.0
        %1063 = vmatpush.msra.mxu0 %v946
        %1064 = vmatpush.msra.mxu0 %v936
        %1065 = vmatmul.f32.gmra.mxu0 %v967
        %v1066 = vpop.f32.mrf.mxu0
        %v1067 = vadd.f32 0.0, %v1066
        %1068 = vmatmul.f32.gmra.mxu0 %v969
        %v1069 = vpop.f32.mrf.mxu0
        %v1070 = vadd.f32 0.0, %v1069
        %1071 = vmatmul.f32.gmra.mxu0 %v971
        %v1072 = vpop.f32.mrf.mxu0
        %v1073 = vadd.f32 0.0, %v1072
        %1074 = vmatmul.f32.gmra.mxu0 %v973
        %v1075 = vpop.f32.mrf.mxu0
        %v1076 = vadd.f32 0.0, %v1075
        %1077 = vmatmul.f32.gmra.mxu0 %v975
        %v1078 = vpop.f32.mrf.mxu0
        %v1079 = vadd.f32 0.0, %v1078
        %1080 = vmatmul.f32.gmra.mxu0 %v977
        %v1081 = vpop.f32.mrf.mxu0
        %v1082 = vadd.f32 0.0, %v1081
        %1083 = vdwg.mxu0
        %1084 = vmatpush.msra.mxu0 0.0
        %1085 = vmatpush.msra.mxu0 0.0
        %1086 = vmatpush.msra.mxu0 0.0
        %1087 = vmatpush.msra.mxu0 0.0
        %1088 = vmatpush.msra.mxu0 0.0
        %1089 = vmatpush.msra.mxu0 0.0
        %1090 = vmatpush.msra.mxu0 0.0
        %1091 = vmatpush.msra.mxu0 0.0
        %1092 = vmatpush.msra.mxu0 0.0
        %1093 = vmatpush.msra.mxu0 0.0
        %1094 = vmatpush.msra.mxu0 0.0
        %1095 = vmatpush.msra.mxu0 0.0
        %1096 = vmatpush.msra.mxu0 0.0
        %1097 = vmatpush.msra.mxu0 0.0
        %1098 = vmatpush.msra.mxu0 %v947
        %1099 = vmatpush.msra.mxu0 %v937
        %1100 = vmatmul.f32.gmra.mxu0 %v967
        %v1101 = vpop.f32.mrf.mxu0
        %v1102 = vadd.f32 0.0, %v1101
        %1103 = vmatmul.f32.gmra.mxu0 %v969
        %v1104 = vpop.f32.mrf.mxu0
        %v1105 = vadd.f32 0.0, %v1104
        %1106 = vmatmul.f32.gmra.mxu0 %v971
        %v1107 = vpop.f32.mrf.mxu0
        %v1108 = vadd.f32 0.0, %v1107
        %1109 = vmatmul.f32.gmra.mxu0 %v973
        %v1110 = vpop.f32.mrf.mxu0
        %v1111 = vadd.f32 0.0, %v1110
        %1112 = vmatmul.f32.gmra.mxu0 %v975
        %v1113 = vpop.f32.mrf.mxu0
        %v1114 = vadd.f32 0.0, %v1113
        %1115 = vmatmul.f32.gmra.mxu0 %v977
        %v1116 = vpop.f32.mrf.mxu0
        %v1117 = vadd.f32 0.0, %v1116
        %1118 = vdwg.mxu0
        %1119 = vmatpush.msra.mxu0 0.0
        %1120 = vmatpush.msra.mxu0 0.0
        %1121 = vmatpush.msra.mxu0 0.0
        %1122 = vmatpush.msra.mxu0 0.0
        %1123 = vmatpush.msra.mxu0 0.0
        %1124 = vmatpush.msra.mxu0 0.0
        %1125 = vmatpush.msra.mxu0 0.0
        %1126 = vmatpush.msra.mxu0 0.0
        %1127 = vmatpush.msra.mxu0 0.0
        %1128 = vmatpush.msra.mxu0 0.0
        %1129 = vmatpush.msra.mxu0 0.0
        %1130 = vmatpush.msra.mxu0 0.0
        %1131 = vmatpush.msra.mxu0 0.0
        %1132 = vmatpush.msra.mxu0 0.0
        %1133 = vmatpush.msra.mxu0 %v948
        %1134 = vmatpush.msra.mxu0 %v938
        %1135 = vmatmul.f32.gmra.mxu0 %v967
        %v1136 = vpop.f32.mrf.mxu0
        %v1137 = vadd.f32 0.0, %v1136
        %1138 = vmatmul.f32.gmra.mxu0 %v969
        %v1139 = vpop.f32.mrf.mxu0
        %v1140 = vadd.f32 0.0, %v1139
        %1141 = vmatmul.f32.gmra.mxu0 %v971
        %v1142 = vpop.f32.mrf.mxu0
        %v1143 = vadd.f32 0.0, %v1142
        %1144 = vmatmul.f32.gmra.mxu0 %v973
        %v1145 = vpop.f32.mrf.mxu0
        %v1146 = vadd.f32 0.0, %v1145
        %1147 = vmatmul.f32.gmra.mxu0 %v975
        %v1148 = vpop.f32.mrf.mxu0
        %v1149 = vadd.f32 0.0, %v1148
        %1150 = vmatmul.f32.gmra.mxu0 %v977
        %v1151 = vpop.f32.mrf.mxu0
        %v1152 = vadd.f32 0.0, %v1151
        %1153 = vdwg.mxu0
        %1154 = vmatpush.msra.mxu0 0.0
        %1155 = vmatpush.msra.mxu0 0.0
        %1156 = vmatpush.msra.mxu0 0.0
        %1157 = vmatpush.msra.mxu0 0.0
        %1158 = vmatpush.msra.mxu0 0.0
        %1159 = vmatpush.msra.mxu0 0.0
        %1160 = vmatpush.msra.mxu0 0.0
        %1161 = vmatpush.msra.mxu0 0.0
        %1162 = vmatpush.msra.mxu0 0.0
        %1163 = vmatpush.msra.mxu0 0.0
        %1164 = vmatpush.msra.mxu0 0.0
        %1165 = vmatpush.msra.mxu0 0.0
        %1166 = vmatpush.msra.mxu0 0.0
        %1167 = vmatpush.msra.mxu0 0.0
        %1168 = vmatpush.msra.mxu0 %v949
        %1169 = vmatpush.msra.mxu0 %v939
        %1170 = vmatmul.f32.gmra.mxu0 %v967
        %v1171 = vpop.f32.mrf.mxu0
        %v1172 = vadd.f32 0.0, %v1171
        %1173 = vmatmul.f32.gmra.mxu0 %v969
        %v1174 = vpop.f32.mrf.mxu0
        %v1175 = vadd.f32 0.0, %v1174
        %1176 = vmatmul.f32.gmra.mxu0 %v971
        %v1177 = vpop.f32.mrf.mxu0
        %v1178 = vadd.f32 0.0, %v1177
        %1179 = vmatmul.f32.gmra.mxu0 %v973
        %v1180 = vpop.f32.mrf.mxu0
        %v1181 = vadd.f32 0.0, %v1180
        %1182 = vmatmul.f32.gmra.mxu0 %v975
        %v1183 = vpop.f32.mrf.mxu0
        %v1184 = vadd.f32 0.0, %v1183
        %1185 = vmatmul.f32.gmra.mxu0 %v977
        %v1186 = vpop.f32.mrf.mxu0
        %v1187 = vadd.f32 0.0, %v1186
        %1188 = vdwg.mxu0
        %1189 = vmatpush.msra.mxu0 0.0
        %1190 = vmatpush.msra.mxu0 0.0
        %1191 = vmatpush.msra.mxu0 0.0
        %1192 = vmatpush.msra.mxu0 0.0
        %1193 = vmatpush.msra.mxu0 0.0
        %1194 = vmatpush.msra.mxu0 0.0
        %1195 = vmatpush.msra.mxu0 0.0
        %1196 = vmatpush.msra.mxu0 0.0
        %1197 = vmatpush.msra.mxu0 0.0
        %1198 = vmatpush.msra.mxu0 0.0
        %1199 = vmatpush.msra.mxu0 0.0
        %1200 = vmatpush.msra.mxu0 0.0
        %1201 = vmatpush.msra.mxu0 0.0
        %1202 = vmatpush.msra.mxu0 0.0
        %1203 = vmatpush.msra.mxu0 %v950
        %1204 = vmatpush.msra.mxu0 %v940
        %1205 = vmatmul.f32.gmra.mxu0 %v967
        %v1206 = vpop.f32.mrf.mxu0
        %v1207 = vadd.f32 0.0, %v1206
        %1208 = vmatmul.f32.gmra.mxu0 %v969
        %v1209 = vpop.f32.mrf.mxu0
        %v1210 = vadd.f32 0.0, %v1209
        %1211 = vmatmul.f32.gmra.mxu0 %v971
        %v1212 = vpop.f32.mrf.mxu0
        %v1213 = vadd.f32 0.0, %v1212
        %1214 = vmatmul.f32.gmra.mxu0 %v973
        %v1215 = vpop.f32.mrf.mxu0
        %v1216 = vadd.f32 0.0, %v1215
        %1217 = vmatmul.f32.gmra.mxu0 %v975
        %v1218 = vpop.f32.mrf.mxu0
        %v1219 = vadd.f32 0.0, %v1218
        %1220 = vmatmul.f32.gmra.mxu0 %v977
        %v1221 = vpop.f32.mrf.mxu0
        %v1222 = vadd.f32 0.0, %v1221
        %1223 = vdwg.mxu0
        %1224 = vmatpush.msra.mxu0 0.0
        %1225 = vmatpush.msra.mxu0 0.0
        %1226 = vmatpush.msra.mxu0 0.0
        %1227 = vmatpush.msra.mxu0 0.0
        %1228 = vmatpush.msra.mxu0 0.0
        %1229 = vmatpush.msra.mxu0 0.0
        %1230 = vmatpush.msra.mxu0 0.0
        %1231 = vmatpush.msra.mxu0 0.0
        %1232 = vmatpush.msra.mxu0 0.0
        %1233 = vmatpush.msra.mxu0 0.0
        %1234 = vmatpush.msra.mxu0 0.0
        %1235 = vmatpush.msra.mxu0 0.0
        %1236 = vmatpush.msra.mxu0 0.0
        %1237 = vmatpush.msra.mxu0 0.0
        %1238 = vmatpush.msra.mxu0 %v951
        %1239 = vmatpush.msra.mxu0 %v941
        %1240 = vmatmul.f32.gmra.mxu0 %v967
        %v1241 = vpop.f32.mrf.mxu0
        %v1242 = vadd.f32 0.0, %v1241
        %1243 = vmatmul.f32.gmra.mxu0 %v969
        %v1244 = vpop.f32.mrf.mxu0
        %v1245 = vadd.f32 0.0, %v1244
        %1246 = vmatmul.f32.gmra.mxu0 %v971
        %v1247 = vpop.f32.mrf.mxu0
        %v1248 = vadd.f32 0.0, %v1247
        %1249 = vmatmul.f32.gmra.mxu0 %v973
        %v1250 = vpop.f32.mrf.mxu0
        %v1251 = vadd.f32 0.0, %v1250
        %1252 = vmatmul.f32.gmra.mxu0 %v975
        %v1253 = vpop.f32.mrf.mxu0
        %v1254 = vadd.f32 0.0, %v1253
        %1255 = vmatmul.f32.gmra.mxu0 %v977
        %v1256 = vpop.f32.mrf.mxu0
        %v1257 = vadd.f32 0.0, %v1256
        %1258 = vdwg.mxu0
        %1259 = vmatpush.msra.mxu0 0.0
        %1260 = vmatpush.msra.mxu0 0.0
        %1261 = vmatpush.msra.mxu0 0.0
        %1262 = vmatpush.msra.mxu0 0.0
        %1263 = vmatpush.msra.mxu0 0.0
        %1264 = vmatpush.msra.mxu0 0.0
        %1265 = vmatpush.msra.mxu0 0.0
        %1266 = vmatpush.msra.mxu0 0.0
        %1267 = vmatpush.msra.mxu0 0.0
        %1268 = vmatpush.msra.mxu0 0.0
        %1269 = vmatpush.msra.mxu0 0.0
        %1270 = vmatpush.msra.mxu0 0.0
        %1271 = vmatpush.msra.mxu0 0.0
        %1272 = vmatpush.msra.mxu0 0.0
        %1273 = vmatpush.msra.mxu0 %v952
        %1274 = vmatpush.msra.mxu0 %v942
        %1275 = vmatmul.f32.gmra.mxu0 %v967
        %v1276 = vpop.f32.mrf.mxu0
        %v1277 = vadd.f32 0.0, %v1276
        %1278 = vmatmul.f32.gmra.mxu0 %v969
        %v1279 = vpop.f32.mrf.mxu0
        %v1280 = vadd.f32 0.0, %v1279
        %1281 = vmatmul.f32.gmra.mxu0 %v971
        %v1282 = vpop.f32.mrf.mxu0
        %v1283 = vadd.f32 0.0, %v1282
        %1284 = vmatmul.f32.gmra.mxu0 %v973
        %v1285 = vpop.f32.mrf.mxu0
        %v1286 = vadd.f32 0.0, %v1285
        %1287 = vmatmul.f32.gmra.mxu0 %v975
        %v1288 = vpop.f32.mrf.mxu0
        %v1289 = vadd.f32 0.0, %v1288
        %1290 = vmatmul.f32.gmra.mxu0 %v977
        %v1291 = vpop.f32.mrf.mxu0
        %v1292 = vadd.f32 0.0, %v1291
        %1293 = vdwg.mxu0
        %1294 = vmatpush.msra.mxu0 0.0
        %1295 = vmatpush.msra.mxu0 0.0
        %1296 = vmatpush.msra.mxu0 0.0
        %1297 = vmatpush.msra.mxu0 0.0
        %1298 = vmatpush.msra.mxu0 0.0
        %1299 = vmatpush.msra.mxu0 0.0
        %1300 = vmatpush.msra.mxu0 0.0
        %1301 = vmatpush.msra.mxu0 0.0
        %1302 = vmatpush.msra.mxu0 0.0
        %1303 = vmatpush.msra.mxu0 0.0
        %1304 = vmatpush.msra.mxu0 0.0
        %1305 = vmatpush.msra.mxu0 0.0
        %1306 = vmatpush.msra.mxu0 0.0
        %1307 = vmatpush.msra.mxu0 0.0
        %1308 = vmatpush.msra.mxu0 %v953
        %1309 = vmatpush.msra.mxu0 %v943
        %1310 = vmatmul.f32.gmra.mxu0 %v967
        %v1311 = vpop.f32.mrf.mxu0
        %v1312 = vadd.f32 0.0, %v1311
        %1313 = vmatmul.f32.gmra.mxu0 %v969
        %v1314 = vpop.f32.mrf.mxu0
        %v1315 = vadd.f32 0.0, %v1314
        %1316 = vmatmul.f32.gmra.mxu0 %v971
        %v1317 = vpop.f32.mrf.mxu0
        %v1318 = vadd.f32 0.0, %v1317
        %1319 = vmatmul.f32.gmra.mxu0 %v973
        %v1320 = vpop.f32.mrf.mxu0
        %v1321 = vadd.f32 0.0, %v1320
        %1322 = vmatmul.f32.gmra.mxu0 %v975
        %v1323 = vpop.f32.mrf.mxu0
        %v1324 = vadd.f32 0.0, %v1323
        %1325 = vmatmul.f32.gmra.mxu0 %v977
        %v1326 = vpop.f32.mrf.mxu0
        %v1327 = vadd.f32 0.0, %v1326
        %1328 = vdwg.mxu0
        %v1329 = vld [vmem:[%s261] sm:$0xff]
        %v1330 = vld [vmem:[%s261 + $0x8] sm:$0xff]
        %v1331 = vld [vmem:[%s261 + $0x10] sm:$0xff]
        %v1332 = vld [vmem:[%s261 + $0x18] sm:$0xff]
        %v1333 = vld [vmem:[%s261 + $0x20] sm:$0xff]
        %v1334 = vld [vmem:[%s261 + $0x28] sm:$0xff]
        %v1335 = vld [vmem:[%s261 + $0x30] sm:$0xff]
        %v1336 = vld [vmem:[%s261 + $0x38] sm:$0xff]
        %v1337 = vld [vmem:[%s261 + $0x40] sm:$0xff]
        %v1338 = vld [vmem:[%s261 + $0x48] sm:$0xff]
        %v1339 = vld [vmem:[%s261 + $0x50] sm:$0xff]
        %v1340 = vld [vmem:[%s261 + $0x58] sm:$0xff]
        %v1341 = vld [vmem:[%s261 + $0x60] sm:$0xff]
        %v1342 = vld [vmem:[%s261 + $0x68] sm:$0xff]
        %v1343 = vld [vmem:[%s261 + $0x70] sm:$0xff]
        %v1344 = vld [vmem:[%s261 + $0x78] sm:$0xff]
        %v1345 = vld [vmem:[%s261 + $0x80] sm:$0xff]
        %v1346 = vld [vmem:[%s261 + $0x88] sm:$0xff]
        %v1347 = vld [vmem:[%s261 + $0x90] sm:$0xff]
        %v1348 = vld [vmem:[%s261 + $0x98] sm:$0xff]
        %v1349 = vld [vmem:[%s261 + $0xa0] sm:$0xff]
        %v1350 = vld [vmem:[%s261 + $0xa8] sm:$0xff]
        %v1351 = vld [vmem:[%s261 + $0xb0] sm:$0xff]
        %v1352 = vld [vmem:[%s261 + $0xb8] sm:$0xff]
        %v1353 = vld [vmem:[%s261 + $0xc0] sm:$0xff]
        %v1354 = vld [vmem:[%s261 + $0xc8] sm:$0xff]
        %v1355 = vld [vmem:[%s261 + $0xd0] sm:$0xff]
        %v1356 = vld [vmem:[%s261 + $0xd8] sm:$0xff]
        %v1357 = vld [vmem:[%s261 + $0xe0] sm:$0xff]
        %v1358 = vld [vmem:[%s261 + $0xe8] sm:$0xff]
        %v1360 = vsel %vm966, %v1329, 0
        %v1363 = vsel %vm966, %v1330, 0
        %v1366 = vsel %vm966, %v1331, 0
        %v1369 = vsel %vm966, %v1332, 0
        %v1372 = vsel %vm966, %v1333, 0
        %v1375 = vsel %vm966, %v1334, 0
        %v1378 = vsel %vm966, %v1335, 0
        %v1381 = vsel %vm966, %v1336, 0
        %v1384 = vsel %vm966, %v1337, 0
        %v1387 = vsel %vm966, %v1338, 0
        %v1390 = vsel %vm966, %v1339, 0
        %v1393 = vsel %vm966, %v1340, 0
        %v1396 = vsel %vm966, %v1341, 0
        %v1399 = vsel %vm966, %v1342, 0
        %v1402 = vsel %vm966, %v1343, 0
        %v1405 = vsel %vm966, %v1344, 0
        %v1408 = vsel %vm966, %v1345, 0
        %v1411 = vsel %vm966, %v1346, 0
        %v1414 = vsel %vm966, %v1347, 0
        %v1417 = vsel %vm966, %v1348, 0
        %v1420 = vsel %vm966, %v1349, 0
        %v1423 = vsel %vm966, %v1350, 0
        %v1426 = vsel %vm966, %v1351, 0
        %v1429 = vsel %vm966, %v1352, 0
        %v1432 = vsel %vm966, %v1353, 0
        %v1435 = vsel %vm966, %v1354, 0
        %v1438 = vsel %vm966, %v1355, 0
        %v1441 = vsel %vm966, %v1356, 0
        %v1444 = vsel %vm966, %v1357, 0
        %v1447 = vsel %vm966, %v1358, 0
        %1449 = vmatpush.msra.mxu0 0.0
        %1450 = vmatpush.msra.mxu0 0.0
        %1451 = vmatpush.msra.mxu0 0.0
        %1452 = vmatpush.msra.mxu0 0.0
        %1453 = vmatpush.msra.mxu0 0.0
        %1454 = vmatpush.msra.mxu0 0.0
        %1455 = vmatpush.msra.mxu0 0.0
        %1456 = vmatpush.msra.mxu0 0.0
        %1457 = vmatpush.msra.mxu0 0.0
        %1458 = vmatpush.msra.mxu0 0.0
        %1459 = vmatpush.msra.mxu0 0.0
        %1460 = vmatpush.msra.mxu0 0.0
        %1461 = vmatpush.msra.mxu0 0.0
        %1462 = vmatpush.msra.mxu0 0.0
        %1463 = vmatpush.msra.mxu0 %v1000
        %1464 = vmatpush.msra.mxu0 %v997
        %1465 = vmatmul.f32.gmra.mxu0 %v1360
        %v1466 = vpop.f32.mrf.mxu0
        %v1467 = vadd.f32 0.0, %v1466
        %1468 = vmatmul.f32.gmra.mxu0 %v1363
        %v1469 = vpop.f32.mrf.mxu0
        %v1470 = vadd.f32 0.0, %v1469
        %1471 = vmatmul.f32.gmra.mxu0 %v1366
        %v1472 = vpop.f32.mrf.mxu0
        %v1473 = vadd.f32 0.0, %v1472
        %1474 = vmatmul.f32.gmra.mxu0 %v1369
        %v1475 = vpop.f32.mrf.mxu0
        %v1476 = vadd.f32 0.0, %v1475
        %1477 = vmatmul.f32.gmra.mxu0 %v1372
        %v1478 = vpop.f32.mrf.mxu0
        %v1479 = vadd.f32 0.0, %v1478
        %1480 = vmatmul.f32.gmra.mxu0 %v1375
        %v1481 = vpop.f32.mrf.mxu0
        %v1482 = vadd.f32 0.0, %v1481
        %1483 = vmatmul.f32.gmra.mxu0 %v1378
        %v1484 = vpop.f32.mrf.mxu0
        %v1485 = vadd.f32 0.0, %v1484
        %1486 = vmatmul.f32.gmra.mxu0 %v1381
        %v1487 = vpop.f32.mrf.mxu0
        %v1488 = vadd.f32 0.0, %v1487
        %1489 = vmatmul.f32.gmra.mxu0 %v1384
        %v1490 = vpop.f32.mrf.mxu0
        %v1491 = vadd.f32 0.0, %v1490
        %1492 = vmatmul.f32.gmra.mxu0 %v1387
        %v1493 = vpop.f32.mrf.mxu0
        %v1494 = vadd.f32 0.0, %v1493
        %1495 = vmatmul.f32.gmra.mxu0 %v1390
        %v1496 = vpop.f32.mrf.mxu0
        %v1497 = vadd.f32 0.0, %v1496
        %1498 = vmatmul.f32.gmra.mxu0 %v1393
        %v1499 = vpop.f32.mrf.mxu0
        %v1500 = vadd.f32 0.0, %v1499
        %1501 = vmatmul.f32.gmra.mxu0 %v1396
        %v1502 = vpop.f32.mrf.mxu0
        %v1503 = vadd.f32 0.0, %v1502
        %1504 = vmatmul.f32.gmra.mxu0 %v1399
        %v1505 = vpop.f32.mrf.mxu0
        %v1506 = vadd.f32 0.0, %v1505
        %1507 = vmatmul.f32.gmra.mxu0 %v1402
        %v1508 = vpop.f32.mrf.mxu0
        %v1509 = vadd.f32 0.0, %v1508
        %1510 = vmatmul.f32.gmra.mxu0 %v1405
        %v1511 = vpop.f32.mrf.mxu0
        %v1512 = vadd.f32 0.0, %v1511
        %1513 = vmatmul.f32.gmra.mxu0 %v1408
        %v1514 = vpop.f32.mrf.mxu0
        %v1515 = vadd.f32 0.0, %v1514
        %1516 = vmatmul.f32.gmra.mxu0 %v1411
        %v1517 = vpop.f32.mrf.mxu0
        %v1518 = vadd.f32 0.0, %v1517
        %1519 = vmatmul.f32.gmra.mxu0 %v1414
        %v1520 = vpop.f32.mrf.mxu0
        %v1521 = vadd.f32 0.0, %v1520
        %1522 = vmatmul.f32.gmra.mxu0 %v1417
        %v1523 = vpop.f32.mrf.mxu0
        %v1524 = vadd.f32 0.0, %v1523
        %1525 = vmatmul.f32.gmra.mxu0 %v1420
        %v1526 = vpop.f32.mrf.mxu0
        %v1527 = vadd.f32 0.0, %v1526
        %1528 = vmatmul.f32.gmra.mxu0 %v1423
        %v1529 = vpop.f32.mrf.mxu0
        %v1530 = vadd.f32 0.0, %v1529
        %1531 = vmatmul.f32.gmra.mxu0 %v1426
        %v1532 = vpop.f32.mrf.mxu0
        %v1533 = vadd.f32 0.0, %v1532
        %1534 = vmatmul.f32.gmra.mxu0 %v1429
        %v1535 = vpop.f32.mrf.mxu0
        %v1536 = vadd.f32 0.0, %v1535
        %1537 = vmatmul.f32.gmra.mxu0 %v1432
        %v1538 = vpop.f32.mrf.mxu0
        %v1539 = vadd.f32 0.0, %v1538
        %1540 = vmatmul.f32.gmra.mxu0 %v1435
        %v1541 = vpop.f32.mrf.mxu0
        %v1542 = vadd.f32 0.0, %v1541
        %1543 = vmatmul.f32.gmra.mxu0 %v1438
        %v1544 = vpop.f32.mrf.mxu0
        %v1545 = vadd.f32 0.0, %v1544
        %1546 = vmatmul.f32.gmra.mxu0 %v1441
        %v1547 = vpop.f32.mrf.mxu0
        %v1548 = vadd.f32 0.0, %v1547
        %1549 = vmatmul.f32.gmra.mxu0 %v1444
        %v1550 = vpop.f32.mrf.mxu0
        %v1551 = vadd.f32 0.0, %v1550
        %1552 = vmatmul.f32.gmra.mxu0 %v1447
        %v1553 = vpop.f32.mrf.mxu0
        %v1554 = vadd.f32 0.0, %v1553
        %1555 = vdwg.mxu0
        %1556 = vmatpush.msra.mxu0 0.0
        %1557 = vmatpush.msra.mxu0 0.0
        %1558 = vmatpush.msra.mxu0 0.0
        %1559 = vmatpush.msra.mxu0 0.0
        %1560 = vmatpush.msra.mxu0 0.0
        %1561 = vmatpush.msra.mxu0 0.0
        %1562 = vmatpush.msra.mxu0 0.0
        %1563 = vmatpush.msra.mxu0 0.0
        %1564 = vmatpush.msra.mxu0 0.0
        %1565 = vmatpush.msra.mxu0 0.0
        %1566 = vmatpush.msra.mxu0 0.0
        %1567 = vmatpush.msra.mxu0 0.0
        %1568 = vmatpush.msra.mxu0 0.0
        %1569 = vmatpush.msra.mxu0 0.0
        %1570 = vmatpush.msra.mxu0 %v1035
        %1571 = vmatpush.msra.mxu0 %v1032
        %1572 = vmatmul.f32.gmra.mxu0 %v1360
        %v1573 = vpop.f32.mrf.mxu0
        %v1574 = vadd.f32 0.0, %v1573
        %1575 = vmatmul.f32.gmra.mxu0 %v1363
        %v1576 = vpop.f32.mrf.mxu0
        %v1577 = vadd.f32 0.0, %v1576
        %1578 = vmatmul.f32.gmra.mxu0 %v1366
        %v1579 = vpop.f32.mrf.mxu0
        %v1580 = vadd.f32 0.0, %v1579
        %1581 = vmatmul.f32.gmra.mxu0 %v1369
        %v1582 = vpop.f32.mrf.mxu0
        %v1583 = vadd.f32 0.0, %v1582
        %1584 = vmatmul.f32.gmra.mxu0 %v1372
        %v1585 = vpop.f32.mrf.mxu0
        %v1586 = vadd.f32 0.0, %v1585
        %1587 = vmatmul.f32.gmra.mxu0 %v1375
        %v1588 = vpop.f32.mrf.mxu0
        %v1589 = vadd.f32 0.0, %v1588
        %1590 = vmatmul.f32.gmra.mxu0 %v1378
        %v1591 = vpop.f32.mrf.mxu0
        %v1592 = vadd.f32 0.0, %v1591
        %1593 = vmatmul.f32.gmra.mxu0 %v1381
        %v1594 = vpop.f32.mrf.mxu0
        %v1595 = vadd.f32 0.0, %v1594
        %1596 = vmatmul.f32.gmra.mxu0 %v1384
        %v1597 = vpop.f32.mrf.mxu0
        %v1598 = vadd.f32 0.0, %v1597
        %1599 = vmatmul.f32.gmra.mxu0 %v1387
        %v1600 = vpop.f32.mrf.mxu0
        %v1601 = vadd.f32 0.0, %v1600
        %1602 = vmatmul.f32.gmra.mxu0 %v1390
        %v1603 = vpop.f32.mrf.mxu0
        %v1604 = vadd.f32 0.0, %v1603
        %1605 = vmatmul.f32.gmra.mxu0 %v1393
        %v1606 = vpop.f32.mrf.mxu0
        %v1607 = vadd.f32 0.0, %v1606
        %1608 = vmatmul.f32.gmra.mxu0 %v1396
        %v1609 = vpop.f32.mrf.mxu0
        %v1610 = vadd.f32 0.0, %v1609
        %1611 = vmatmul.f32.gmra.mxu0 %v1399
        %v1612 = vpop.f32.mrf.mxu0
        %v1613 = vadd.f32 0.0, %v1612
        %1614 = vmatmul.f32.gmra.mxu0 %v1402
        %v1615 = vpop.f32.mrf.mxu0
        %v1616 = vadd.f32 0.0, %v1615
        %1617 = vmatmul.f32.gmra.mxu0 %v1405
        %v1618 = vpop.f32.mrf.mxu0
        %v1619 = vadd.f32 0.0, %v1618
        %1620 = vmatmul.f32.gmra.mxu0 %v1408
        %v1621 = vpop.f32.mrf.mxu0
        %v1622 = vadd.f32 0.0, %v1621
        %1623 = vmatmul.f32.gmra.mxu0 %v1411
        %v1624 = vpop.f32.mrf.mxu0
        %v1625 = vadd.f32 0.0, %v1624
        %1626 = vmatmul.f32.gmra.mxu0 %v1414
        %v1627 = vpop.f32.mrf.mxu0
        %v1628 = vadd.f32 0.0, %v1627
        %1629 = vmatmul.f32.gmra.mxu0 %v1417
        %v1630 = vpop.f32.mrf.mxu0
        %v1631 = vadd.f32 0.0, %v1630
        %1632 = vmatmul.f32.gmra.mxu0 %v1420
        %v1633 = vpop.f32.mrf.mxu0
        %v1634 = vadd.f32 0.0, %v1633
        %1635 = vmatmul.f32.gmra.mxu0 %v1423
        %v1636 = vpop.f32.mrf.mxu0
        %v1637 = vadd.f32 0.0, %v1636
        %1638 = vmatmul.f32.gmra.mxu0 %v1426
        %v1639 = vpop.f32.mrf.mxu0
        %v1640 = vadd.f32 0.0, %v1639
        %1641 = vmatmul.f32.gmra.mxu0 %v1429
        %v1642 = vpop.f32.mrf.mxu0
        %v1643 = vadd.f32 0.0, %v1642
        %1644 = vmatmul.f32.gmra.mxu0 %v1432
        %v1645 = vpop.f32.mrf.mxu0
        %v1646 = vadd.f32 0.0, %v1645
        %1647 = vmatmul.f32.gmra.mxu0 %v1435
        %v1648 = vpop.f32.mrf.mxu0
        %v1649 = vadd.f32 0.0, %v1648
        %1650 = vmatmul.f32.gmra.mxu0 %v1438
        %v1651 = vpop.f32.mrf.mxu0
        %v1652 = vadd.f32 0.0, %v1651
        %1653 = vmatmul.f32.gmra.mxu0 %v1441
        %v1654 = vpop.f32.mrf.mxu0
        %v1655 = vadd.f32 0.0, %v1654
        %1656 = vmatmul.f32.gmra.mxu0 %v1444
        %v1657 = vpop.f32.mrf.mxu0
        %v1658 = vadd.f32 0.0, %v1657
        %1659 = vmatmul.f32.gmra.mxu0 %v1447
        %v1660 = vpop.f32.mrf.mxu0
        %v1661 = vadd.f32 0.0, %v1660
        %1662 = vdwg.mxu0
        %1663 = vmatpush.msra.mxu0 0.0
        %1664 = vmatpush.msra.mxu0 0.0
        %1665 = vmatpush.msra.mxu0 0.0
        %1666 = vmatpush.msra.mxu0 0.0
        %1667 = vmatpush.msra.mxu0 0.0
        %1668 = vmatpush.msra.mxu0 0.0
        %1669 = vmatpush.msra.mxu0 0.0
        %1670 = vmatpush.msra.mxu0 0.0
        %1671 = vmatpush.msra.mxu0 0.0
        %1672 = vmatpush.msra.mxu0 0.0
        %1673 = vmatpush.msra.mxu0 0.0
        %1674 = vmatpush.msra.mxu0 0.0
        %1675 = vmatpush.msra.mxu0 0.0
        %1676 = vmatpush.msra.mxu0 0.0
        %1677 = vmatpush.msra.mxu0 %v1070
        %1678 = vmatpush.msra.mxu0 %v1067
        %1679 = vmatmul.f32.gmra.mxu0 %v1360
        %v1680 = vpop.f32.mrf.mxu0
        %v1681 = vadd.f32 0.0, %v1680
        %1682 = vmatmul.f32.gmra.mxu0 %v1363
        %v1683 = vpop.f32.mrf.mxu0
        %v1684 = vadd.f32 0.0, %v1683
        %1685 = vmatmul.f32.gmra.mxu0 %v1366
        %v1686 = vpop.f32.mrf.mxu0
        %v1687 = vadd.f32 0.0, %v1686
        %1688 = vmatmul.f32.gmra.mxu0 %v1369
        %v1689 = vpop.f32.mrf.mxu0
        %v1690 = vadd.f32 0.0, %v1689
        %1691 = vmatmul.f32.gmra.mxu0 %v1372
        %v1692 = vpop.f32.mrf.mxu0
        %v1693 = vadd.f32 0.0, %v1692
        %1694 = vmatmul.f32.gmra.mxu0 %v1375
        %v1695 = vpop.f32.mrf.mxu0
        %v1696 = vadd.f32 0.0, %v1695
        %1697 = vmatmul.f32.gmra.mxu0 %v1378
        %v1698 = vpop.f32.mrf.mxu0
        %v1699 = vadd.f32 0.0, %v1698
        %1700 = vmatmul.f32.gmra.mxu0 %v1381
        %v1701 = vpop.f32.mrf.mxu0
        %v1702 = vadd.f32 0.0, %v1701
        %1703 = vmatmul.f32.gmra.mxu0 %v1384
        %v1704 = vpop.f32.mrf.mxu0
        %v1705 = vadd.f32 0.0, %v1704
        %1706 = vmatmul.f32.gmra.mxu0 %v1387
        %v1707 = vpop.f32.mrf.mxu0
        %v1708 = vadd.f32 0.0, %v1707
        %1709 = vmatmul.f32.gmra.mxu0 %v1390
        %v1710 = vpop.f32.mrf.mxu0
        %v1711 = vadd.f32 0.0, %v1710
        %1712 = vmatmul.f32.gmra.mxu0 %v1393
        %v1713 = vpop.f32.mrf.mxu0
        %v1714 = vadd.f32 0.0, %v1713
        %1715 = vmatmul.f32.gmra.mxu0 %v1396
        %v1716 = vpop.f32.mrf.mxu0
        %v1717 = vadd.f32 0.0, %v1716
        %1718 = vmatmul.f32.gmra.mxu0 %v1399
        %v1719 = vpop.f32.mrf.mxu0
        %v1720 = vadd.f32 0.0, %v1719
        %1721 = vmatmul.f32.gmra.mxu0 %v1402
        %v1722 = vpop.f32.mrf.mxu0
        %v1723 = vadd.f32 0.0, %v1722
        %1724 = vmatmul.f32.gmra.mxu0 %v1405
        %v1725 = vpop.f32.mrf.mxu0
        %v1726 = vadd.f32 0.0, %v1725
        %1727 = vmatmul.f32.gmra.mxu0 %v1408
        %v1728 = vpop.f32.mrf.mxu0
        %v1729 = vadd.f32 0.0, %v1728
        %1730 = vmatmul.f32.gmra.mxu0 %v1411
        %v1731 = vpop.f32.mrf.mxu0
        %v1732 = vadd.f32 0.0, %v1731
        %1733 = vmatmul.f32.gmra.mxu0 %v1414
        %v1734 = vpop.f32.mrf.mxu0
        %v1735 = vadd.f32 0.0, %v1734
        %1736 = vmatmul.f32.gmra.mxu0 %v1417
        %v1737 = vpop.f32.mrf.mxu0
        %v1738 = vadd.f32 0.0, %v1737
        %1739 = vmatmul.f32.gmra.mxu0 %v1420
        %v1740 = vpop.f32.mrf.mxu0
        %v1741 = vadd.f32 0.0, %v1740
        %1742 = vmatmul.f32.gmra.mxu0 %v1423
        %v1743 = vpop.f32.mrf.mxu0
        %v1744 = vadd.f32 0.0, %v1743
        %1745 = vmatmul.f32.gmra.mxu0 %v1426
        %v1746 = vpop.f32.mrf.mxu0
        %v1747 = vadd.f32 0.0, %v1746
        %1748 = vmatmul.f32.gmra.mxu0 %v1429
        %v1749 = vpop.f32.mrf.mxu0
        %v1750 = vadd.f32 0.0, %v1749
        %1751 = vmatmul.f32.gmra.mxu0 %v1432
        %v1752 = vpop.f32.mrf.mxu0
        %v1753 = vadd.f32 0.0, %v1752
        %1754 = vmatmul.f32.gmra.mxu0 %v1435
        %v1755 = vpop.f32.mrf.mxu0
        %v1756 = vadd.f32 0.0, %v1755
        %1757 = vmatmul.f32.gmra.mxu0 %v1438
        %v1758 = vpop.f32.mrf.mxu0
        %v1759 = vadd.f32 0.0, %v1758
        %1760 = vmatmul.f32.gmra.mxu0 %v1441
        %v1761 = vpop.f32.mrf.mxu0
        %v1762 = vadd.f32 0.0, %v1761
        %1763 = vmatmul.f32.gmra.mxu0 %v1444
        %v1764 = vpop.f32.mrf.mxu0
        %v1765 = vadd.f32 0.0, %v1764
        %1766 = vmatmul.f32.gmra.mxu0 %v1447
        %v1767 = vpop.f32.mrf.mxu0
        %v1768 = vadd.f32 0.0, %v1767
        %1769 = vdwg.mxu0
        %1770 = vmatpush.msra.mxu0 0.0
        %1771 = vmatpush.msra.mxu0 0.0
        %1772 = vmatpush.msra.mxu0 0.0
        %1773 = vmatpush.msra.mxu0 0.0
        %1774 = vmatpush.msra.mxu0 0.0
        %1775 = vmatpush.msra.mxu0 0.0
        %1776 = vmatpush.msra.mxu0 0.0
        %1777 = vmatpush.msra.mxu0 0.0
        %1778 = vmatpush.msra.mxu0 0.0
        %1779 = vmatpush.msra.mxu0 0.0
        %1780 = vmatpush.msra.mxu0 0.0
        %1781 = vmatpush.msra.mxu0 0.0
        %1782 = vmatpush.msra.mxu0 0.0
        %1783 = vmatpush.msra.mxu0 0.0
        %1784 = vmatpush.msra.mxu0 %v1105
        %1785 = vmatpush.msra.mxu0 %v1102
        %1786 = vmatmul.f32.gmra.mxu0 %v1360
        %v1787 = vpop.f32.mrf.mxu0
        %v1788 = vadd.f32 0.0, %v1787
        %1789 = vmatmul.f32.gmra.mxu0 %v1363
        %v1790 = vpop.f32.mrf.mxu0
        %v1791 = vadd.f32 0.0, %v1790
        %1792 = vmatmul.f32.gmra.mxu0 %v1366
        %v1793 = vpop.f32.mrf.mxu0
        %v1794 = vadd.f32 0.0, %v1793
        %1795 = vmatmul.f32.gmra.mxu0 %v1369
        %v1796 = vpop.f32.mrf.mxu0
        %v1797 = vadd.f32 0.0, %v1796
        %1798 = vmatmul.f32.gmra.mxu0 %v1372
        %v1799 = vpop.f32.mrf.mxu0
        %v1800 = vadd.f32 0.0, %v1799
        %1801 = vmatmul.f32.gmra.mxu0 %v1375
        %v1802 = vpop.f32.mrf.mxu0
        %v1803 = vadd.f32 0.0, %v1802
        %1804 = vmatmul.f32.gmra.mxu0 %v1378
        %v1805 = vpop.f32.mrf.mxu0
        %v1806 = vadd.f32 0.0, %v1805
        %1807 = vmatmul.f32.gmra.mxu0 %v1381
        %v1808 = vpop.f32.mrf.mxu0
        %v1809 = vadd.f32 0.0, %v1808
        %1810 = vmatmul.f32.gmra.mxu0 %v1384
        %v1811 = vpop.f32.mrf.mxu0
        %v1812 = vadd.f32 0.0, %v1811
        %1813 = vmatmul.f32.gmra.mxu0 %v1387
        %v1814 = vpop.f32.mrf.mxu0
        %v1815 = vadd.f32 0.0, %v1814
        %1816 = vmatmul.f32.gmra.mxu0 %v1390
        %v1817 = vpop.f32.mrf.mxu0
        %v1818 = vadd.f32 0.0, %v1817
        %1819 = vmatmul.f32.gmra.mxu0 %v1393
        %v1820 = vpop.f32.mrf.mxu0
        %v1821 = vadd.f32 0.0, %v1820
        %1822 = vmatmul.f32.gmra.mxu0 %v1396
        %v1823 = vpop.f32.mrf.mxu0
        %v1824 = vadd.f32 0.0, %v1823
        %1825 = vmatmul.f32.gmra.mxu0 %v1399
        %v1826 = vpop.f32.mrf.mxu0
        %v1827 = vadd.f32 0.0, %v1826
        %1828 = vmatmul.f32.gmra.mxu0 %v1402
        %v1829 = vpop.f32.mrf.mxu0
        %v1830 = vadd.f32 0.0, %v1829
        %1831 = vmatmul.f32.gmra.mxu0 %v1405
        %v1832 = vpop.f32.mrf.mxu0
        %v1833 = vadd.f32 0.0, %v1832
        %1834 = vmatmul.f32.gmra.mxu0 %v1408
        %v1835 = vpop.f32.mrf.mxu0
        %v1836 = vadd.f32 0.0, %v1835
        %1837 = vmatmul.f32.gmra.mxu0 %v1411
        %v1838 = vpop.f32.mrf.mxu0
        %v1839 = vadd.f32 0.0, %v1838
        %1840 = vmatmul.f32.gmra.mxu0 %v1414
        %v1841 = vpop.f32.mrf.mxu0
        %v1842 = vadd.f32 0.0, %v1841
        %1843 = vmatmul.f32.gmra.mxu0 %v1417
        %v1844 = vpop.f32.mrf.mxu0
        %v1845 = vadd.f32 0.0, %v1844
        %1846 = vmatmul.f32.gmra.mxu0 %v1420
        %v1847 = vpop.f32.mrf.mxu0
        %v1848 = vadd.f32 0.0, %v1847
        %1849 = vmatmul.f32.gmra.mxu0 %v1423
        %v1850 = vpop.f32.mrf.mxu0
        %v1851 = vadd.f32 0.0, %v1850
        %1852 = vmatmul.f32.gmra.mxu0 %v1426
        %v1853 = vpop.f32.mrf.mxu0
        %v1854 = vadd.f32 0.0, %v1853
        %1855 = vmatmul.f32.gmra.mxu0 %v1429
        %v1856 = vpop.f32.mrf.mxu0
        %v1857 = vadd.f32 0.0, %v1856
        %1858 = vmatmul.f32.gmra.mxu0 %v1432
        %v1859 = vpop.f32.mrf.mxu0
        %v1860 = vadd.f32 0.0, %v1859
        %1861 = vmatmul.f32.gmra.mxu0 %v1435
        %v1862 = vpop.f32.mrf.mxu0
        %v1863 = vadd.f32 0.0, %v1862
        %1864 = vmatmul.f32.gmra.mxu0 %v1438
        %v1865 = vpop.f32.mrf.mxu0
        %v1866 = vadd.f32 0.0, %v1865
        %1867 = vmatmul.f32.gmra.mxu0 %v1441
        %v1868 = vpop.f32.mrf.mxu0
        %v1869 = vadd.f32 0.0, %v1868
        %1870 = vmatmul.f32.gmra.mxu0 %v1444
        %v1871 = vpop.f32.mrf.mxu0
        %v1872 = vadd.f32 0.0, %v1871
        %1873 = vmatmul.f32.gmra.mxu0 %v1447
        %v1874 = vpop.f32.mrf.mxu0
        %v1875 = vadd.f32 0.0, %v1874
        %1876 = vdwg.mxu0
        %1877 = vmatpush.msra.mxu0 0.0
        %1878 = vmatpush.msra.mxu0 0.0
        %1879 = vmatpush.msra.mxu0 0.0
        %1880 = vmatpush.msra.mxu0 0.0
        %1881 = vmatpush.msra.mxu0 0.0
        %1882 = vmatpush.msra.mxu0 0.0
        %1883 = vmatpush.msra.mxu0 0.0
        %1884 = vmatpush.msra.mxu0 0.0
        %1885 = vmatpush.msra.mxu0 0.0
        %1886 = vmatpush.msra.mxu0 0.0
        %1887 = vmatpush.msra.mxu0 0.0
        %1888 = vmatpush.msra.mxu0 0.0
        %1889 = vmatpush.msra.mxu0 0.0
        %1890 = vmatpush.msra.mxu0 0.0
        %1891 = vmatpush.msra.mxu0 %v1140
        %1892 = vmatpush.msra.mxu0 %v1137
        %1893 = vmatmul.f32.gmra.mxu0 %v1360
        %v1894 = vpop.f32.mrf.mxu0
        %v1895 = vadd.f32 0.0, %v1894
        %1896 = vmatmul.f32.gmra.mxu0 %v1363
        %v1897 = vpop.f32.mrf.mxu0
        %v1898 = vadd.f32 0.0, %v1897
        %1899 = vmatmul.f32.gmra.mxu0 %v1366
        %v1900 = vpop.f32.mrf.mxu0
        %v1901 = vadd.f32 0.0, %v1900
        %1902 = vmatmul.f32.gmra.mxu0 %v1369
        %v1903 = vpop.f32.mrf.mxu0
        %v1904 = vadd.f32 0.0, %v1903
        %1905 = vmatmul.f32.gmra.mxu0 %v1372
        %v1906 = vpop.f32.mrf.mxu0
        %v1907 = vadd.f32 0.0, %v1906
        %1908 = vmatmul.f32.gmra.mxu0 %v1375
        %v1909 = vpop.f32.mrf.mxu0
        %v1910 = vadd.f32 0.0, %v1909
        %1911 = vmatmul.f32.gmra.mxu0 %v1378
        %v1912 = vpop.f32.mrf.mxu0
        %v1913 = vadd.f32 0.0, %v1912
        %1914 = vmatmul.f32.gmra.mxu0 %v1381
        %v1915 = vpop.f32.mrf.mxu0
        %v1916 = vadd.f32 0.0, %v1915
        %1917 = vmatmul.f32.gmra.mxu0 %v1384
        %v1918 = vpop.f32.mrf.mxu0
        %v1919 = vadd.f32 0.0, %v1918
        %1920 = vmatmul.f32.gmra.mxu0 %v1387
        %v1921 = vpop.f32.mrf.mxu0
        %v1922 = vadd.f32 0.0, %v1921
        %1923 = vmatmul.f32.gmra.mxu0 %v1390
        %v1924 = vpop.f32.mrf.mxu0
        %v1925 = vadd.f32 0.0, %v1924
        %1926 = vmatmul.f32.gmra.mxu0 %v1393
        %v1927 = vpop.f32.mrf.mxu0
        %v1928 = vadd.f32 0.0, %v1927
        %1929 = vmatmul.f32.gmra.mxu0 %v1396
        %v1930 = vpop.f32.mrf.mxu0
        %v1931 = vadd.f32 0.0, %v1930
        %1932 = vmatmul.f32.gmra.mxu0 %v1399
        %v1933 = vpop.f32.mrf.mxu0
        %v1934 = vadd.f32 0.0, %v1933
        %1935 = vmatmul.f32.gmra.mxu0 %v1402
        %v1936 = vpop.f32.mrf.mxu0
        %v1937 = vadd.f32 0.0, %v1936
        %1938 = vmatmul.f32.gmra.mxu0 %v1405
        %v1939 = vpop.f32.mrf.mxu0
        %v1940 = vadd.f32 0.0, %v1939
        %1941 = vmatmul.f32.gmra.mxu0 %v1408
        %v1942 = vpop.f32.mrf.mxu0
        %v1943 = vadd.f32 0.0, %v1942
        %1944 = vmatmul.f32.gmra.mxu0 %v1411
        %v1945 = vpop.f32.mrf.mxu0
        %v1946 = vadd.f32 0.0, %v1945
        %1947 = vmatmul.f32.gmra.mxu0 %v1414
        %v1948 = vpop.f32.mrf.mxu0
        %v1949 = vadd.f32 0.0, %v1948
        %1950 = vmatmul.f32.gmra.mxu0 %v1417
        %v1951 = vpop.f32.mrf.mxu0
        %v1952 = vadd.f32 0.0, %v1951
        %1953 = vmatmul.f32.gmra.mxu0 %v1420
        %v1954 = vpop.f32.mrf.mxu0
        %v1955 = vadd.f32 0.0, %v1954
        %1956 = vmatmul.f32.gmra.mxu0 %v1423
        %v1957 = vpop.f32.mrf.mxu0
        %v1958 = vadd.f32 0.0, %v1957
        %1959 = vmatmul.f32.gmra.mxu0 %v1426
        %v1960 = vpop.f32.mrf.mxu0
        %v1961 = vadd.f32 0.0, %v1960
        %1962 = vmatmul.f32.gmra.mxu0 %v1429
        %v1963 = vpop.f32.mrf.mxu0
        %v1964 = vadd.f32 0.0, %v1963
        %1965 = vmatmul.f32.gmra.mxu0 %v1432
        %v1966 = vpop.f32.mrf.mxu0
        %v1967 = vadd.f32 0.0, %v1966
        %1968 = vmatmul.f32.gmra.mxu0 %v1435
        %v1969 = vpop.f32.mrf.mxu0
        %v1970 = vadd.f32 0.0, %v1969
        %1971 = vmatmul.f32.gmra.mxu0 %v1438
        %v1972 = vpop.f32.mrf.mxu0
        %v1973 = vadd.f32 0.0, %v1972
        %1974 = vmatmul.f32.gmra.mxu0 %v1441
        %v1975 = vpop.f32.mrf.mxu0
        %v1976 = vadd.f32 0.0, %v1975
        %1977 = vmatmul.f32.gmra.mxu0 %v1444
        %v1978 = vpop.f32.mrf.mxu0
        %v1979 = vadd.f32 0.0, %v1978
        %1980 = vmatmul.f32.gmra.mxu0 %v1447
        %v1981 = vpop.f32.mrf.mxu0
        %v1982 = vadd.f32 0.0, %v1981
        %1983 = vdwg.mxu0
        %1984 = vmatpush.msra.mxu0 0.0
        %1985 = vmatpush.msra.mxu0 0.0
        %1986 = vmatpush.msra.mxu0 0.0
        %1987 = vmatpush.msra.mxu0 0.0
        %1988 = vmatpush.msra.mxu0 0.0
        %1989 = vmatpush.msra.mxu0 0.0
        %1990 = vmatpush.msra.mxu0 0.0
        %1991 = vmatpush.msra.mxu0 0.0
        %1992 = vmatpush.msra.mxu0 0.0
        %1993 = vmatpush.msra.mxu0 0.0
        %1994 = vmatpush.msra.mxu0 0.0
        %1995 = vmatpush.msra.mxu0 0.0
        %1996 = vmatpush.msra.mxu0 0.0
        %1997 = vmatpush.msra.mxu0 0.0
        %1998 = vmatpush.msra.mxu0 %v1175
        %1999 = vmatpush.msra.mxu0 %v1172
        %2000 = vmatmul.f32.gmra.mxu0 %v1360
        %v2001 = vpop.f32.mrf.mxu0
        %v2002 = vadd.f32 0.0, %v2001
        %2003 = vmatmul.f32.gmra.mxu0 %v1363
        %v2004 = vpop.f32.mrf.mxu0
        %v2005 = vadd.f32 0.0, %v2004
        %2006 = vmatmul.f32.gmra.mxu0 %v1366
        %v2007 = vpop.f32.mrf.mxu0
        %v2008 = vadd.f32 0.0, %v2007
        %2009 = vmatmul.f32.gmra.mxu0 %v1369
        %v2010 = vpop.f32.mrf.mxu0
        %v2011 = vadd.f32 0.0, %v2010
        %2012 = vmatmul.f32.gmra.mxu0 %v1372
        %v2013 = vpop.f32.mrf.mxu0
        %v2014 = vadd.f32 0.0, %v2013
        %2015 = vmatmul.f32.gmra.mxu0 %v1375
        %v2016 = vpop.f32.mrf.mxu0
        %v2017 = vadd.f32 0.0, %v2016
        %2018 = vmatmul.f32.gmra.mxu0 %v1378
        %v2019 = vpop.f32.mrf.mxu0
        %v2020 = vadd.f32 0.0, %v2019
        %2021 = vmatmul.f32.gmra.mxu0 %v1381
        %v2022 = vpop.f32.mrf.mxu0
        %v2023 = vadd.f32 0.0, %v2022
        %2024 = vmatmul.f32.gmra.mxu0 %v1384
        %v2025 = vpop.f32.mrf.mxu0
        %v2026 = vadd.f32 0.0, %v2025
        %2027 = vmatmul.f32.gmra.mxu0 %v1387
        %v2028 = vpop.f32.mrf.mxu0
        %v2029 = vadd.f32 0.0, %v2028
        %2030 = vmatmul.f32.gmra.mxu0 %v1390
        %v2031 = vpop.f32.mrf.mxu0
        %v2032 = vadd.f32 0.0, %v2031
        %2033 = vmatmul.f32.gmra.mxu0 %v1393
        %v2034 = vpop.f32.mrf.mxu0
        %v2035 = vadd.f32 0.0, %v2034
        %2036 = vmatmul.f32.gmra.mxu0 %v1396
        %v2037 = vpop.f32.mrf.mxu0
        %v2038 = vadd.f32 0.0, %v2037
        %2039 = vmatmul.f32.gmra.mxu0 %v1399
        %v2040 = vpop.f32.mrf.mxu0
        %v2041 = vadd.f32 0.0, %v2040
        %2042 = vmatmul.f32.gmra.mxu0 %v1402
        %v2043 = vpop.f32.mrf.mxu0
        %v2044 = vadd.f32 0.0, %v2043
        %2045 = vmatmul.f32.gmra.mxu0 %v1405
        %v2046 = vpop.f32.mrf.mxu0
        %v2047 = vadd.f32 0.0, %v2046
        %2048 = vmatmul.f32.gmra.mxu0 %v1408
        %v2049 = vpop.f32.mrf.mxu0
        %v2050 = vadd.f32 0.0, %v2049
        %2051 = vmatmul.f32.gmra.mxu0 %v1411
        %v2052 = vpop.f32.mrf.mxu0
        %v2053 = vadd.f32 0.0, %v2052
        %2054 = vmatmul.f32.gmra.mxu0 %v1414
        %v2055 = vpop.f32.mrf.mxu0
        %v2056 = vadd.f32 0.0, %v2055
        %2057 = vmatmul.f32.gmra.mxu0 %v1417
        %v2058 = vpop.f32.mrf.mxu0
        %v2059 = vadd.f32 0.0, %v2058
        %2060 = vmatmul.f32.gmra.mxu0 %v1420
        %v2061 = vpop.f32.mrf.mxu0
        %v2062 = vadd.f32 0.0, %v2061
        %2063 = vmatmul.f32.gmra.mxu0 %v1423
        %v2064 = vpop.f32.mrf.mxu0
        %v2065 = vadd.f32 0.0, %v2064
        %2066 = vmatmul.f32.gmra.mxu0 %v1426
        %v2067 = vpop.f32.mrf.mxu0
        %v2068 = vadd.f32 0.0, %v2067
        %2069 = vmatmul.f32.gmra.mxu0 %v1429
        %v2070 = vpop.f32.mrf.mxu0
        %v2071 = vadd.f32 0.0, %v2070
        %2072 = vmatmul.f32.gmra.mxu0 %v1432
        %v2073 = vpop.f32.mrf.mxu0
        %v2074 = vadd.f32 0.0, %v2073
        %2075 = vmatmul.f32.gmra.mxu0 %v1435
        %v2076 = vpop.f32.mrf.mxu0
        %v2077 = vadd.f32 0.0, %v2076
        %2078 = vmatmul.f32.gmra.mxu0 %v1438
        %v2079 = vpop.f32.mrf.mxu0
        %v2080 = vadd.f32 0.0, %v2079
        %2081 = vmatmul.f32.gmra.mxu0 %v1441
        %v2082 = vpop.f32.mrf.mxu0
        %v2083 = vadd.f32 0.0, %v2082
        %2084 = vmatmul.f32.gmra.mxu0 %v1444
        %v2085 = vpop.f32.mrf.mxu0
        %v2086 = vadd.f32 0.0, %v2085
        %2087 = vmatmul.f32.gmra.mxu0 %v1447
        %v2088 = vpop.f32.mrf.mxu0
        %v2089 = vadd.f32 0.0, %v2088
        %2090 = vdwg.mxu0
        %2091 = vmatpush.msra.mxu0 0.0
        %2092 = vmatpush.msra.mxu0 0.0
        %2093 = vmatpush.msra.mxu0 0.0
        %2094 = vmatpush.msra.mxu0 0.0
        %2095 = vmatpush.msra.mxu0 0.0
        %2096 = vmatpush.msra.mxu0 0.0
        %2097 = vmatpush.msra.mxu0 0.0
        %2098 = vmatpush.msra.mxu0 0.0
        %2099 = vmatpush.msra.mxu0 0.0
        %2100 = vmatpush.msra.mxu0 0.0
        %2101 = vmatpush.msra.mxu0 0.0
        %2102 = vmatpush.msra.mxu0 0.0
        %2103 = vmatpush.msra.mxu0 0.0
        %2104 = vmatpush.msra.mxu0 0.0
        %2105 = vmatpush.msra.mxu0 %v1210
        %2106 = vmatpush.msra.mxu0 %v1207
        %2107 = vmatmul.f32.gmra.mxu0 %v1360
        %v2108 = vpop.f32.mrf.mxu0
        %v2109 = vadd.f32 0.0, %v2108
        %2110 = vmatmul.f32.gmra.mxu0 %v1363
        %v2111 = vpop.f32.mrf.mxu0
        %v2112 = vadd.f32 0.0, %v2111
        %2113 = vmatmul.f32.gmra.mxu0 %v1366
        %v2114 = vpop.f32.mrf.mxu0
        %v2115 = vadd.f32 0.0, %v2114
        %2116 = vmatmul.f32.gmra.mxu0 %v1369
        %v2117 = vpop.f32.mrf.mxu0
        %v2118 = vadd.f32 0.0, %v2117
        %2119 = vmatmul.f32.gmra.mxu0 %v1372
        %v2120 = vpop.f32.mrf.mxu0
        %v2121 = vadd.f32 0.0, %v2120
        %2122 = vmatmul.f32.gmra.mxu0 %v1375
        %v2123 = vpop.f32.mrf.mxu0
        %v2124 = vadd.f32 0.0, %v2123
        %2125 = vmatmul.f32.gmra.mxu0 %v1378
        %v2126 = vpop.f32.mrf.mxu0
        %v2127 = vadd.f32 0.0, %v2126
        %2128 = vmatmul.f32.gmra.mxu0 %v1381
        %v2129 = vpop.f32.mrf.mxu0
        %v2130 = vadd.f32 0.0, %v2129
        %2131 = vmatmul.f32.gmra.mxu0 %v1384
        %v2132 = vpop.f32.mrf.mxu0
        %v2133 = vadd.f32 0.0, %v2132
        %2134 = vmatmul.f32.gmra.mxu0 %v1387
        %v2135 = vpop.f32.mrf.mxu0
        %v2136 = vadd.f32 0.0, %v2135
        %2137 = vmatmul.f32.gmra.mxu0 %v1390
        %v2138 = vpop.f32.mrf.mxu0
        %v2139 = vadd.f32 0.0, %v2138
        %2140 = vmatmul.f32.gmra.mxu0 %v1393
        %v2141 = vpop.f32.mrf.mxu0
        %v2142 = vadd.f32 0.0, %v2141
        %2143 = vmatmul.f32.gmra.mxu0 %v1396
        %v2144 = vpop.f32.mrf.mxu0
        %v2145 = vadd.f32 0.0, %v2144
        %2146 = vmatmul.f32.gmra.mxu0 %v1399
        %v2147 = vpop.f32.mrf.mxu0
        %v2148 = vadd.f32 0.0, %v2147
        %2149 = vmatmul.f32.gmra.mxu0 %v1402
        %v2150 = vpop.f32.mrf.mxu0
        %v2151 = vadd.f32 0.0, %v2150
        %2152 = vmatmul.f32.gmra.mxu0 %v1405
        %v2153 = vpop.f32.mrf.mxu0
        %v2154 = vadd.f32 0.0, %v2153
        %2155 = vmatmul.f32.gmra.mxu0 %v1408
        %v2156 = vpop.f32.mrf.mxu0
        %v2157 = vadd.f32 0.0, %v2156
        %2158 = vmatmul.f32.gmra.mxu0 %v1411
        %v2159 = vpop.f32.mrf.mxu0
        %v2160 = vadd.f32 0.0, %v2159
        %2161 = vmatmul.f32.gmra.mxu0 %v1414
        %v2162 = vpop.f32.mrf.mxu0
        %v2163 = vadd.f32 0.0, %v2162
        %2164 = vmatmul.f32.gmra.mxu0 %v1417
        %v2165 = vpop.f32.mrf.mxu0
        %v2166 = vadd.f32 0.0, %v2165
        %2167 = vmatmul.f32.gmra.mxu0 %v1420
        %v2168 = vpop.f32.mrf.mxu0
        %v2169 = vadd.f32 0.0, %v2168
        %2170 = vmatmul.f32.gmra.mxu0 %v1423
        %v2171 = vpop.f32.mrf.mxu0
        %v2172 = vadd.f32 0.0, %v2171
        %2173 = vmatmul.f32.gmra.mxu0 %v1426
        %v2174 = vpop.f32.mrf.mxu0
        %v2175 = vadd.f32 0.0, %v2174
        %2176 = vmatmul.f32.gmra.mxu0 %v1429
        %v2177 = vpop.f32.mrf.mxu0
        %v2178 = vadd.f32 0.0, %v2177
        %2179 = vmatmul.f32.gmra.mxu0 %v1432
        %v2180 = vpop.f32.mrf.mxu0
        %v2181 = vadd.f32 0.0, %v2180
        %2182 = vmatmul.f32.gmra.mxu0 %v1435
        %v2183 = vpop.f32.mrf.mxu0
        %v2184 = vadd.f32 0.0, %v2183
        %2185 = vmatmul.f32.gmra.mxu0 %v1438
        %v2186 = vpop.f32.mrf.mxu0
        %v2187 = vadd.f32 0.0, %v2186
        %2188 = vmatmul.f32.gmra.mxu0 %v1441
        %v2189 = vpop.f32.mrf.mxu0
        %v2190 = vadd.f32 0.0, %v2189
        %2191 = vmatmul.f32.gmra.mxu0 %v1444
        %v2192 = vpop.f32.mrf.mxu0
        %v2193 = vadd.f32 0.0, %v2192
        %2194 = vmatmul.f32.gmra.mxu0 %v1447
        %v2195 = vpop.f32.mrf.mxu0
        %v2196 = vadd.f32 0.0, %v2195
        %2197 = vdwg.mxu0
        %2198 = vmatpush.msra.mxu0 0.0
        %2199 = vmatpush.msra.mxu0 0.0
        %2200 = vmatpush.msra.mxu0 0.0
        %2201 = vmatpush.msra.mxu0 0.0
        %2202 = vmatpush.msra.mxu0 0.0
        %2203 = vmatpush.msra.mxu0 0.0
        %2204 = vmatpush.msra.mxu0 0.0
        %2205 = vmatpush.msra.mxu0 0.0
        %2206 = vmatpush.msra.mxu0 0.0
        %2207 = vmatpush.msra.mxu0 0.0
        %2208 = vmatpush.msra.mxu0 0.0
        %2209 = vmatpush.msra.mxu0 0.0
        %2210 = vmatpush.msra.mxu0 0.0
        %2211 = vmatpush.msra.mxu0 0.0
        %2212 = vmatpush.msra.mxu0 %v1245
        %2213 = vmatpush.msra.mxu0 %v1242
        %2214 = vmatmul.f32.gmra.mxu0 %v1360
        %v2215 = vpop.f32.mrf.mxu0
        %v2216 = vadd.f32 0.0, %v2215
        %2217 = vmatmul.f32.gmra.mxu0 %v1363
        %v2218 = vpop.f32.mrf.mxu0
        %v2219 = vadd.f32 0.0, %v2218
        %2220 = vmatmul.f32.gmra.mxu0 %v1366
        %v2221 = vpop.f32.mrf.mxu0
        %v2222 = vadd.f32 0.0, %v2221
        %2223 = vmatmul.f32.gmra.mxu0 %v1369
        %v2224 = vpop.f32.mrf.mxu0
        %v2225 = vadd.f32 0.0, %v2224
        %2226 = vmatmul.f32.gmra.mxu0 %v1372
        %v2227 = vpop.f32.mrf.mxu0
        %v2228 = vadd.f32 0.0, %v2227
        %2229 = vmatmul.f32.gmra.mxu0 %v1375
        %v2230 = vpop.f32.mrf.mxu0
        %v2231 = vadd.f32 0.0, %v2230
        %2232 = vmatmul.f32.gmra.mxu0 %v1378
        %v2233 = vpop.f32.mrf.mxu0
        %v2234 = vadd.f32 0.0, %v2233
        %2235 = vmatmul.f32.gmra.mxu0 %v1381
        %v2236 = vpop.f32.mrf.mxu0
        %v2237 = vadd.f32 0.0, %v2236
        %2238 = vmatmul.f32.gmra.mxu0 %v1384
        %v2239 = vpop.f32.mrf.mxu0
        %v2240 = vadd.f32 0.0, %v2239
        %2241 = vmatmul.f32.gmra.mxu0 %v1387
        %v2242 = vpop.f32.mrf.mxu0
        %v2243 = vadd.f32 0.0, %v2242
        %2244 = vmatmul.f32.gmra.mxu0 %v1390
        %v2245 = vpop.f32.mrf.mxu0
        %v2246 = vadd.f32 0.0, %v2245
        %2247 = vmatmul.f32.gmra.mxu0 %v1393
        %v2248 = vpop.f32.mrf.mxu0
        %v2249 = vadd.f32 0.0, %v2248
        %2250 = vmatmul.f32.gmra.mxu0 %v1396
        %v2251 = vpop.f32.mrf.mxu0
        %v2252 = vadd.f32 0.0, %v2251
        %2253 = vmatmul.f32.gmra.mxu0 %v1399
        %v2254 = vpop.f32.mrf.mxu0
        %v2255 = vadd.f32 0.0, %v2254
        %2256 = vmatmul.f32.gmra.mxu0 %v1402
        %v2257 = vpop.f32.mrf.mxu0
        %v2258 = vadd.f32 0.0, %v2257
        %2259 = vmatmul.f32.gmra.mxu0 %v1405
        %v2260 = vpop.f32.mrf.mxu0
        %v2261 = vadd.f32 0.0, %v2260
        %2262 = vmatmul.f32.gmra.mxu0 %v1408
        %v2263 = vpop.f32.mrf.mxu0
        %v2264 = vadd.f32 0.0, %v2263
        %2265 = vmatmul.f32.gmra.mxu0 %v1411
        %v2266 = vpop.f32.mrf.mxu0
        %v2267 = vadd.f32 0.0, %v2266
        %2268 = vmatmul.f32.gmra.mxu0 %v1414
        %v2269 = vpop.f32.mrf.mxu0
        %v2270 = vadd.f32 0.0, %v2269
        %2271 = vmatmul.f32.gmra.mxu0 %v1417
        %v2272 = vpop.f32.mrf.mxu0
        %v2273 = vadd.f32 0.0, %v2272
        %2274 = vmatmul.f32.gmra.mxu0 %v1420
        %v2275 = vpop.f32.mrf.mxu0
        %v2276 = vadd.f32 0.0, %v2275
        %2277 = vmatmul.f32.gmra.mxu0 %v1423
        %v2278 = vpop.f32.mrf.mxu0
        %v2279 = vadd.f32 0.0, %v2278
        %2280 = vmatmul.f32.gmra.mxu0 %v1426
        %v2281 = vpop.f32.mrf.mxu0
        %v2282 = vadd.f32 0.0, %v2281
        %2283 = vmatmul.f32.gmra.mxu0 %v1429
        %v2284 = vpop.f32.mrf.mxu0
        %v2285 = vadd.f32 0.0, %v2284
        %2286 = vmatmul.f32.gmra.mxu0 %v1432
        %v2287 = vpop.f32.mrf.mxu0
        %v2288 = vadd.f32 0.0, %v2287
        %2289 = vmatmul.f32.gmra.mxu0 %v1435
        %v2290 = vpop.f32.mrf.mxu0
        %v2291 = vadd.f32 0.0, %v2290
        %2292 = vmatmul.f32.gmra.mxu0 %v1438
        %v2293 = vpop.f32.mrf.mxu0
        %v2294 = vadd.f32 0.0, %v2293
        %2295 = vmatmul.f32.gmra.mxu0 %v1441
        %v2296 = vpop.f32.mrf.mxu0
        %v2297 = vadd.f32 0.0, %v2296
        %2298 = vmatmul.f32.gmra.mxu0 %v1444
        %v2299 = vpop.f32.mrf.mxu0
        %v2300 = vadd.f32 0.0, %v2299
        %2301 = vmatmul.f32.gmra.mxu0 %v1447
        %v2302 = vpop.f32.mrf.mxu0
        %v2303 = vadd.f32 0.0, %v2302
        %2304 = vdwg.mxu0
        %2305 = vmatpush.msra.mxu0 0.0
        %2306 = vmatpush.msra.mxu0 0.0
        %2307 = vmatpush.msra.mxu0 0.0
        %2308 = vmatpush.msra.mxu0 0.0
        %2309 = vmatpush.msra.mxu0 0.0
        %2310 = vmatpush.msra.mxu0 0.0
        %2311 = vmatpush.msra.mxu0 0.0
        %2312 = vmatpush.msra.mxu0 0.0
        %2313 = vmatpush.msra.mxu0 0.0
        %2314 = vmatpush.msra.mxu0 0.0
        %2315 = vmatpush.msra.mxu0 0.0
        %2316 = vmatpush.msra.mxu0 0.0
        %2317 = vmatpush.msra.mxu0 0.0
        %2318 = vmatpush.msra.mxu0 0.0
        %2319 = vmatpush.msra.mxu0 %v1280
        %2320 = vmatpush.msra.mxu0 %v1277
        %2321 = vmatmul.f32.gmra.mxu0 %v1360
        %v2322 = vpop.f32.mrf.mxu0
        %v2323 = vadd.f32 0.0, %v2322
        %2324 = vmatmul.f32.gmra.mxu0 %v1363
        %v2325 = vpop.f32.mrf.mxu0
        %v2326 = vadd.f32 0.0, %v2325
        %2327 = vmatmul.f32.gmra.mxu0 %v1366
        %v2328 = vpop.f32.mrf.mxu0
        %v2329 = vadd.f32 0.0, %v2328
        %2330 = vmatmul.f32.gmra.mxu0 %v1369
        %v2331 = vpop.f32.mrf.mxu0
        %v2332 = vadd.f32 0.0, %v2331
        %2333 = vmatmul.f32.gmra.mxu0 %v1372
        %v2334 = vpop.f32.mrf.mxu0
        %v2335 = vadd.f32 0.0, %v2334
        %2336 = vmatmul.f32.gmra.mxu0 %v1375
        %v2337 = vpop.f32.mrf.mxu0
        %v2338 = vadd.f32 0.0, %v2337
        %2339 = vmatmul.f32.gmra.mxu0 %v1378
        %v2340 = vpop.f32.mrf.mxu0
        %v2341 = vadd.f32 0.0, %v2340
        %2342 = vmatmul.f32.gmra.mxu0 %v1381
        %v2343 = vpop.f32.mrf.mxu0
        %v2344 = vadd.f32 0.0, %v2343
        %2345 = vmatmul.f32.gmra.mxu0 %v1384
        %v2346 = vpop.f32.mrf.mxu0
        %v2347 = vadd.f32 0.0, %v2346
        %2348 = vmatmul.f32.gmra.mxu0 %v1387
        %v2349 = vpop.f32.mrf.mxu0
        %v2350 = vadd.f32 0.0, %v2349
        %2351 = vmatmul.f32.gmra.mxu0 %v1390
        %v2352 = vpop.f32.mrf.mxu0
        %v2353 = vadd.f32 0.0, %v2352
        %2354 = vmatmul.f32.gmra.mxu0 %v1393
        %v2355 = vpop.f32.mrf.mxu0
        %v2356 = vadd.f32 0.0, %v2355
        %2357 = vmatmul.f32.gmra.mxu0 %v1396
        %v2358 = vpop.f32.mrf.mxu0
        %v2359 = vadd.f32 0.0, %v2358
        %2360 = vmatmul.f32.gmra.mxu0 %v1399
        %v2361 = vpop.f32.mrf.mxu0
        %v2362 = vadd.f32 0.0, %v2361
        %2363 = vmatmul.f32.gmra.mxu0 %v1402
        %v2364 = vpop.f32.mrf.mxu0
        %v2365 = vadd.f32 0.0, %v2364
        %2366 = vmatmul.f32.gmra.mxu0 %v1405
        %v2367 = vpop.f32.mrf.mxu0
        %v2368 = vadd.f32 0.0, %v2367
        %2369 = vmatmul.f32.gmra.mxu0 %v1408
        %v2370 = vpop.f32.mrf.mxu0
        %v2371 = vadd.f32 0.0, %v2370
        %2372 = vmatmul.f32.gmra.mxu0 %v1411
        %v2373 = vpop.f32.mrf.mxu0
        %v2374 = vadd.f32 0.0, %v2373
        %2375 = vmatmul.f32.gmra.mxu0 %v1414
        %v2376 = vpop.f32.mrf.mxu0
        %v2377 = vadd.f32 0.0, %v2376
        %2378 = vmatmul.f32.gmra.mxu0 %v1417
        %v2379 = vpop.f32.mrf.mxu0
        %v2380 = vadd.f32 0.0, %v2379
        %2381 = vmatmul.f32.gmra.mxu0 %v1420
        %v2382 = vpop.f32.mrf.mxu0
        %v2383 = vadd.f32 0.0, %v2382
        %2384 = vmatmul.f32.gmra.mxu0 %v1423
        %v2385 = vpop.f32.mrf.mxu0
        %v2386 = vadd.f32 0.0, %v2385
        %2387 = vmatmul.f32.gmra.mxu0 %v1426
        %v2388 = vpop.f32.mrf.mxu0
        %v2389 = vadd.f32 0.0, %v2388
        %2390 = vmatmul.f32.gmra.mxu0 %v1429
        %v2391 = vpop.f32.mrf.mxu0
        %v2392 = vadd.f32 0.0, %v2391
        %2393 = vmatmul.f32.gmra.mxu0 %v1432
        %v2394 = vpop.f32.mrf.mxu0
        %v2395 = vadd.f32 0.0, %v2394
        %2396 = vmatmul.f32.gmra.mxu0 %v1435
        %v2397 = vpop.f32.mrf.mxu0
        %v2398 = vadd.f32 0.0, %v2397
        %2399 = vmatmul.f32.gmra.mxu0 %v1438
        %v2400 = vpop.f32.mrf.mxu0
        %v2401 = vadd.f32 0.0, %v2400
        %2402 = vmatmul.f32.gmra.mxu0 %v1441
        %v2403 = vpop.f32.mrf.mxu0
        %v2404 = vadd.f32 0.0, %v2403
        %2405 = vmatmul.f32.gmra.mxu0 %v1444
        %v2406 = vpop.f32.mrf.mxu0
        %v2407 = vadd.f32 0.0, %v2406
        %2408 = vmatmul.f32.gmra.mxu0 %v1447
        %v2409 = vpop.f32.mrf.mxu0
        %v2410 = vadd.f32 0.0, %v2409
        %2411 = vdwg.mxu0
        %2412 = vmatpush.msra.mxu0 0.0
        %2413 = vmatpush.msra.mxu0 0.0
        %2414 = vmatpush.msra.mxu0 0.0
        %2415 = vmatpush.msra.mxu0 0.0
        %2416 = vmatpush.msra.mxu0 0.0
        %2417 = vmatpush.msra.mxu0 0.0
        %2418 = vmatpush.msra.mxu0 0.0
        %2419 = vmatpush.msra.mxu0 0.0
        %2420 = vmatpush.msra.mxu0 0.0
        %2421 = vmatpush.msra.mxu0 0.0
        %2422 = vmatpush.msra.mxu0 0.0
        %2423 = vmatpush.msra.mxu0 0.0
        %2424 = vmatpush.msra.mxu0 0.0
        %2425 = vmatpush.msra.mxu0 0.0
        %2426 = vmatpush.msra.mxu0 %v1315
        %2427 = vmatpush.msra.mxu0 %v1312
        %2428 = vmatmul.f32.gmra.mxu0 %v1360
        %v2429 = vpop.f32.mrf.mxu0
        %v2430 = vadd.f32 0.0, %v2429
        %2431 = vmatmul.f32.gmra.mxu0 %v1363
        %v2432 = vpop.f32.mrf.mxu0
        %v2433 = vadd.f32 0.0, %v2432
        %2434 = vmatmul.f32.gmra.mxu0 %v1366
        %v2435 = vpop.f32.mrf.mxu0
        %v2436 = vadd.f32 0.0, %v2435
        %2437 = vmatmul.f32.gmra.mxu0 %v1369
        %v2438 = vpop.f32.mrf.mxu0
        %v2439 = vadd.f32 0.0, %v2438
        %2440 = vmatmul.f32.gmra.mxu0 %v1372
        %v2441 = vpop.f32.mrf.mxu0
        %v2442 = vadd.f32 0.0, %v2441
        %2443 = vmatmul.f32.gmra.mxu0 %v1375
        %v2444 = vpop.f32.mrf.mxu0
        %v2445 = vadd.f32 0.0, %v2444
        %2446 = vmatmul.f32.gmra.mxu0 %v1378
        %v2447 = vpop.f32.mrf.mxu0
        %v2448 = vadd.f32 0.0, %v2447
        %2449 = vmatmul.f32.gmra.mxu0 %v1381
        %v2450 = vpop.f32.mrf.mxu0
        %v2451 = vadd.f32 0.0, %v2450
        %2452 = vmatmul.f32.gmra.mxu0 %v1384
        %v2453 = vpop.f32.mrf.mxu0
        %v2454 = vadd.f32 0.0, %v2453
        %2455 = vmatmul.f32.gmra.mxu0 %v1387
        %v2456 = vpop.f32.mrf.mxu0
        %v2457 = vadd.f32 0.0, %v2456
        %2458 = vmatmul.f32.gmra.mxu0 %v1390
        %v2459 = vpop.f32.mrf.mxu0
        %v2460 = vadd.f32 0.0, %v2459
        %2461 = vmatmul.f32.gmra.mxu0 %v1393
        %v2462 = vpop.f32.mrf.mxu0
        %v2463 = vadd.f32 0.0, %v2462
        %2464 = vmatmul.f32.gmra.mxu0 %v1396
        %v2465 = vpop.f32.mrf.mxu0
        %v2466 = vadd.f32 0.0, %v2465
        %2467 = vmatmul.f32.gmra.mxu0 %v1399
        %v2468 = vpop.f32.mrf.mxu0
        %v2469 = vadd.f32 0.0, %v2468
        %2470 = vmatmul.f32.gmra.mxu0 %v1402
        %v2471 = vpop.f32.mrf.mxu0
        %v2472 = vadd.f32 0.0, %v2471
        %2473 = vmatmul.f32.gmra.mxu0 %v1405
        %v2474 = vpop.f32.mrf.mxu0
        %v2475 = vadd.f32 0.0, %v2474
        %2476 = vmatmul.f32.gmra.mxu0 %v1408
        %v2477 = vpop.f32.mrf.mxu0
        %v2478 = vadd.f32 0.0, %v2477
        %2479 = vmatmul.f32.gmra.mxu0 %v1411
        %v2480 = vpop.f32.mrf.mxu0
        %v2481 = vadd.f32 0.0, %v2480
        %2482 = vmatmul.f32.gmra.mxu0 %v1414
        %v2483 = vpop.f32.mrf.mxu0
        %v2484 = vadd.f32 0.0, %v2483
        %2485 = vmatmul.f32.gmra.mxu0 %v1417
        %v2486 = vpop.f32.mrf.mxu0
        %v2487 = vadd.f32 0.0, %v2486
        %2488 = vmatmul.f32.gmra.mxu0 %v1420
        %v2489 = vpop.f32.mrf.mxu0
        %v2490 = vadd.f32 0.0, %v2489
        %2491 = vmatmul.f32.gmra.mxu0 %v1423
        %v2492 = vpop.f32.mrf.mxu0
        %v2493 = vadd.f32 0.0, %v2492
        %2494 = vmatmul.f32.gmra.mxu0 %v1426
        %v2495 = vpop.f32.mrf.mxu0
        %v2496 = vadd.f32 0.0, %v2495
        %2497 = vmatmul.f32.gmra.mxu0 %v1429
        %v2498 = vpop.f32.mrf.mxu0
        %v2499 = vadd.f32 0.0, %v2498
        %2500 = vmatmul.f32.gmra.mxu0 %v1432
        %v2501 = vpop.f32.mrf.mxu0
        %v2502 = vadd.f32 0.0, %v2501
        %2503 = vmatmul.f32.gmra.mxu0 %v1435
        %v2504 = vpop.f32.mrf.mxu0
        %v2505 = vadd.f32 0.0, %v2504
        %2506 = vmatmul.f32.gmra.mxu0 %v1438
        %v2507 = vpop.f32.mrf.mxu0
        %v2508 = vadd.f32 0.0, %v2507
        %2509 = vmatmul.f32.gmra.mxu0 %v1441
        %v2510 = vpop.f32.mrf.mxu0
        %v2511 = vadd.f32 0.0, %v2510
        %2512 = vmatmul.f32.gmra.mxu0 %v1444
        %v2513 = vpop.f32.mrf.mxu0
        %v2514 = vadd.f32 0.0, %v2513
        %2515 = vmatmul.f32.gmra.mxu0 %v1447
        %v2516 = vpop.f32.mrf.mxu0
        %v2517 = vadd.f32 0.0, %v2516
        %2518 = vdwg.mxu0
        %2519 = vst [vmem:[%s251] sm:$0xff] %v1467
        %2520 = vst [vmem:[%s251 + $0x8] sm:$0xff] %v1574
        %2521 = vst [vmem:[%s251 + $0x10] sm:$0xff] %v1681
        %2522 = vst [vmem:[%s251 + $0x18] sm:$0xff] %v1788
        %2523 = vst [vmem:[%s251 + $0x20] sm:$0xff] %v1895
        %2524 = vst [vmem:[%s251 + $0x28] sm:$0xff] %v2002
        %2525 = vst [vmem:[%s251 + $0x30] sm:$0xff] %v2109
        %2526 = vst [vmem:[%s251 + $0x38] sm:$0xff] %v2216
        %2527 = vst [vmem:[%s251 + $0x40] sm:$0xff] %v2323
        %2528 = vst [vmem:[%s251 + $0x48] sm:$0xff] %v2430
        %2529 = vst [vmem:[%s251 + $0x50] sm:$0xff] %v1470
        %2530 = vst [vmem:[%s251 + $0x58] sm:$0xff] %v1577
        %2531 = vst [vmem:[%s251 + $0x60] sm:$0xff] %v1684
        %2532 = vst [vmem:[%s251 + $0x68] sm:$0xff] %v1791
        %2533 = vst [vmem:[%s251 + $0x70] sm:$0xff] %v1898
        %2534 = vst [vmem:[%s251 + $0x78] sm:$0xff] %v2005
        %2535 = vst [vmem:[%s251 + $0x80] sm:$0xff] %v2112
        %2536 = vst [vmem:[%s251 + $0x88] sm:$0xff] %v2219
        %2537 = vst [vmem:[%s251 + $0x90] sm:$0xff] %v2326
        %2538 = vst [vmem:[%s251 + $0x98] sm:$0xff] %v2433
        %2539 = vst [vmem:[%s251 + $0xa0] sm:$0xff] %v1473
        %2540 = vst [vmem:[%s251 + $0xa8] sm:$0xff] %v1580
        %2541 = vst [vmem:[%s251 + $0xb0] sm:$0xff] %v1687
        %2542 = vst [vmem:[%s251 + $0xb8] sm:$0xff] %v1794
        %2543 = vst [vmem:[%s251 + $0xc0] sm:$0xff] %v1901
        %2544 = vst [vmem:[%s251 + $0xc8] sm:$0xff] %v2008
        %2545 = vst [vmem:[%s251 + $0xd0] sm:$0xff] %v2115
        %2546 = vst [vmem:[%s251 + $0xd8] sm:$0xff] %v2222
        %2547 = vst [vmem:[%s251 + $0xe0] sm:$0xff] %v2329
        %2548 = vst [vmem:[%s251 + $0xe8] sm:$0xff] %v2436
        %2549 = vst [vmem:[%s251 + $0xf0] sm:$0xff] %v1476
        %2550 = vst [vmem:[%s251 + $0xf8] sm:$0xff] %v1583
        %2551 = vst [vmem:[%s251 + $0x100] sm:$0xff] %v1690
        %2552 = vst [vmem:[%s251 + $0x108] sm:$0xff] %v1797
        %2553 = vst [vmem:[%s251 + $0x110] sm:$0xff] %v1904
        %2554 = vst [vmem:[%s251 + $0x118] sm:$0xff] %v2011
        %2555 = vst [vmem:[%s251 + $0x120] sm:$0xff] %v2118
        %2556 = vst [vmem:[%s251 + $0x128] sm:$0xff] %v2225
        %2557 = vst [vmem:[%s251 + $0x130] sm:$0xff] %v2332
        %2558 = vst [vmem:[%s251 + $0x138] sm:$0xff] %v2439
        %2559 = vst [vmem:[%s251 + $0x140] sm:$0xff] %v1479
        %2560 = vst [vmem:[%s251 + $0x148] sm:$0xff] %v1586
        %2561 = vst [vmem:[%s251 + $0x150] sm:$0xff] %v1693
        %2562 = vst [vmem:[%s251 + $0x158] sm:$0xff] %v1800
        %2563 = vst [vmem:[%s251 + $0x160] sm:$0xff] %v1907
        %2564 = vst [vmem:[%s251 + $0x168] sm:$0xff] %v2014
        %2565 = vst [vmem:[%s251 + $0x170] sm:$0xff] %v2121
        %2566 = vst [vmem:[%s251 + $0x178] sm:$0xff] %v2228
        %2567 = vst [vmem:[%s251 + $0x180] sm:$0xff] %v2335
        %2568 = vst [vmem:[%s251 + $0x188] sm:$0xff] %v2442
        %2569 = vst [vmem:[%s251 + $0x190] sm:$0xff] %v1482
        %2570 = vst [vmem:[%s251 + $0x198] sm:$0xff] %v1589
        %2571 = vst [vmem:[%s251 + $0x1a0] sm:$0xff] %v1696
        %2572 = vst [vmem:[%s251 + $0x1a8] sm:$0xff] %v1803
        %2573 = vst [vmem:[%s251 + $0x1b0] sm:$0xff] %v1910
        %2574 = vst [vmem:[%s251 + $0x1b8] sm:$0xff] %v2017
        %2575 = vst [vmem:[%s251 + $0x1c0] sm:$0xff] %v2124
        %2576 = vst [vmem:[%s251 + $0x1c8] sm:$0xff] %v2231
        %2577 = vst [vmem:[%s251 + $0x1d0] sm:$0xff] %v2338
        %2578 = vst [vmem:[%s251 + $0x1d8] sm:$0xff] %v2445
        %2579 = vst [vmem:[%s251 + $0x1e0] sm:$0xff] %v1485
        %2580 = vst [vmem:[%s251 + $0x1e8] sm:$0xff] %v1592
        %2581 = vst [vmem:[%s251 + $0x1f0] sm:$0xff] %v1699
        %2582 = vst [vmem:[%s251 + $0x1f8] sm:$0xff] %v1806
        %2583 = vst [vmem:[%s251 + $0x200] sm:$0xff] %v1913
        %2584 = vst [vmem:[%s251 + $0x208] sm:$0xff] %v2020
        %2585 = vst [vmem:[%s251 + $0x210] sm:$0xff] %v2127
        %2586 = vst [vmem:[%s251 + $0x218] sm:$0xff] %v2234
        %2587 = vst [vmem:[%s251 + $0x220] sm:$0xff] %v2341
        %2588 = vst [vmem:[%s251 + $0x228] sm:$0xff] %v2448
        %2589 = vst [vmem:[%s251 + $0x230] sm:$0xff] %v1488
        %2590 = vst [vmem:[%s251 + $0x238] sm:$0xff] %v1595
        %2591 = vst [vmem:[%s251 + $0x240] sm:$0xff] %v1702
        %2592 = vst [vmem:[%s251 + $0x248] sm:$0xff] %v1809
        %2593 = vst [vmem:[%s251 + $0x250] sm:$0xff] %v1916
        %2594 = vst [vmem:[%s251 + $0x258] sm:$0xff] %v2023
        %2595 = vst [vmem:[%s251 + $0x260] sm:$0xff] %v2130
        %2596 = vst [vmem:[%s251 + $0x268] sm:$0xff] %v2237
        %2597 = vst [vmem:[%s251 + $0x270] sm:$0xff] %v2344
        %2598 = vst [vmem:[%s251 + $0x278] sm:$0xff] %v2451
        %2599 = vst [vmem:[%s251 + $0x280] sm:$0xff] %v1491
        %2600 = vst [vmem:[%s251 + $0x288] sm:$0xff] %v1598
        %2601 = vst [vmem:[%s251 + $0x290] sm:$0xff] %v1705
        %2602 = vst [vmem:[%s251 + $0x298] sm:$0xff] %v1812
        %2603 = vst [vmem:[%s251 + $0x2a0] sm:$0xff] %v1919
        %2604 = vst [vmem:[%s251 + $0x2a8] sm:$0xff] %v2026
        %2605 = vst [vmem:[%s251 + $0x2b0] sm:$0xff] %v2133
        %2606 = vst [vmem:[%s251 + $0x2b8] sm:$0xff] %v2240
        %2607 = vst [vmem:[%s251 + $0x2c0] sm:$0xff] %v2347
        %2608 = vst [vmem:[%s251 + $0x2c8] sm:$0xff] %v2454
        %2609 = vst [vmem:[%s251 + $0x2d0] sm:$0xff] %v1494
        %2610 = vst [vmem:[%s251 + $0x2d8] sm:$0xff] %v1601
        %2611 = vst [vmem:[%s251 + $0x2e0] sm:$0xff] %v1708
        %2612 = vst [vmem:[%s251 + $0x2e8] sm:$0xff] %v1815
        %2613 = vst [vmem:[%s251 + $0x2f0] sm:$0xff] %v1922
        %2614 = vst [vmem:[%s251 + $0x2f8] sm:$0xff] %v2029
        %2615 = vst [vmem:[%s251 + $0x300] sm:$0xff] %v2136
        %2616 = vst [vmem:[%s251 + $0x308] sm:$0xff] %v2243
        %2617 = vst [vmem:[%s251 + $0x310] sm:$0xff] %v2350
        %2618 = vst [vmem:[%s251 + $0x318] sm:$0xff] %v2457
        %2619 = vst [vmem:[%s251 + $0x320] sm:$0xff] %v1497
        %2620 = vst [vmem:[%s251 + $0x328] sm:$0xff] %v1604
        %2621 = vst [vmem:[%s251 + $0x330] sm:$0xff] %v1711
        %2622 = vst [vmem:[%s251 + $0x338] sm:$0xff] %v1818
        %2623 = vst [vmem:[%s251 + $0x340] sm:$0xff] %v1925
        %2624 = vst [vmem:[%s251 + $0x348] sm:$0xff] %v2032
        %2625 = vst [vmem:[%s251 + $0x350] sm:$0xff] %v2139
        %2626 = vst [vmem:[%s251 + $0x358] sm:$0xff] %v2246
        %2627 = vst [vmem:[%s251 + $0x360] sm:$0xff] %v2353
        %2628 = vst [vmem:[%s251 + $0x368] sm:$0xff] %v2460
        %2629 = vst [vmem:[%s251 + $0x370] sm:$0xff] %v1500
        %2630 = vst [vmem:[%s251 + $0x378] sm:$0xff] %v1607
        %2631 = vst [vmem:[%s251 + $0x380] sm:$0xff] %v1714
        %2632 = vst [vmem:[%s251 + $0x388] sm:$0xff] %v1821
        %2633 = vst [vmem:[%s251 + $0x390] sm:$0xff] %v1928
        %2634 = vst [vmem:[%s251 + $0x398] sm:$0xff] %v2035
        %2635 = vst [vmem:[%s251 + $0x3a0] sm:$0xff] %v2142
        %2636 = vst [vmem:[%s251 + $0x3a8] sm:$0xff] %v2249
        %2637 = vst [vmem:[%s251 + $0x3b0] sm:$0xff] %v2356
        %2638 = vst [vmem:[%s251 + $0x3b8] sm:$0xff] %v2463
        %2639 = vst [vmem:[%s251 + $0x3c0] sm:$0xff] %v1503
        %2640 = vst [vmem:[%s251 + $0x3c8] sm:$0xff] %v1610
        %2641 = vst [vmem:[%s251 + $0x3d0] sm:$0xff] %v1717
        %2642 = vst [vmem:[%s251 + $0x3d8] sm:$0xff] %v1824
        %2643 = vst [vmem:[%s251 + $0x3e0] sm:$0xff] %v1931
        %2644 = vst [vmem:[%s251 + $0x3e8] sm:$0xff] %v2038
        %2645 = vst [vmem:[%s251 + $0x3f0] sm:$0xff] %v2145
        %2646 = vst [vmem:[%s251 + $0x3f8] sm:$0xff] %v2252
        %2647 = vst [vmem:[%s251 + $0x400] sm:$0xff] %v2359
        %2648 = vst [vmem:[%s251 + $0x408] sm:$0xff] %v2466
        %2649 = vst [vmem:[%s251 + $0x410] sm:$0xff] %v1506
        %2650 = vst [vmem:[%s251 + $0x418] sm:$0xff] %v1613
        %2651 = vst [vmem:[%s251 + $0x420] sm:$0xff] %v1720
        %2652 = vst [vmem:[%s251 + $0x428] sm:$0xff] %v1827
        %2653 = vst [vmem:[%s251 + $0x430] sm:$0xff] %v1934
        %2654 = vst [vmem:[%s251 + $0x438] sm:$0xff] %v2041
        %2655 = vst [vmem:[%s251 + $0x440] sm:$0xff] %v2148
        %2656 = vst [vmem:[%s251 + $0x448] sm:$0xff] %v2255
        %2657 = vst [vmem:[%s251 + $0x450] sm:$0xff] %v2362
        %2658 = vst [vmem:[%s251 + $0x458] sm:$0xff] %v2469
        %2659 = vst [vmem:[%s251 + $0x460] sm:$0xff] %v1509
        %2660 = vst [vmem:[%s251 + $0x468] sm:$0xff] %v1616
        %2661 = vst [vmem:[%s251 + $0x470] sm:$0xff] %v1723
        %2662 = vst [vmem:[%s251 + $0x478] sm:$0xff] %v1830
        %2663 = vst [vmem:[%s251 + $0x480] sm:$0xff] %v1937
        %2664 = vst [vmem:[%s251 + $0x488] sm:$0xff] %v2044
        %2665 = vst [vmem:[%s251 + $0x490] sm:$0xff] %v2151
        %2666 = vst [vmem:[%s251 + $0x498] sm:$0xff] %v2258
        %2667 = vst [vmem:[%s251 + $0x4a0] sm:$0xff] %v2365
        %2668 = vst [vmem:[%s251 + $0x4a8] sm:$0xff] %v2472
        %2669 = vst [vmem:[%s251 + $0x4b0] sm:$0xff] %v1512
        %2670 = vst [vmem:[%s251 + $0x4b8] sm:$0xff] %v1619
        %2671 = vst [vmem:[%s251 + $0x4c0] sm:$0xff] %v1726
        %2672 = vst [vmem:[%s251 + $0x4c8] sm:$0xff] %v1833
        %2673 = vst [vmem:[%s251 + $0x4d0] sm:$0xff] %v1940
        %2674 = vst [vmem:[%s251 + $0x4d8] sm:$0xff] %v2047
        %2675 = vst [vmem:[%s251 + $0x4e0] sm:$0xff] %v2154
        %2676 = vst [vmem:[%s251 + $0x4e8] sm:$0xff] %v2261
        %2677 = vst [vmem:[%s251 + $0x4f0] sm:$0xff] %v2368
        %2678 = vst [vmem:[%s251 + $0x4f8] sm:$0xff] %v2475
        %2679 = vst [vmem:[%s251 + $0x500] sm:$0xff] %v1515
        %2680 = vst [vmem:[%s251 + $0x508] sm:$0xff] %v1622
        %2681 = vst [vmem:[%s251 + $0x510] sm:$0xff] %v1729
        %2682 = vst [vmem:[%s251 + $0x518] sm:$0xff] %v1836
        %2683 = vst [vmem:[%s251 + $0x520] sm:$0xff] %v1943
        %2684 = vst [vmem:[%s251 + $0x528] sm:$0xff] %v2050
        %2685 = vst [vmem:[%s251 + $0x530] sm:$0xff] %v2157
        %2686 = vst [vmem:[%s251 + $0x538] sm:$0xff] %v2264
        %2687 = vst [vmem:[%s251 + $0x540] sm:$0xff] %v2371
        %2688 = vst [vmem:[%s251 + $0x548] sm:$0xff] %v2478
        %2689 = vst [vmem:[%s251 + $0x550] sm:$0xff] %v1518
        %2690 = vst [vmem:[%s251 + $0x558] sm:$0xff] %v1625
        %2691 = vst [vmem:[%s251 + $0x560] sm:$0xff] %v1732
        %2692 = vst [vmem:[%s251 + $0x568] sm:$0xff] %v1839
        %2693 = vst [vmem:[%s251 + $0x570] sm:$0xff] %v1946
        %2694 = vst [vmem:[%s251 + $0x578] sm:$0xff] %v2053
        %2695 = vst [vmem:[%s251 + $0x580] sm:$0xff] %v2160
        %2696 = vst [vmem:[%s251 + $0x588] sm:$0xff] %v2267
        %2697 = vst [vmem:[%s251 + $0x590] sm:$0xff] %v2374
        %2698 = vst [vmem:[%s251 + $0x598] sm:$0xff] %v2481
        %2699 = vst [vmem:[%s251 + $0x5a0] sm:$0xff] %v1521
        %2700 = vst [vmem:[%s251 + $0x5a8] sm:$0xff] %v1628
        %2701 = vst [vmem:[%s251 + $0x5b0] sm:$0xff] %v1735
        %2702 = vst [vmem:[%s251 + $0x5b8] sm:$0xff] %v1842
        %2703 = vst [vmem:[%s251 + $0x5c0] sm:$0xff] %v1949
        %2704 = vst [vmem:[%s251 + $0x5c8] sm:$0xff] %v2056
        %2705 = vst [vmem:[%s251 + $0x5d0] sm:$0xff] %v2163
        %2706 = vst [vmem:[%s251 + $0x5d8] sm:$0xff] %v2270
        %2707 = vst [vmem:[%s251 + $0x5e0] sm:$0xff] %v2377
        %2708 = vst [vmem:[%s251 + $0x5e8] sm:$0xff] %v2484
        %2709 = vst [vmem:[%s251 + $0x5f0] sm:$0xff] %v1524
        %2710 = vst [vmem:[%s251 + $0x5f8] sm:$0xff] %v1631
        %2711 = vst [vmem:[%s251 + $0x600] sm:$0xff] %v1738
        %2712 = vst [vmem:[%s251 + $0x608] sm:$0xff] %v1845
        %2713 = vst [vmem:[%s251 + $0x610] sm:$0xff] %v1952
        %2714 = vst [vmem:[%s251 + $0x618] sm:$0xff] %v2059
        %2715 = vst [vmem:[%s251 + $0x620] sm:$0xff] %v2166
        %2716 = vst [vmem:[%s251 + $0x628] sm:$0xff] %v2273
        %2717 = vst [vmem:[%s251 + $0x630] sm:$0xff] %v2380
        %2718 = vst [vmem:[%s251 + $0x638] sm:$0xff] %v2487
        %2719 = vst [vmem:[%s251 + $0x640] sm:$0xff] %v1527
        %2720 = vst [vmem:[%s251 + $0x648] sm:$0xff] %v1634
        %2721 = vst [vmem:[%s251 + $0x650] sm:$0xff] %v1741
        %2722 = vst [vmem:[%s251 + $0x658] sm:$0xff] %v1848
        %2723 = vst [vmem:[%s251 + $0x660] sm:$0xff] %v1955
        %2724 = vst [vmem:[%s251 + $0x668] sm:$0xff] %v2062
        %2725 = vst [vmem:[%s251 + $0x670] sm:$0xff] %v2169
        %2726 = vst [vmem:[%s251 + $0x678] sm:$0xff] %v2276
        %2727 = vst [vmem:[%s251 + $0x680] sm:$0xff] %v2383
        %2728 = vst [vmem:[%s251 + $0x688] sm:$0xff] %v2490
        %2729 = vst [vmem:[%s251 + $0x690] sm:$0xff] %v1530
        %2730 = vst [vmem:[%s251 + $0x698] sm:$0xff] %v1637
        %2731 = vst [vmem:[%s251 + $0x6a0] sm:$0xff] %v1744
        %2732 = vst [vmem:[%s251 + $0x6a8] sm:$0xff] %v1851
        %2733 = vst [vmem:[%s251 + $0x6b0] sm:$0xff] %v1958
        %2734 = vst [vmem:[%s251 + $0x6b8] sm:$0xff] %v2065
        %2735 = vst [vmem:[%s251 + $0x6c0] sm:$0xff] %v2172
        %2736 = vst [vmem:[%s251 + $0x6c8] sm:$0xff] %v2279
        %2737 = vst [vmem:[%s251 + $0x6d0] sm:$0xff] %v2386
        %2738 = vst [vmem:[%s251 + $0x6d8] sm:$0xff] %v2493
        %2739 = vst [vmem:[%s251 + $0x6e0] sm:$0xff] %v1533
        %2740 = vst [vmem:[%s251 + $0x6e8] sm:$0xff] %v1640
        %2741 = vst [vmem:[%s251 + $0x6f0] sm:$0xff] %v1747
        %2742 = vst [vmem:[%s251 + $0x6f8] sm:$0xff] %v1854
        %2743 = vst [vmem:[%s251 + $0x700] sm:$0xff] %v1961
        %2744 = vst [vmem:[%s251 + $0x708] sm:$0xff] %v2068
        %2745 = vst [vmem:[%s251 + $0x710] sm:$0xff] %v2175
        %2746 = vst [vmem:[%s251 + $0x718] sm:$0xff] %v2282
        %2747 = vst [vmem:[%s251 + $0x720] sm:$0xff] %v2389
        %2748 = vst [vmem:[%s251 + $0x728] sm:$0xff] %v2496
        %2749 = vst [vmem:[%s251 + $0x730] sm:$0xff] %v1536
        %2750 = vst [vmem:[%s251 + $0x738] sm:$0xff] %v1643
        %2751 = vst [vmem:[%s251 + $0x740] sm:$0xff] %v1750
        %2752 = vst [vmem:[%s251 + $0x748] sm:$0xff] %v1857
        %2753 = vst [vmem:[%s251 + $0x750] sm:$0xff] %v1964
        %2754 = vst [vmem:[%s251 + $0x758] sm:$0xff] %v2071
        %2755 = vst [vmem:[%s251 + $0x760] sm:$0xff] %v2178
        %2756 = vst [vmem:[%s251 + $0x768] sm:$0xff] %v2285
        %2757 = vst [vmem:[%s251 + $0x770] sm:$0xff] %v2392
        %2758 = vst [vmem:[%s251 + $0x778] sm:$0xff] %v2499
        %2759 = vst [vmem:[%s251 + $0x780] sm:$0xff] %v1539
        %2760 = vst [vmem:[%s251 + $0x788] sm:$0xff] %v1646
        %2761 = vst [vmem:[%s251 + $0x790] sm:$0xff] %v1753
        %2762 = vst [vmem:[%s251 + $0x798] sm:$0xff] %v1860
        %2763 = vst [vmem:[%s251 + $0x7a0] sm:$0xff] %v1967
        %2764 = vst [vmem:[%s251 + $0x7a8] sm:$0xff] %v2074
        %2765 = vst [vmem:[%s251 + $0x7b0] sm:$0xff] %v2181
        %2766 = vst [vmem:[%s251 + $0x7b8] sm:$0xff] %v2288
        %2767 = vst [vmem:[%s251 + $0x7c0] sm:$0xff] %v2395
        %2768 = vst [vmem:[%s251 + $0x7c8] sm:$0xff] %v2502
        %2769 = vst [vmem:[%s251 + $0x7d0] sm:$0xff] %v1542
        %2770 = vst [vmem:[%s251 + $0x7d8] sm:$0xff] %v1649
        %2771 = vst [vmem:[%s251 + $0x7e0] sm:$0xff] %v1756
        %2772 = vst [vmem:[%s251 + $0x7e8] sm:$0xff] %v1863
        %2773 = vst [vmem:[%s251 + $0x7f0] sm:$0xff] %v1970
        %2774 = vst [vmem:[%s251 + $0x7f8] sm:$0xff] %v2077
        %2775 = vst [vmem:[%s251 + $0x800] sm:$0xff] %v2184
        %2776 = vst [vmem:[%s251 + $0x808] sm:$0xff] %v2291
        %2777 = vst [vmem:[%s251 + $0x810] sm:$0xff] %v2398
        %2778 = vst [vmem:[%s251 + $0x818] sm:$0xff] %v2505
        %2779 = vst [vmem:[%s251 + $0x820] sm:$0xff] %v1545
        %2780 = vst [vmem:[%s251 + $0x828] sm:$0xff] %v1652
        %2781 = vst [vmem:[%s251 + $0x830] sm:$0xff] %v1759
        %2782 = vst [vmem:[%s251 + $0x838] sm:$0xff] %v1866
        %2783 = vst [vmem:[%s251 + $0x840] sm:$0xff] %v1973
        %2784 = vst [vmem:[%s251 + $0x848] sm:$0xff] %v2080
        %2785 = vst [vmem:[%s251 + $0x850] sm:$0xff] %v2187
        %2786 = vst [vmem:[%s251 + $0x858] sm:$0xff] %v2294
        %2787 = vst [vmem:[%s251 + $0x860] sm:$0xff] %v2401
        %2788 = vst [vmem:[%s251 + $0x868] sm:$0xff] %v2508
        %2789 = vst [vmem:[%s251 + $0x870] sm:$0xff] %v1548
        %2790 = vst [vmem:[%s251 + $0x878] sm:$0xff] %v1655
        %2791 = vst [vmem:[%s251 + $0x880] sm:$0xff] %v1762
        %2792 = vst [vmem:[%s251 + $0x888] sm:$0xff] %v1869
        %2793 = vst [vmem:[%s251 + $0x890] sm:$0xff] %v1976
        %2794 = vst [vmem:[%s251 + $0x898] sm:$0xff] %v2083
        %2795 = vst [vmem:[%s251 + $0x8a0] sm:$0xff] %v2190
        %2796 = vst [vmem:[%s251 + $0x8a8] sm:$0xff] %v2297
        %2797 = vst [vmem:[%s251 + $0x8b0] sm:$0xff] %v2404
        %2798 = vst [vmem:[%s251 + $0x8b8] sm:$0xff] %v2511
        %2799 = vst [vmem:[%s251 + $0x8c0] sm:$0xff] %v1551
        %2800 = vst [vmem:[%s251 + $0x8c8] sm:$0xff] %v1658
        %2801 = vst [vmem:[%s251 + $0x8d0] sm:$0xff] %v1765
        %2802 = vst [vmem:[%s251 + $0x8d8] sm:$0xff] %v1872
        %2803 = vst [vmem:[%s251 + $0x8e0] sm:$0xff] %v1979
        %2804 = vst [vmem:[%s251 + $0x8e8] sm:$0xff] %v2086
        %2805 = vst [vmem:[%s251 + $0x8f0] sm:$0xff] %v2193
        %2806 = vst [vmem:[%s251 + $0x8f8] sm:$0xff] %v2300
        %2807 = vst [vmem:[%s251 + $0x900] sm:$0xff] %v2407
        %2808 = vst [vmem:[%s251 + $0x908] sm:$0xff] %v2514
        %2809 = vst [vmem:[%s251 + $0x910] sm:$0xff] %v1554
        %2810 = vst [vmem:[%s251 + $0x918] sm:$0xff] %v1661
        %2811 = vst [vmem:[%s251 + $0x920] sm:$0xff] %v1768
        %2812 = vst [vmem:[%s251 + $0x928] sm:$0xff] %v1875
        %2813 = vst [vmem:[%s251 + $0x930] sm:$0xff] %v1982
        %2814 = vst [vmem:[%s251 + $0x938] sm:$0xff] %v2089
        %2815 = vst [vmem:[%s251 + $0x940] sm:$0xff] %v2196
        %2816 = vst [vmem:[%s251 + $0x948] sm:$0xff] %v2303
        %2817 = vst [vmem:[%s251 + $0x950] sm:$0xff] %v2410
        %2818 = vst [vmem:[%s251 + $0x958] sm:$0xff] %v2517
        %2819 = vmatpush.msra.mxu0 0.0
        %2820 = vmatpush.msra.mxu0 0.0
        %2821 = vmatpush.msra.mxu0 0.0
        %2822 = vmatpush.msra.mxu0 0.0
        %2823 = vmatpush.msra.mxu0 0.0
        %2824 = vmatpush.msra.mxu0 0.0
        %2825 = vmatpush.msra.mxu0 0.0
        %2826 = vmatpush.msra.mxu0 0.0
        %2827 = vmatpush.msra.mxu0 0.0
        %2828 = vmatpush.msra.mxu0 0.0
        %2829 = vmatpush.msra.mxu0 0.0
        %2830 = vmatpush.msra.mxu0 0.0
        %2831 = vmatpush.msra.mxu0 0.0
        %2832 = vmatpush.msra.mxu0 0.0
        %2833 = vmatpush.msra.mxu0 %v1006
        %2834 = vmatpush.msra.mxu0 %v1003
        %2835 = vmatmul.f32.gmra.mxu0 %v1360
        %v2836 = vpop.f32.mrf.mxu0
        %v2837 = vadd.f32 0.0, %v2836
        %2838 = vmatmul.f32.gmra.mxu0 %v1363
        %v2839 = vpop.f32.mrf.mxu0
        %v2840 = vadd.f32 0.0, %v2839
        %2841 = vmatmul.f32.gmra.mxu0 %v1366
        %v2842 = vpop.f32.mrf.mxu0
        %v2843 = vadd.f32 0.0, %v2842
        %2844 = vmatmul.f32.gmra.mxu0 %v1369
        %v2845 = vpop.f32.mrf.mxu0
        %v2846 = vadd.f32 0.0, %v2845
        %2847 = vmatmul.f32.gmra.mxu0 %v1372
        %v2848 = vpop.f32.mrf.mxu0
        %v2849 = vadd.f32 0.0, %v2848
        %2850 = vmatmul.f32.gmra.mxu0 %v1375
        %v2851 = vpop.f32.mrf.mxu0
        %v2852 = vadd.f32 0.0, %v2851
        %2853 = vmatmul.f32.gmra.mxu0 %v1378
        %v2854 = vpop.f32.mrf.mxu0
        %v2855 = vadd.f32 0.0, %v2854
        %2856 = vmatmul.f32.gmra.mxu0 %v1381
        %v2857 = vpop.f32.mrf.mxu0
        %v2858 = vadd.f32 0.0, %v2857
        %2859 = vmatmul.f32.gmra.mxu0 %v1384
        %v2860 = vpop.f32.mrf.mxu0
        %v2861 = vadd.f32 0.0, %v2860
        %2862 = vmatmul.f32.gmra.mxu0 %v1387
        %v2863 = vpop.f32.mrf.mxu0
        %v2864 = vadd.f32 0.0, %v2863
        %2865 = vmatmul.f32.gmra.mxu0 %v1390
        %v2866 = vpop.f32.mrf.mxu0
        %v2867 = vadd.f32 0.0, %v2866
        %2868 = vmatmul.f32.gmra.mxu0 %v1393
        %v2869 = vpop.f32.mrf.mxu0
        %v2870 = vadd.f32 0.0, %v2869
        %2871 = vmatmul.f32.gmra.mxu0 %v1396
        %v2872 = vpop.f32.mrf.mxu0
        %v2873 = vadd.f32 0.0, %v2872
        %2874 = vmatmul.f32.gmra.mxu0 %v1399
        %v2875 = vpop.f32.mrf.mxu0
        %v2876 = vadd.f32 0.0, %v2875
        %2877 = vmatmul.f32.gmra.mxu0 %v1402
        %v2878 = vpop.f32.mrf.mxu0
        %v2879 = vadd.f32 0.0, %v2878
        %2880 = vmatmul.f32.gmra.mxu0 %v1405
        %v2881 = vpop.f32.mrf.mxu0
        %v2882 = vadd.f32 0.0, %v2881
        %2883 = vmatmul.f32.gmra.mxu0 %v1408
        %v2884 = vpop.f32.mrf.mxu0
        %v2885 = vadd.f32 0.0, %v2884
        %2886 = vmatmul.f32.gmra.mxu0 %v1411
        %v2887 = vpop.f32.mrf.mxu0
        %v2888 = vadd.f32 0.0, %v2887
        %2889 = vmatmul.f32.gmra.mxu0 %v1414
        %v2890 = vpop.f32.mrf.mxu0
        %v2891 = vadd.f32 0.0, %v2890
        %2892 = vmatmul.f32.gmra.mxu0 %v1417
        %v2893 = vpop.f32.mrf.mxu0
        %v2894 = vadd.f32 0.0, %v2893
        %2895 = vmatmul.f32.gmra.mxu0 %v1420
        %v2896 = vpop.f32.mrf.mxu0
        %v2897 = vadd.f32 0.0, %v2896
        %2898 = vmatmul.f32.gmra.mxu0 %v1423
        %v2899 = vpop.f32.mrf.mxu0
        %v2900 = vadd.f32 0.0, %v2899
        %2901 = vmatmul.f32.gmra.mxu0 %v1426
        %v2902 = vpop.f32.mrf.mxu0
        %v2903 = vadd.f32 0.0, %v2902
        %2904 = vmatmul.f32.gmra.mxu0 %v1429
        %v2905 = vpop.f32.mrf.mxu0
        %v2906 = vadd.f32 0.0, %v2905
        %2907 = vmatmul.f32.gmra.mxu0 %v1432
        %v2908 = vpop.f32.mrf.mxu0
        %v2909 = vadd.f32 0.0, %v2908
        %2910 = vmatmul.f32.gmra.mxu0 %v1435
        %v2911 = vpop.f32.mrf.mxu0
        %v2912 = vadd.f32 0.0, %v2911
        %2913 = vmatmul.f32.gmra.mxu0 %v1438
        %v2914 = vpop.f32.mrf.mxu0
        %v2915 = vadd.f32 0.0, %v2914
        %2916 = vmatmul.f32.gmra.mxu0 %v1441
        %v2917 = vpop.f32.mrf.mxu0
        %v2918 = vadd.f32 0.0, %v2917
        %2919 = vmatmul.f32.gmra.mxu0 %v1444
        %v2920 = vpop.f32.mrf.mxu0
        %v2921 = vadd.f32 0.0, %v2920
        %2922 = vmatmul.f32.gmra.mxu0 %v1447
        %v2923 = vpop.f32.mrf.mxu0
        %v2924 = vadd.f32 0.0, %v2923
        %2925 = vdwg.mxu0
        %2926 = vmatpush.msra.mxu0 0.0
        %2927 = vmatpush.msra.mxu0 0.0
        %2928 = vmatpush.msra.mxu0 0.0
        %2929 = vmatpush.msra.mxu0 0.0
        %2930 = vmatpush.msra.mxu0 0.0
        %2931 = vmatpush.msra.mxu0 0.0
        %2932 = vmatpush.msra.mxu0 0.0
        %2933 = vmatpush.msra.mxu0 0.0
        %2934 = vmatpush.msra.mxu0 0.0
        %2935 = vmatpush.msra.mxu0 0.0
        %2936 = vmatpush.msra.mxu0 0.0
        %2937 = vmatpush.msra.mxu0 0.0
        %2938 = vmatpush.msra.mxu0 0.0
        %2939 = vmatpush.msra.mxu0 0.0
        %2940 = vmatpush.msra.mxu0 %v1041
        %2941 = vmatpush.msra.mxu0 %v1038
        %2942 = vmatmul.f32.gmra.mxu0 %v1360
        %v2943 = vpop.f32.mrf.mxu0
        %v2944 = vadd.f32 0.0, %v2943
        %2945 = vmatmul.f32.gmra.mxu0 %v1363
        %v2946 = vpop.f32.mrf.mxu0
        %v2947 = vadd.f32 0.0, %v2946
        %2948 = vmatmul.f32.gmra.mxu0 %v1366
        %v2949 = vpop.f32.mrf.mxu0
        %v2950 = vadd.f32 0.0, %v2949
        %2951 = vmatmul.f32.gmra.mxu0 %v1369
        %v2952 = vpop.f32.mrf.mxu0
        %v2953 = vadd.f32 0.0, %v2952
        %2954 = vmatmul.f32.gmra.mxu0 %v1372
        %v2955 = vpop.f32.mrf.mxu0
        %v2956 = vadd.f32 0.0, %v2955
        %2957 = vmatmul.f32.gmra.mxu0 %v1375
        %v2958 = vpop.f32.mrf.mxu0
        %v2959 = vadd.f32 0.0, %v2958
        %2960 = vmatmul.f32.gmra.mxu0 %v1378
        %v2961 = vpop.f32.mrf.mxu0
        %v2962 = vadd.f32 0.0, %v2961
        %2963 = vmatmul.f32.gmra.mxu0 %v1381
        %v2964 = vpop.f32.mrf.mxu0
        %v2965 = vadd.f32 0.0, %v2964
        %2966 = vmatmul.f32.gmra.mxu0 %v1384
        %v2967 = vpop.f32.mrf.mxu0
        %v2968 = vadd.f32 0.0, %v2967
        %2969 = vmatmul.f32.gmra.mxu0 %v1387
        %v2970 = vpop.f32.mrf.mxu0
        %v2971 = vadd.f32 0.0, %v2970
        %2972 = vmatmul.f32.gmra.mxu0 %v1390
        %v2973 = vpop.f32.mrf.mxu0
        %v2974 = vadd.f32 0.0, %v2973
        %2975 = vmatmul.f32.gmra.mxu0 %v1393
        %v2976 = vpop.f32.mrf.mxu0
        %v2977 = vadd.f32 0.0, %v2976
        %2978 = vmatmul.f32.gmra.mxu0 %v1396
        %v2979 = vpop.f32.mrf.mxu0
        %v2980 = vadd.f32 0.0, %v2979
        %2981 = vmatmul.f32.gmra.mxu0 %v1399
        %v2982 = vpop.f32.mrf.mxu0
        %v2983 = vadd.f32 0.0, %v2982
        %2984 = vmatmul.f32.gmra.mxu0 %v1402
        %v2985 = vpop.f32.mrf.mxu0
        %v2986 = vadd.f32 0.0, %v2985
        %2987 = vmatmul.f32.gmra.mxu0 %v1405
        %v2988 = vpop.f32.mrf.mxu0
        %v2989 = vadd.f32 0.0, %v2988
        %2990 = vmatmul.f32.gmra.mxu0 %v1408
        %v2991 = vpop.f32.mrf.mxu0
        %v2992 = vadd.f32 0.0, %v2991
        %2993 = vmatmul.f32.gmra.mxu0 %v1411
        %v2994 = vpop.f32.mrf.mxu0
        %v2995 = vadd.f32 0.0, %v2994
        %2996 = vmatmul.f32.gmra.mxu0 %v1414
        %v2997 = vpop.f32.mrf.mxu0
        %v2998 = vadd.f32 0.0, %v2997
        %2999 = vmatmul.f32.gmra.mxu0 %v1417
        %v3000 = vpop.f32.mrf.mxu0
        %v3001 = vadd.f32 0.0, %v3000
        %3002 = vmatmul.f32.gmra.mxu0 %v1420
        %v3003 = vpop.f32.mrf.mxu0
        %v3004 = vadd.f32 0.0, %v3003
        %3005 = vmatmul.f32.gmra.mxu0 %v1423
        %v3006 = vpop.f32.mrf.mxu0
        %v3007 = vadd.f32 0.0, %v3006
        %3008 = vmatmul.f32.gmra.mxu0 %v1426
        %v3009 = vpop.f32.mrf.mxu0
        %v3010 = vadd.f32 0.0, %v3009
        %3011 = vmatmul.f32.gmra.mxu0 %v1429
        %v3012 = vpop.f32.mrf.mxu0
        %v3013 = vadd.f32 0.0, %v3012
        %3014 = vmatmul.f32.gmra.mxu0 %v1432
        %v3015 = vpop.f32.mrf.mxu0
        %v3016 = vadd.f32 0.0, %v3015
        %3017 = vmatmul.f32.gmra.mxu0 %v1435
        %v3018 = vpop.f32.mrf.mxu0
        %v3019 = vadd.f32 0.0, %v3018
        %3020 = vmatmul.f32.gmra.mxu0 %v1438
        %v3021 = vpop.f32.mrf.mxu0
        %v3022 = vadd.f32 0.0, %v3021
        %3023 = vmatmul.f32.gmra.mxu0 %v1441
        %v3024 = vpop.f32.mrf.mxu0
        %v3025 = vadd.f32 0.0, %v3024
        %3026 = vmatmul.f32.gmra.mxu0 %v1444
        %v3027 = vpop.f32.mrf.mxu0
        %v3028 = vadd.f32 0.0, %v3027
        %3029 = vmatmul.f32.gmra.mxu0 %v1447
        %v3030 = vpop.f32.mrf.mxu0
        %v3031 = vadd.f32 0.0, %v3030
        %3032 = vdwg.mxu0
        %3033 = vmatpush.msra.mxu0 0.0
        %3034 = vmatpush.msra.mxu0 0.0
        %3035 = vmatpush.msra.mxu0 0.0
        %3036 = vmatpush.msra.mxu0 0.0
        %3037 = vmatpush.msra.mxu0 0.0
        %3038 = vmatpush.msra.mxu0 0.0
        %3039 = vmatpush.msra.mxu0 0.0
        %3040 = vmatpush.msra.mxu0 0.0
        %3041 = vmatpush.msra.mxu0 0.0
        %3042 = vmatpush.msra.mxu0 0.0
        %3043 = vmatpush.msra.mxu0 0.0
        %3044 = vmatpush.msra.mxu0 0.0
        %3045 = vmatpush.msra.mxu0 0.0
        %3046 = vmatpush.msra.mxu0 0.0
        %3047 = vmatpush.msra.mxu0 %v1076
        %3048 = vmatpush.msra.mxu0 %v1073
        %3049 = vmatmul.f32.gmra.mxu0 %v1360
        %v3050 = vpop.f32.mrf.mxu0
        %v3051 = vadd.f32 0.0, %v3050
        %3052 = vmatmul.f32.gmra.mxu0 %v1363
        %v3053 = vpop.f32.mrf.mxu0
        %v3054 = vadd.f32 0.0, %v3053
        %3055 = vmatmul.f32.gmra.mxu0 %v1366
        %v3056 = vpop.f32.mrf.mxu0
        %v3057 = vadd.f32 0.0, %v3056
        %3058 = vmatmul.f32.gmra.mxu0 %v1369
        %v3059 = vpop.f32.mrf.mxu0
        %v3060 = vadd.f32 0.0, %v3059
        %3061 = vmatmul.f32.gmra.mxu0 %v1372
        %v3062 = vpop.f32.mrf.mxu0
        %v3063 = vadd.f32 0.0, %v3062
        %3064 = vmatmul.f32.gmra.mxu0 %v1375
        %v3065 = vpop.f32.mrf.mxu0
        %v3066 = vadd.f32 0.0, %v3065
        %3067 = vmatmul.f32.gmra.mxu0 %v1378
        %v3068 = vpop.f32.mrf.mxu0
        %v3069 = vadd.f32 0.0, %v3068
        %3070 = vmatmul.f32.gmra.mxu0 %v1381
        %v3071 = vpop.f32.mrf.mxu0
        %v3072 = vadd.f32 0.0, %v3071
        %3073 = vmatmul.f32.gmra.mxu0 %v1384
        %v3074 = vpop.f32.mrf.mxu0
        %v3075 = vadd.f32 0.0, %v3074
        %3076 = vmatmul.f32.gmra.mxu0 %v1387
        %v3077 = vpop.f32.mrf.mxu0
        %v3078 = vadd.f32 0.0, %v3077
        %3079 = vmatmul.f32.gmra.mxu0 %v1390
        %v3080 = vpop.f32.mrf.mxu0
        %v3081 = vadd.f32 0.0, %v3080
        %3082 = vmatmul.f32.gmra.mxu0 %v1393
        %v3083 = vpop.f32.mrf.mxu0
        %v3084 = vadd.f32 0.0, %v3083
        %3085 = vmatmul.f32.gmra.mxu0 %v1396
        %v3086 = vpop.f32.mrf.mxu0
        %v3087 = vadd.f32 0.0, %v3086
        %3088 = vmatmul.f32.gmra.mxu0 %v1399
        %v3089 = vpop.f32.mrf.mxu0
        %v3090 = vadd.f32 0.0, %v3089
        %3091 = vmatmul.f32.gmra.mxu0 %v1402
        %v3092 = vpop.f32.mrf.mxu0
        %v3093 = vadd.f32 0.0, %v3092
        %3094 = vmatmul.f32.gmra.mxu0 %v1405
        %v3095 = vpop.f32.mrf.mxu0
        %v3096 = vadd.f32 0.0, %v3095
        %3097 = vmatmul.f32.gmra.mxu0 %v1408
        %v3098 = vpop.f32.mrf.mxu0
        %v3099 = vadd.f32 0.0, %v3098
        %3100 = vmatmul.f32.gmra.mxu0 %v1411
        %v3101 = vpop.f32.mrf.mxu0
        %v3102 = vadd.f32 0.0, %v3101
        %3103 = vmatmul.f32.gmra.mxu0 %v1414
        %v3104 = vpop.f32.mrf.mxu0
        %v3105 = vadd.f32 0.0, %v3104
        %3106 = vmatmul.f32.gmra.mxu0 %v1417
        %v3107 = vpop.f32.mrf.mxu0
        %v3108 = vadd.f32 0.0, %v3107
        %3109 = vmatmul.f32.gmra.mxu0 %v1420
        %v3110 = vpop.f32.mrf.mxu0
        %v3111 = vadd.f32 0.0, %v3110
        %3112 = vmatmul.f32.gmra.mxu0 %v1423
        %v3113 = vpop.f32.mrf.mxu0
        %v3114 = vadd.f32 0.0, %v3113
        %3115 = vmatmul.f32.gmra.mxu0 %v1426
        %v3116 = vpop.f32.mrf.mxu0
        %v3117 = vadd.f32 0.0, %v3116
        %3118 = vmatmul.f32.gmra.mxu0 %v1429
        %v3119 = vpop.f32.mrf.mxu0
        %v3120 = vadd.f32 0.0, %v3119
        %3121 = vmatmul.f32.gmra.mxu0 %v1432
        %v3122 = vpop.f32.mrf.mxu0
        %v3123 = vadd.f32 0.0, %v3122
        %3124 = vmatmul.f32.gmra.mxu0 %v1435
        %v3125 = vpop.f32.mrf.mxu0
        %v3126 = vadd.f32 0.0, %v3125
        %3127 = vmatmul.f32.gmra.mxu0 %v1438
        %v3128 = vpop.f32.mrf.mxu0
        %v3129 = vadd.f32 0.0, %v3128
        %3130 = vmatmul.f32.gmra.mxu0 %v1441
        %v3131 = vpop.f32.mrf.mxu0
        %v3132 = vadd.f32 0.0, %v3131
        %3133 = vmatmul.f32.gmra.mxu0 %v1444
        %v3134 = vpop.f32.mrf.mxu0
        %v3135 = vadd.f32 0.0, %v3134
        %3136 = vmatmul.f32.gmra.mxu0 %v1447
        %v3137 = vpop.f32.mrf.mxu0
        %v3138 = vadd.f32 0.0, %v3137
        %3139 = vdwg.mxu0
        %3140 = vmatpush.msra.mxu0 0.0
        %3141 = vmatpush.msra.mxu0 0.0
        %3142 = vmatpush.msra.mxu0 0.0
        %3143 = vmatpush.msra.mxu0 0.0
        %3144 = vmatpush.msra.mxu0 0.0
        %3145 = vmatpush.msra.mxu0 0.0
        %3146 = vmatpush.msra.mxu0 0.0
        %3147 = vmatpush.msra.mxu0 0.0
        %3148 = vmatpush.msra.mxu0 0.0
        %3149 = vmatpush.msra.mxu0 0.0
        %3150 = vmatpush.msra.mxu0 0.0
        %3151 = vmatpush.msra.mxu0 0.0
        %3152 = vmatpush.msra.mxu0 0.0
        %3153 = vmatpush.msra.mxu0 0.0
        %3154 = vmatpush.msra.mxu0 %v1111
        %3155 = vmatpush.msra.mxu0 %v1108
        %3156 = vmatmul.f32.gmra.mxu0 %v1360
        %v3157 = vpop.f32.mrf.mxu0
        %v3158 = vadd.f32 0.0, %v3157
        %3159 = vmatmul.f32.gmra.mxu0 %v1363
        %v3160 = vpop.f32.mrf.mxu0
        %v3161 = vadd.f32 0.0, %v3160
        %3162 = vmatmul.f32.gmra.mxu0 %v1366
        %v3163 = vpop.f32.mrf.mxu0
        %v3164 = vadd.f32 0.0, %v3163
        %3165 = vmatmul.f32.gmra.mxu0 %v1369
        %v3166 = vpop.f32.mrf.mxu0
        %v3167 = vadd.f32 0.0, %v3166
        %3168 = vmatmul.f32.gmra.mxu0 %v1372
        %v3169 = vpop.f32.mrf.mxu0
        %v3170 = vadd.f32 0.0, %v3169
        %3171 = vmatmul.f32.gmra.mxu0 %v1375
        %v3172 = vpop.f32.mrf.mxu0
        %v3173 = vadd.f32 0.0, %v3172
        %3174 = vmatmul.f32.gmra.mxu0 %v1378
        %v3175 = vpop.f32.mrf.mxu0
        %v3176 = vadd.f32 0.0, %v3175
        %3177 = vmatmul.f32.gmra.mxu0 %v1381
        %v3178 = vpop.f32.mrf.mxu0
        %v3179 = vadd.f32 0.0, %v3178
        %3180 = vmatmul.f32.gmra.mxu0 %v1384
        %v3181 = vpop.f32.mrf.mxu0
        %v3182 = vadd.f32 0.0, %v3181
        %3183 = vmatmul.f32.gmra.mxu0 %v1387
        %v3184 = vpop.f32.mrf.mxu0
        %v3185 = vadd.f32 0.0, %v3184
        %3186 = vmatmul.f32.gmra.mxu0 %v1390
        %v3187 = vpop.f32.mrf.mxu0
        %v3188 = vadd.f32 0.0, %v3187
        %3189 = vmatmul.f32.gmra.mxu0 %v1393
        %v3190 = vpop.f32.mrf.mxu0
        %v3191 = vadd.f32 0.0, %v3190
        %3192 = vmatmul.f32.gmra.mxu0 %v1396
        %v3193 = vpop.f32.mrf.mxu0
        %v3194 = vadd.f32 0.0, %v3193
        %3195 = vmatmul.f32.gmra.mxu0 %v1399
        %v3196 = vpop.f32.mrf.mxu0
        %v3197 = vadd.f32 0.0, %v3196
        %3198 = vmatmul.f32.gmra.mxu0 %v1402
        %v3199 = vpop.f32.mrf.mxu0
        %v3200 = vadd.f32 0.0, %v3199
        %3201 = vmatmul.f32.gmra.mxu0 %v1405
        %v3202 = vpop.f32.mrf.mxu0
        %v3203 = vadd.f32 0.0, %v3202
        %3204 = vmatmul.f32.gmra.mxu0 %v1408
        %v3205 = vpop.f32.mrf.mxu0
        %v3206 = vadd.f32 0.0, %v3205
        %3207 = vmatmul.f32.gmra.mxu0 %v1411
        %v3208 = vpop.f32.mrf.mxu0
        %v3209 = vadd.f32 0.0, %v3208
        %3210 = vmatmul.f32.gmra.mxu0 %v1414
        %v3211 = vpop.f32.mrf.mxu0
        %v3212 = vadd.f32 0.0, %v3211
        %3213 = vmatmul.f32.gmra.mxu0 %v1417
        %v3214 = vpop.f32.mrf.mxu0
        %v3215 = vadd.f32 0.0, %v3214
        %3216 = vmatmul.f32.gmra.mxu0 %v1420
        %v3217 = vpop.f32.mrf.mxu0
        %v3218 = vadd.f32 0.0, %v3217
        %3219 = vmatmul.f32.gmra.mxu0 %v1423
        %v3220 = vpop.f32.mrf.mxu0
        %v3221 = vadd.f32 0.0, %v3220
        %3222 = vmatmul.f32.gmra.mxu0 %v1426
        %v3223 = vpop.f32.mrf.mxu0
        %v3224 = vadd.f32 0.0, %v3223
        %3225 = vmatmul.f32.gmra.mxu0 %v1429
        %v3226 = vpop.f32.mrf.mxu0
        %v3227 = vadd.f32 0.0, %v3226
        %3228 = vmatmul.f32.gmra.mxu0 %v1432
        %v3229 = vpop.f32.mrf.mxu0
        %v3230 = vadd.f32 0.0, %v3229
        %3231 = vmatmul.f32.gmra.mxu0 %v1435
        %v3232 = vpop.f32.mrf.mxu0
        %v3233 = vadd.f32 0.0, %v3232
        %3234 = vmatmul.f32.gmra.mxu0 %v1438
        %v3235 = vpop.f32.mrf.mxu0
        %v3236 = vadd.f32 0.0, %v3235
        %3237 = vmatmul.f32.gmra.mxu0 %v1441
        %v3238 = vpop.f32.mrf.mxu0
        %v3239 = vadd.f32 0.0, %v3238
        %3240 = vmatmul.f32.gmra.mxu0 %v1444
        %v3241 = vpop.f32.mrf.mxu0
        %v3242 = vadd.f32 0.0, %v3241
        %3243 = vmatmul.f32.gmra.mxu0 %v1447
        %v3244 = vpop.f32.mrf.mxu0
        %v3245 = vadd.f32 0.0, %v3244
        %3246 = vdwg.mxu0
        %3247 = vmatpush.msra.mxu0 0.0
        %3248 = vmatpush.msra.mxu0 0.0
        %3249 = vmatpush.msra.mxu0 0.0
        %3250 = vmatpush.msra.mxu0 0.0
        %3251 = vmatpush.msra.mxu0 0.0
        %3252 = vmatpush.msra.mxu0 0.0
        %3253 = vmatpush.msra.mxu0 0.0
        %3254 = vmatpush.msra.mxu0 0.0
        %3255 = vmatpush.msra.mxu0 0.0
        %3256 = vmatpush.msra.mxu0 0.0
        %3257 = vmatpush.msra.mxu0 0.0
        %3258 = vmatpush.msra.mxu0 0.0
        %3259 = vmatpush.msra.mxu0 0.0
        %3260 = vmatpush.msra.mxu0 0.0
        %3261 = vmatpush.msra.mxu0 %v1146
        %3262 = vmatpush.msra.mxu0 %v1143
        %3263 = vmatmul.f32.gmra.mxu0 %v1360
        %v3264 = vpop.f32.mrf.mxu0
        %v3265 = vadd.f32 0.0, %v3264
        %3266 = vmatmul.f32.gmra.mxu0 %v1363
        %v3267 = vpop.f32.mrf.mxu0
        %v3268 = vadd.f32 0.0, %v3267
        %3269 = vmatmul.f32.gmra.mxu0 %v1366
        %v3270 = vpop.f32.mrf.mxu0
        %v3271 = vadd.f32 0.0, %v3270
        %3272 = vmatmul.f32.gmra.mxu0 %v1369
        %v3273 = vpop.f32.mrf.mxu0
        %v3274 = vadd.f32 0.0, %v3273
        %3275 = vmatmul.f32.gmra.mxu0 %v1372
        %v3276 = vpop.f32.mrf.mxu0
        %v3277 = vadd.f32 0.0, %v3276
        %3278 = vmatmul.f32.gmra.mxu0 %v1375
        %v3279 = vpop.f32.mrf.mxu0
        %v3280 = vadd.f32 0.0, %v3279
        %3281 = vmatmul.f32.gmra.mxu0 %v1378
        %v3282 = vpop.f32.mrf.mxu0
        %v3283 = vadd.f32 0.0, %v3282
        %3284 = vmatmul.f32.gmra.mxu0 %v1381
        %v3285 = vpop.f32.mrf.mxu0
        %v3286 = vadd.f32 0.0, %v3285
        %3287 = vmatmul.f32.gmra.mxu0 %v1384
        %v3288 = vpop.f32.mrf.mxu0
        %v3289 = vadd.f32 0.0, %v3288
        %3290 = vmatmul.f32.gmra.mxu0 %v1387
        %v3291 = vpop.f32.mrf.mxu0
        %v3292 = vadd.f32 0.0, %v3291
        %3293 = vmatmul.f32.gmra.mxu0 %v1390
        %v3294 = vpop.f32.mrf.mxu0
        %v3295 = vadd.f32 0.0, %v3294
        %3296 = vmatmul.f32.gmra.mxu0 %v1393
        %v3297 = vpop.f32.mrf.mxu0
        %v3298 = vadd.f32 0.0, %v3297
        %3299 = vmatmul.f32.gmra.mxu0 %v1396
        %v3300 = vpop.f32.mrf.mxu0
        %v3301 = vadd.f32 0.0, %v3300
        %3302 = vmatmul.f32.gmra.mxu0 %v1399
        %v3303 = vpop.f32.mrf.mxu0
        %v3304 = vadd.f32 0.0, %v3303
        %3305 = vmatmul.f32.gmra.mxu0 %v1402
        %v3306 = vpop.f32.mrf.mxu0
        %v3307 = vadd.f32 0.0, %v3306
        %3308 = vmatmul.f32.gmra.mxu0 %v1405
        %v3309 = vpop.f32.mrf.mxu0
        %v3310 = vadd.f32 0.0, %v3309
        %3311 = vmatmul.f32.gmra.mxu0 %v1408
        %v3312 = vpop.f32.mrf.mxu0
        %v3313 = vadd.f32 0.0, %v3312
        %3314 = vmatmul.f32.gmra.mxu0 %v1411
        %v3315 = vpop.f32.mrf.mxu0
        %v3316 = vadd.f32 0.0, %v3315
        %3317 = vmatmul.f32.gmra.mxu0 %v1414
        %v3318 = vpop.f32.mrf.mxu0
        %v3319 = vadd.f32 0.0, %v3318
        %3320 = vmatmul.f32.gmra.mxu0 %v1417
        %v3321 = vpop.f32.mrf.mxu0
        %v3322 = vadd.f32 0.0, %v3321
        %3323 = vmatmul.f32.gmra.mxu0 %v1420
        %v3324 = vpop.f32.mrf.mxu0
        %v3325 = vadd.f32 0.0, %v3324
        %3326 = vmatmul.f32.gmra.mxu0 %v1423
        %v3327 = vpop.f32.mrf.mxu0
        %v3328 = vadd.f32 0.0, %v3327
        %3329 = vmatmul.f32.gmra.mxu0 %v1426
        %v3330 = vpop.f32.mrf.mxu0
        %v3331 = vadd.f32 0.0, %v3330
        %3332 = vmatmul.f32.gmra.mxu0 %v1429
        %v3333 = vpop.f32.mrf.mxu0
        %v3334 = vadd.f32 0.0, %v3333
        %3335 = vmatmul.f32.gmra.mxu0 %v1432
        %v3336 = vpop.f32.mrf.mxu0
        %v3337 = vadd.f32 0.0, %v3336
        %3338 = vmatmul.f32.gmra.mxu0 %v1435
        %v3339 = vpop.f32.mrf.mxu0
        %v3340 = vadd.f32 0.0, %v3339
        %3341 = vmatmul.f32.gmra.mxu0 %v1438
        %v3342 = vpop.f32.mrf.mxu0
        %v3343 = vadd.f32 0.0, %v3342
        %3344 = vmatmul.f32.gmra.mxu0 %v1441
        %v3345 = vpop.f32.mrf.mxu0
        %v3346 = vadd.f32 0.0, %v3345
        %3347 = vmatmul.f32.gmra.mxu0 %v1444
        %v3348 = vpop.f32.mrf.mxu0
        %v3349 = vadd.f32 0.0, %v3348
        %3350 = vmatmul.f32.gmra.mxu0 %v1447
        %v3351 = vpop.f32.mrf.mxu0
        %v3352 = vadd.f32 0.0, %v3351
        %3353 = vdwg.mxu0
        %3354 = vmatpush.msra.mxu0 0.0
        %3355 = vmatpush.msra.mxu0 0.0
        %3356 = vmatpush.msra.mxu0 0.0
        %3357 = vmatpush.msra.mxu0 0.0
        %3358 = vmatpush.msra.mxu0 0.0
        %3359 = vmatpush.msra.mxu0 0.0
        %3360 = vmatpush.msra.mxu0 0.0
        %3361 = vmatpush.msra.mxu0 0.0
        %3362 = vmatpush.msra.mxu0 0.0
        %3363 = vmatpush.msra.mxu0 0.0
        %3364 = vmatpush.msra.mxu0 0.0
        %3365 = vmatpush.msra.mxu0 0.0
        %3366 = vmatpush.msra.mxu0 0.0
        %3367 = vmatpush.msra.mxu0 0.0
        %3368 = vmatpush.msra.mxu0 %v1181
        %3369 = vmatpush.msra.mxu0 %v1178
        %3370 = vmatmul.f32.gmra.mxu0 %v1360
        %v3371 = vpop.f32.mrf.mxu0
        %v3372 = vadd.f32 0.0, %v3371
        %3373 = vmatmul.f32.gmra.mxu0 %v1363
        %v3374 = vpop.f32.mrf.mxu0
        %v3375 = vadd.f32 0.0, %v3374
        %3376 = vmatmul.f32.gmra.mxu0 %v1366
        %v3377 = vpop.f32.mrf.mxu0
        %v3378 = vadd.f32 0.0, %v3377
        %3379 = vmatmul.f32.gmra.mxu0 %v1369
        %v3380 = vpop.f32.mrf.mxu0
        %v3381 = vadd.f32 0.0, %v3380
        %3382 = vmatmul.f32.gmra.mxu0 %v1372
        %v3383 = vpop.f32.mrf.mxu0
        %v3384 = vadd.f32 0.0, %v3383
        %3385 = vmatmul.f32.gmra.mxu0 %v1375
        %v3386 = vpop.f32.mrf.mxu0
        %v3387 = vadd.f32 0.0, %v3386
        %3388 = vmatmul.f32.gmra.mxu0 %v1378
        %v3389 = vpop.f32.mrf.mxu0
        %v3390 = vadd.f32 0.0, %v3389
        %3391 = vmatmul.f32.gmra.mxu0 %v1381
        %v3392 = vpop.f32.mrf.mxu0
        %v3393 = vadd.f32 0.0, %v3392
        %3394 = vmatmul.f32.gmra.mxu0 %v1384
        %v3395 = vpop.f32.mrf.mxu0
        %v3396 = vadd.f32 0.0, %v3395
        %3397 = vmatmul.f32.gmra.mxu0 %v1387
        %v3398 = vpop.f32.mrf.mxu0
        %v3399 = vadd.f32 0.0, %v3398
        %3400 = vmatmul.f32.gmra.mxu0 %v1390
        %v3401 = vpop.f32.mrf.mxu0
        %v3402 = vadd.f32 0.0, %v3401
        %3403 = vmatmul.f32.gmra.mxu0 %v1393
        %v3404 = vpop.f32.mrf.mxu0
        %v3405 = vadd.f32 0.0, %v3404
        %3406 = vmatmul.f32.gmra.mxu0 %v1396
        %v3407 = vpop.f32.mrf.mxu0
        %v3408 = vadd.f32 0.0, %v3407
        %3409 = vmatmul.f32.gmra.mxu0 %v1399
        %v3410 = vpop.f32.mrf.mxu0
        %v3411 = vadd.f32 0.0, %v3410
        %3412 = vmatmul.f32.gmra.mxu0 %v1402
        %v3413 = vpop.f32.mrf.mxu0
        %v3414 = vadd.f32 0.0, %v3413
        %3415 = vmatmul.f32.gmra.mxu0 %v1405
        %v3416 = vpop.f32.mrf.mxu0
        %v3417 = vadd.f32 0.0, %v3416
        %3418 = vmatmul.f32.gmra.mxu0 %v1408
        %v3419 = vpop.f32.mrf.mxu0
        %v3420 = vadd.f32 0.0, %v3419
        %3421 = vmatmul.f32.gmra.mxu0 %v1411
        %v3422 = vpop.f32.mrf.mxu0
        %v3423 = vadd.f32 0.0, %v3422
        %3424 = vmatmul.f32.gmra.mxu0 %v1414
        %v3425 = vpop.f32.mrf.mxu0
        %v3426 = vadd.f32 0.0, %v3425
        %3427 = vmatmul.f32.gmra.mxu0 %v1417
        %v3428 = vpop.f32.mrf.mxu0
        %v3429 = vadd.f32 0.0, %v3428
        %3430 = vmatmul.f32.gmra.mxu0 %v1420
        %v3431 = vpop.f32.mrf.mxu0
        %v3432 = vadd.f32 0.0, %v3431
        %3433 = vmatmul.f32.gmra.mxu0 %v1423
        %v3434 = vpop.f32.mrf.mxu0
        %v3435 = vadd.f32 0.0, %v3434
        %3436 = vmatmul.f32.gmra.mxu0 %v1426
        %v3437 = vpop.f32.mrf.mxu0
        %v3438 = vadd.f32 0.0, %v3437
        %3439 = vmatmul.f32.gmra.mxu0 %v1429
        %v3440 = vpop.f32.mrf.mxu0
        %v3441 = vadd.f32 0.0, %v3440
        %3442 = vmatmul.f32.gmra.mxu0 %v1432
        %v3443 = vpop.f32.mrf.mxu0
        %v3444 = vadd.f32 0.0, %v3443
        %3445 = vmatmul.f32.gmra.mxu0 %v1435
        %v3446 = vpop.f32.mrf.mxu0
        %v3447 = vadd.f32 0.0, %v3446
        %3448 = vmatmul.f32.gmra.mxu0 %v1438
        %v3449 = vpop.f32.mrf.mxu0
        %v3450 = vadd.f32 0.0, %v3449
        %3451 = vmatmul.f32.gmra.mxu0 %v1441
        %v3452 = vpop.f32.mrf.mxu0
        %v3453 = vadd.f32 0.0, %v3452
        %3454 = vmatmul.f32.gmra.mxu0 %v1444
        %v3455 = vpop.f32.mrf.mxu0
        %v3456 = vadd.f32 0.0, %v3455
        %3457 = vmatmul.f32.gmra.mxu0 %v1447
        %v3458 = vpop.f32.mrf.mxu0
        %v3459 = vadd.f32 0.0, %v3458
        %3460 = vdwg.mxu0
        %3461 = vmatpush.msra.mxu0 0.0
        %3462 = vmatpush.msra.mxu0 0.0
        %3463 = vmatpush.msra.mxu0 0.0
        %3464 = vmatpush.msra.mxu0 0.0
        %3465 = vmatpush.msra.mxu0 0.0
        %3466 = vmatpush.msra.mxu0 0.0
        %3467 = vmatpush.msra.mxu0 0.0
        %3468 = vmatpush.msra.mxu0 0.0
        %3469 = vmatpush.msra.mxu0 0.0
        %3470 = vmatpush.msra.mxu0 0.0
        %3471 = vmatpush.msra.mxu0 0.0
        %3472 = vmatpush.msra.mxu0 0.0
        %3473 = vmatpush.msra.mxu0 0.0
        %3474 = vmatpush.msra.mxu0 0.0
        %3475 = vmatpush.msra.mxu0 %v1216
        %3476 = vmatpush.msra.mxu0 %v1213
        %3477 = vmatmul.f32.gmra.mxu0 %v1360
        %v3478 = vpop.f32.mrf.mxu0
        %v3479 = vadd.f32 0.0, %v3478
        %3480 = vmatmul.f32.gmra.mxu0 %v1363
        %v3481 = vpop.f32.mrf.mxu0
        %v3482 = vadd.f32 0.0, %v3481
        %3483 = vmatmul.f32.gmra.mxu0 %v1366
        %v3484 = vpop.f32.mrf.mxu0
        %v3485 = vadd.f32 0.0, %v3484
        %3486 = vmatmul.f32.gmra.mxu0 %v1369
        %v3487 = vpop.f32.mrf.mxu0
        %v3488 = vadd.f32 0.0, %v3487
        %3489 = vmatmul.f32.gmra.mxu0 %v1372
        %v3490 = vpop.f32.mrf.mxu0
        %v3491 = vadd.f32 0.0, %v3490
        %3492 = vmatmul.f32.gmra.mxu0 %v1375
        %v3493 = vpop.f32.mrf.mxu0
        %v3494 = vadd.f32 0.0, %v3493
        %3495 = vmatmul.f32.gmra.mxu0 %v1378
        %v3496 = vpop.f32.mrf.mxu0
        %v3497 = vadd.f32 0.0, %v3496
        %3498 = vmatmul.f32.gmra.mxu0 %v1381
        %v3499 = vpop.f32.mrf.mxu0
        %v3500 = vadd.f32 0.0, %v3499
        %3501 = vmatmul.f32.gmra.mxu0 %v1384
        %v3502 = vpop.f32.mrf.mxu0
        %v3503 = vadd.f32 0.0, %v3502
        %3504 = vmatmul.f32.gmra.mxu0 %v1387
        %v3505 = vpop.f32.mrf.mxu0
        %v3506 = vadd.f32 0.0, %v3505
        %3507 = vmatmul.f32.gmra.mxu0 %v1390
        %v3508 = vpop.f32.mrf.mxu0
        %v3509 = vadd.f32 0.0, %v3508
        %3510 = vmatmul.f32.gmra.mxu0 %v1393
        %v3511 = vpop.f32.mrf.mxu0
        %v3512 = vadd.f32 0.0, %v3511
        %3513 = vmatmul.f32.gmra.mxu0 %v1396
        %v3514 = vpop.f32.mrf.mxu0
        %v3515 = vadd.f32 0.0, %v3514
        %3516 = vmatmul.f32.gmra.mxu0 %v1399
        %v3517 = vpop.f32.mrf.mxu0
        %v3518 = vadd.f32 0.0, %v3517
        %3519 = vmatmul.f32.gmra.mxu0 %v1402
        %v3520 = vpop.f32.mrf.mxu0
        %v3521 = vadd.f32 0.0, %v3520
        %3522 = vmatmul.f32.gmra.mxu0 %v1405
        %v3523 = vpop.f32.mrf.mxu0
        %v3524 = vadd.f32 0.0, %v3523
        %3525 = vmatmul.f32.gmra.mxu0 %v1408
        %v3526 = vpop.f32.mrf.mxu0
        %v3527 = vadd.f32 0.0, %v3526
        %3528 = vmatmul.f32.gmra.mxu0 %v1411
        %v3529 = vpop.f32.mrf.mxu0
        %v3530 = vadd.f32 0.0, %v3529
        %3531 = vmatmul.f32.gmra.mxu0 %v1414
        %v3532 = vpop.f32.mrf.mxu0
        %v3533 = vadd.f32 0.0, %v3532
        %3534 = vmatmul.f32.gmra.mxu0 %v1417
        %v3535 = vpop.f32.mrf.mxu0
        %v3536 = vadd.f32 0.0, %v3535
        %3537 = vmatmul.f32.gmra.mxu0 %v1420
        %v3538 = vpop.f32.mrf.mxu0
        %v3539 = vadd.f32 0.0, %v3538
        %3540 = vmatmul.f32.gmra.mxu0 %v1423
        %v3541 = vpop.f32.mrf.mxu0
        %v3542 = vadd.f32 0.0, %v3541
        %3543 = vmatmul.f32.gmra.mxu0 %v1426
        %v3544 = vpop.f32.mrf.mxu0
        %v3545 = vadd.f32 0.0, %v3544
        %3546 = vmatmul.f32.gmra.mxu0 %v1429
        %v3547 = vpop.f32.mrf.mxu0
        %v3548 = vadd.f32 0.0, %v3547
        %3549 = vmatmul.f32.gmra.mxu0 %v1432
        %v3550 = vpop.f32.mrf.mxu0
        %v3551 = vadd.f32 0.0, %v3550
        %3552 = vmatmul.f32.gmra.mxu0 %v1435
        %v3553 = vpop.f32.mrf.mxu0
        %v3554 = vadd.f32 0.0, %v3553
        %3555 = vmatmul.f32.gmra.mxu0 %v1438
        %v3556 = vpop.f32.mrf.mxu0
        %v3557 = vadd.f32 0.0, %v3556
        %3558 = vmatmul.f32.gmra.mxu0 %v1441
        %v3559 = vpop.f32.mrf.mxu0
        %v3560 = vadd.f32 0.0, %v3559
        %3561 = vmatmul.f32.gmra.mxu0 %v1444
        %v3562 = vpop.f32.mrf.mxu0
        %v3563 = vadd.f32 0.0, %v3562
        %3564 = vmatmul.f32.gmra.mxu0 %v1447
        %v3565 = vpop.f32.mrf.mxu0
        %v3566 = vadd.f32 0.0, %v3565
        %3567 = vdwg.mxu0
        %3568 = vmatpush.msra.mxu0 0.0
        %3569 = vmatpush.msra.mxu0 0.0
        %3570 = vmatpush.msra.mxu0 0.0
        %3571 = vmatpush.msra.mxu0 0.0
        %3572 = vmatpush.msra.mxu0 0.0
        %3573 = vmatpush.msra.mxu0 0.0
        %3574 = vmatpush.msra.mxu0 0.0
        %3575 = vmatpush.msra.mxu0 0.0
        %3576 = vmatpush.msra.mxu0 0.0
        %3577 = vmatpush.msra.mxu0 0.0
        %3578 = vmatpush.msra.mxu0 0.0
        %3579 = vmatpush.msra.mxu0 0.0
        %3580 = vmatpush.msra.mxu0 0.0
        %3581 = vmatpush.msra.mxu0 0.0
        %3582 = vmatpush.msra.mxu0 %v1251
        %3583 = vmatpush.msra.mxu0 %v1248
        %3584 = vmatmul.f32.gmra.mxu0 %v1360
        %v3585 = vpop.f32.mrf.mxu0
        %v3586 = vadd.f32 0.0, %v3585
        %3587 = vmatmul.f32.gmra.mxu0 %v1363
        %v3588 = vpop.f32.mrf.mxu0
        %v3589 = vadd.f32 0.0, %v3588
        %3590 = vmatmul.f32.gmra.mxu0 %v1366
        %v3591 = vpop.f32.mrf.mxu0
        %v3592 = vadd.f32 0.0, %v3591
        %3593 = vmatmul.f32.gmra.mxu0 %v1369
        %v3594 = vpop.f32.mrf.mxu0
        %v3595 = vadd.f32 0.0, %v3594
        %3596 = vmatmul.f32.gmra.mxu0 %v1372
        %v3597 = vpop.f32.mrf.mxu0
        %v3598 = vadd.f32 0.0, %v3597
        %3599 = vmatmul.f32.gmra.mxu0 %v1375
        %v3600 = vpop.f32.mrf.mxu0
        %v3601 = vadd.f32 0.0, %v3600
        %3602 = vmatmul.f32.gmra.mxu0 %v1378
        %v3603 = vpop.f32.mrf.mxu0
        %v3604 = vadd.f32 0.0, %v3603
        %3605 = vmatmul.f32.gmra.mxu0 %v1381
        %v3606 = vpop.f32.mrf.mxu0
        %v3607 = vadd.f32 0.0, %v3606
        %3608 = vmatmul.f32.gmra.mxu0 %v1384
        %v3609 = vpop.f32.mrf.mxu0
        %v3610 = vadd.f32 0.0, %v3609
        %3611 = vmatmul.f32.gmra.mxu0 %v1387
        %v3612 = vpop.f32.mrf.mxu0
        %v3613 = vadd.f32 0.0, %v3612
        %3614 = vmatmul.f32.gmra.mxu0 %v1390
        %v3615 = vpop.f32.mrf.mxu0
        %v3616 = vadd.f32 0.0, %v3615
        %3617 = vmatmul.f32.gmra.mxu0 %v1393
        %v3618 = vpop.f32.mrf.mxu0
        %v3619 = vadd.f32 0.0, %v3618
        %3620 = vmatmul.f32.gmra.mxu0 %v1396
        %v3621 = vpop.f32.mrf.mxu0
        %v3622 = vadd.f32 0.0, %v3621
        %3623 = vmatmul.f32.gmra.mxu0 %v1399
        %v3624 = vpop.f32.mrf.mxu0
        %v3625 = vadd.f32 0.0, %v3624
        %3626 = vmatmul.f32.gmra.mxu0 %v1402
        %v3627 = vpop.f32.mrf.mxu0
        %v3628 = vadd.f32 0.0, %v3627
        %3629 = vmatmul.f32.gmra.mxu0 %v1405
        %v3630 = vpop.f32.mrf.mxu0
        %v3631 = vadd.f32 0.0, %v3630
        %3632 = vmatmul.f32.gmra.mxu0 %v1408
        %v3633 = vpop.f32.mrf.mxu0
        %v3634 = vadd.f32 0.0, %v3633
        %3635 = vmatmul.f32.gmra.mxu0 %v1411
        %v3636 = vpop.f32.mrf.mxu0
        %v3637 = vadd.f32 0.0, %v3636
        %3638 = vmatmul.f32.gmra.mxu0 %v1414
        %v3639 = vpop.f32.mrf.mxu0
        %v3640 = vadd.f32 0.0, %v3639
        %3641 = vmatmul.f32.gmra.mxu0 %v1417
        %v3642 = vpop.f32.mrf.mxu0
        %v3643 = vadd.f32 0.0, %v3642
        %3644 = vmatmul.f32.gmra.mxu0 %v1420
        %v3645 = vpop.f32.mrf.mxu0
        %v3646 = vadd.f32 0.0, %v3645
        %3647 = vmatmul.f32.gmra.mxu0 %v1423
        %v3648 = vpop.f32.mrf.mxu0
        %v3649 = vadd.f32 0.0, %v3648
        %3650 = vmatmul.f32.gmra.mxu0 %v1426
        %v3651 = vpop.f32.mrf.mxu0
        %v3652 = vadd.f32 0.0, %v3651
        %3653 = vmatmul.f32.gmra.mxu0 %v1429
        %v3654 = vpop.f32.mrf.mxu0
        %v3655 = vadd.f32 0.0, %v3654
        %3656 = vmatmul.f32.gmra.mxu0 %v1432
        %v3657 = vpop.f32.mrf.mxu0
        %v3658 = vadd.f32 0.0, %v3657
        %3659 = vmatmul.f32.gmra.mxu0 %v1435
        %v3660 = vpop.f32.mrf.mxu0
        %v3661 = vadd.f32 0.0, %v3660
        %3662 = vmatmul.f32.gmra.mxu0 %v1438
        %v3663 = vpop.f32.mrf.mxu0
        %v3664 = vadd.f32 0.0, %v3663
        %3665 = vmatmul.f32.gmra.mxu0 %v1441
        %v3666 = vpop.f32.mrf.mxu0
        %v3667 = vadd.f32 0.0, %v3666
        %3668 = vmatmul.f32.gmra.mxu0 %v1444
        %v3669 = vpop.f32.mrf.mxu0
        %v3670 = vadd.f32 0.0, %v3669
        %3671 = vmatmul.f32.gmra.mxu0 %v1447
        %v3672 = vpop.f32.mrf.mxu0
        %v3673 = vadd.f32 0.0, %v3672
        %3674 = vdwg.mxu0
        %3675 = vmatpush.msra.mxu0 0.0
        %3676 = vmatpush.msra.mxu0 0.0
        %3677 = vmatpush.msra.mxu0 0.0
        %3678 = vmatpush.msra.mxu0 0.0
        %3679 = vmatpush.msra.mxu0 0.0
        %3680 = vmatpush.msra.mxu0 0.0
        %3681 = vmatpush.msra.mxu0 0.0
        %3682 = vmatpush.msra.mxu0 0.0
        %3683 = vmatpush.msra.mxu0 0.0
        %3684 = vmatpush.msra.mxu0 0.0
        %3685 = vmatpush.msra.mxu0 0.0
        %3686 = vmatpush.msra.mxu0 0.0
        %3687 = vmatpush.msra.mxu0 0.0
        %3688 = vmatpush.msra.mxu0 0.0
        %3689 = vmatpush.msra.mxu0 %v1286
        %3690 = vmatpush.msra.mxu0 %v1283
        %3691 = vmatmul.f32.gmra.mxu0 %v1360
        %v3692 = vpop.f32.mrf.mxu0
        %v3693 = vadd.f32 0.0, %v3692
        %3694 = vmatmul.f32.gmra.mxu0 %v1363
        %v3695 = vpop.f32.mrf.mxu0
        %v3696 = vadd.f32 0.0, %v3695
        %3697 = vmatmul.f32.gmra.mxu0 %v1366
        %v3698 = vpop.f32.mrf.mxu0
        %v3699 = vadd.f32 0.0, %v3698
        %3700 = vmatmul.f32.gmra.mxu0 %v1369
        %v3701 = vpop.f32.mrf.mxu0
        %v3702 = vadd.f32 0.0, %v3701
        %3703 = vmatmul.f32.gmra.mxu0 %v1372
        %v3704 = vpop.f32.mrf.mxu0
        %v3705 = vadd.f32 0.0, %v3704
        %3706 = vmatmul.f32.gmra.mxu0 %v1375
        %v3707 = vpop.f32.mrf.mxu0
        %v3708 = vadd.f32 0.0, %v3707
        %3709 = vmatmul.f32.gmra.mxu0 %v1378
        %v3710 = vpop.f32.mrf.mxu0
        %v3711 = vadd.f32 0.0, %v3710
        %3712 = vmatmul.f32.gmra.mxu0 %v1381
        %v3713 = vpop.f32.mrf.mxu0
        %v3714 = vadd.f32 0.0, %v3713
        %3715 = vmatmul.f32.gmra.mxu0 %v1384
        %v3716 = vpop.f32.mrf.mxu0
        %v3717 = vadd.f32 0.0, %v3716
        %3718 = vmatmul.f32.gmra.mxu0 %v1387
        %v3719 = vpop.f32.mrf.mxu0
        %v3720 = vadd.f32 0.0, %v3719
        %3721 = vmatmul.f32.gmra.mxu0 %v1390
        %v3722 = vpop.f32.mrf.mxu0
        %v3723 = vadd.f32 0.0, %v3722
        %3724 = vmatmul.f32.gmra.mxu0 %v1393
        %v3725 = vpop.f32.mrf.mxu0
        %v3726 = vadd.f32 0.0, %v3725
        %3727 = vmatmul.f32.gmra.mxu0 %v1396
        %v3728 = vpop.f32.mrf.mxu0
        %v3729 = vadd.f32 0.0, %v3728
        %3730 = vmatmul.f32.gmra.mxu0 %v1399
        %v3731 = vpop.f32.mrf.mxu0
        %v3732 = vadd.f32 0.0, %v3731
        %3733 = vmatmul.f32.gmra.mxu0 %v1402
        %v3734 = vpop.f32.mrf.mxu0
        %v3735 = vadd.f32 0.0, %v3734
        %3736 = vmatmul.f32.gmra.mxu0 %v1405
        %v3737 = vpop.f32.mrf.mxu0
        %v3738 = vadd.f32 0.0, %v3737
        %3739 = vmatmul.f32.gmra.mxu0 %v1408
        %v3740 = vpop.f32.mrf.mxu0
        %v3741 = vadd.f32 0.0, %v3740
        %3742 = vmatmul.f32.gmra.mxu0 %v1411
        %v3743 = vpop.f32.mrf.mxu0
        %v3744 = vadd.f32 0.0, %v3743
        %3745 = vmatmul.f32.gmra.mxu0 %v1414
        %v3746 = vpop.f32.mrf.mxu0
        %v3747 = vadd.f32 0.0, %v3746
        %3748 = vmatmul.f32.gmra.mxu0 %v1417
        %v3749 = vpop.f32.mrf.mxu0
        %v3750 = vadd.f32 0.0, %v3749
        %3751 = vmatmul.f32.gmra.mxu0 %v1420
        %v3752 = vpop.f32.mrf.mxu0
        %v3753 = vadd.f32 0.0, %v3752
        %3754 = vmatmul.f32.gmra.mxu0 %v1423
        %v3755 = vpop.f32.mrf.mxu0
        %v3756 = vadd.f32 0.0, %v3755
        %3757 = vmatmul.f32.gmra.mxu0 %v1426
        %v3758 = vpop.f32.mrf.mxu0
        %v3759 = vadd.f32 0.0, %v3758
        %3760 = vmatmul.f32.gmra.mxu0 %v1429
        %v3761 = vpop.f32.mrf.mxu0
        %v3762 = vadd.f32 0.0, %v3761
        %3763 = vmatmul.f32.gmra.mxu0 %v1432
        %v3764 = vpop.f32.mrf.mxu0
        %v3765 = vadd.f32 0.0, %v3764
        %3766 = vmatmul.f32.gmra.mxu0 %v1435
        %v3767 = vpop.f32.mrf.mxu0
        %v3768 = vadd.f32 0.0, %v3767
        %3769 = vmatmul.f32.gmra.mxu0 %v1438
        %v3770 = vpop.f32.mrf.mxu0
        %v3771 = vadd.f32 0.0, %v3770
        %3772 = vmatmul.f32.gmra.mxu0 %v1441
        %v3773 = vpop.f32.mrf.mxu0
        %v3774 = vadd.f32 0.0, %v3773
        %3775 = vmatmul.f32.gmra.mxu0 %v1444
        %v3776 = vpop.f32.mrf.mxu0
        %v3777 = vadd.f32 0.0, %v3776
        %3778 = vmatmul.f32.gmra.mxu0 %v1447
        %v3779 = vpop.f32.mrf.mxu0
        %v3780 = vadd.f32 0.0, %v3779
        %3781 = vdwg.mxu0
        %3782 = vmatpush.msra.mxu0 0.0
        %3783 = vmatpush.msra.mxu0 0.0
        %3784 = vmatpush.msra.mxu0 0.0
        %3785 = vmatpush.msra.mxu0 0.0
        %3786 = vmatpush.msra.mxu0 0.0
        %3787 = vmatpush.msra.mxu0 0.0
        %3788 = vmatpush.msra.mxu0 0.0
        %3789 = vmatpush.msra.mxu0 0.0
        %3790 = vmatpush.msra.mxu0 0.0
        %3791 = vmatpush.msra.mxu0 0.0
        %3792 = vmatpush.msra.mxu0 0.0
        %3793 = vmatpush.msra.mxu0 0.0
        %3794 = vmatpush.msra.mxu0 0.0
        %3795 = vmatpush.msra.mxu0 0.0
        %3796 = vmatpush.msra.mxu0 %v1321
        %3797 = vmatpush.msra.mxu0 %v1318
        %3798 = vmatmul.f32.gmra.mxu0 %v1360
        %v3799 = vpop.f32.mrf.mxu0
        %v3800 = vadd.f32 0.0, %v3799
        %3801 = vmatmul.f32.gmra.mxu0 %v1363
        %v3802 = vpop.f32.mrf.mxu0
        %v3803 = vadd.f32 0.0, %v3802
        %3804 = vmatmul.f32.gmra.mxu0 %v1366
        %v3805 = vpop.f32.mrf.mxu0
        %v3806 = vadd.f32 0.0, %v3805
        %3807 = vmatmul.f32.gmra.mxu0 %v1369
        %v3808 = vpop.f32.mrf.mxu0
        %v3809 = vadd.f32 0.0, %v3808
        %3810 = vmatmul.f32.gmra.mxu0 %v1372
        %v3811 = vpop.f32.mrf.mxu0
        %v3812 = vadd.f32 0.0, %v3811
        %3813 = vmatmul.f32.gmra.mxu0 %v1375
        %v3814 = vpop.f32.mrf.mxu0
        %v3815 = vadd.f32 0.0, %v3814
        %3816 = vmatmul.f32.gmra.mxu0 %v1378
        %v3817 = vpop.f32.mrf.mxu0
        %v3818 = vadd.f32 0.0, %v3817
        %3819 = vmatmul.f32.gmra.mxu0 %v1381
        %v3820 = vpop.f32.mrf.mxu0
        %v3821 = vadd.f32 0.0, %v3820
        %3822 = vmatmul.f32.gmra.mxu0 %v1384
        %v3823 = vpop.f32.mrf.mxu0
        %v3824 = vadd.f32 0.0, %v3823
        %3825 = vmatmul.f32.gmra.mxu0 %v1387
        %v3826 = vpop.f32.mrf.mxu0
        %v3827 = vadd.f32 0.0, %v3826
        %3828 = vmatmul.f32.gmra.mxu0 %v1390
        %v3829 = vpop.f32.mrf.mxu0
        %v3830 = vadd.f32 0.0, %v3829
        %3831 = vmatmul.f32.gmra.mxu0 %v1393
        %v3832 = vpop.f32.mrf.mxu0
        %v3833 = vadd.f32 0.0, %v3832
        %3834 = vmatmul.f32.gmra.mxu0 %v1396
        %v3835 = vpop.f32.mrf.mxu0
        %v3836 = vadd.f32 0.0, %v3835
        %3837 = vmatmul.f32.gmra.mxu0 %v1399
        %v3838 = vpop.f32.mrf.mxu0
        %v3839 = vadd.f32 0.0, %v3838
        %3840 = vmatmul.f32.gmra.mxu0 %v1402
        %v3841 = vpop.f32.mrf.mxu0
        %v3842 = vadd.f32 0.0, %v3841
        %3843 = vmatmul.f32.gmra.mxu0 %v1405
        %v3844 = vpop.f32.mrf.mxu0
        %v3845 = vadd.f32 0.0, %v3844
        %3846 = vmatmul.f32.gmra.mxu0 %v1408
        %v3847 = vpop.f32.mrf.mxu0
        %v3848 = vadd.f32 0.0, %v3847
        %3849 = vmatmul.f32.gmra.mxu0 %v1411
        %v3850 = vpop.f32.mrf.mxu0
        %v3851 = vadd.f32 0.0, %v3850
        %3852 = vmatmul.f32.gmra.mxu0 %v1414
        %v3853 = vpop.f32.mrf.mxu0
        %v3854 = vadd.f32 0.0, %v3853
        %3855 = vmatmul.f32.gmra.mxu0 %v1417
        %v3856 = vpop.f32.mrf.mxu0
        %v3857 = vadd.f32 0.0, %v3856
        %3858 = vmatmul.f32.gmra.mxu0 %v1420
        %v3859 = vpop.f32.mrf.mxu0
        %v3860 = vadd.f32 0.0, %v3859
        %3861 = vmatmul.f32.gmra.mxu0 %v1423
        %v3862 = vpop.f32.mrf.mxu0
        %v3863 = vadd.f32 0.0, %v3862
        %3864 = vmatmul.f32.gmra.mxu0 %v1426
        %v3865 = vpop.f32.mrf.mxu0
        %v3866 = vadd.f32 0.0, %v3865
        %3867 = vmatmul.f32.gmra.mxu0 %v1429
        %v3868 = vpop.f32.mrf.mxu0
        %v3869 = vadd.f32 0.0, %v3868
        %3870 = vmatmul.f32.gmra.mxu0 %v1432
        %v3871 = vpop.f32.mrf.mxu0
        %v3872 = vadd.f32 0.0, %v3871
        %3873 = vmatmul.f32.gmra.mxu0 %v1435
        %v3874 = vpop.f32.mrf.mxu0
        %v3875 = vadd.f32 0.0, %v3874
        %3876 = vmatmul.f32.gmra.mxu0 %v1438
        %v3877 = vpop.f32.mrf.mxu0
        %v3878 = vadd.f32 0.0, %v3877
        %3879 = vmatmul.f32.gmra.mxu0 %v1441
        %v3880 = vpop.f32.mrf.mxu0
        %v3881 = vadd.f32 0.0, %v3880
        %3882 = vmatmul.f32.gmra.mxu0 %v1444
        %v3883 = vpop.f32.mrf.mxu0
        %v3884 = vadd.f32 0.0, %v3883
        %3885 = vmatmul.f32.gmra.mxu0 %v1447
        %v3886 = vpop.f32.mrf.mxu0
        %v3887 = vadd.f32 0.0, %v3886
        %3888 = vdwg.mxu0
        %s3889 = scalar_lea.vmem %s251, 2400 [#allocation7]
        %3890 = vst [vmem:[%s3889] sm:$0xff] %v2837
        %3891 = vst [vmem:[%s3889 + $0x8] sm:$0xff] %v2944
        %3892 = vst [vmem:[%s3889 + $0x10] sm:$0xff] %v3051
        %3893 = vst [vmem:[%s3889 + $0x18] sm:$0xff] %v3158
        %3894 = vst [vmem:[%s3889 + $0x20] sm:$0xff] %v3265
        %3895 = vst [vmem:[%s3889 + $0x28] sm:$0xff] %v3372
        %3896 = vst [vmem:[%s3889 + $0x30] sm:$0xff] %v3479
        %3897 = vst [vmem:[%s3889 + $0x38] sm:$0xff] %v3586
        %3898 = vst [vmem:[%s3889 + $0x40] sm:$0xff] %v3693
        %3899 = vst [vmem:[%s3889 + $0x48] sm:$0xff] %v3800
        %3900 = vst [vmem:[%s3889 + $0x50] sm:$0xff] %v2840
        %3901 = vst [vmem:[%s3889 + $0x58] sm:$0xff] %v2947
        %3902 = vst [vmem:[%s3889 + $0x60] sm:$0xff] %v3054
        %3903 = vst [vmem:[%s3889 + $0x68] sm:$0xff] %v3161
        %3904 = vst [vmem:[%s3889 + $0x70] sm:$0xff] %v3268
        %3905 = vst [vmem:[%s3889 + $0x78] sm:$0xff] %v3375
        %3906 = vst [vmem:[%s3889 + $0x80] sm:$0xff] %v3482
        %3907 = vst [vmem:[%s3889 + $0x88] sm:$0xff] %v3589
        %3908 = vst [vmem:[%s3889 + $0x90] sm:$0xff] %v3696
        %3909 = vst [vmem:[%s3889 + $0x98] sm:$0xff] %v3803
        %3910 = vst [vmem:[%s3889 + $0xa0] sm:$0xff] %v2843
        %3911 = vst [vmem:[%s3889 + $0xa8] sm:$0xff] %v2950
        %3912 = vst [vmem:[%s3889 + $0xb0] sm:$0xff] %v3057
        %3913 = vst [vmem:[%s3889 + $0xb8] sm:$0xff] %v3164
        %3914 = vst [vmem:[%s3889 + $0xc0] sm:$0xff] %v3271
        %3915 = vst [vmem:[%s3889 + $0xc8] sm:$0xff] %v3378
        %3916 = vst [vmem:[%s3889 + $0xd0] sm:$0xff] %v3485
        %3917 = vst [vmem:[%s3889 + $0xd8] sm:$0xff] %v3592
        %3918 = vst [vmem:[%s3889 + $0xe0] sm:$0xff] %v3699
        %3919 = vst [vmem:[%s3889 + $0xe8] sm:$0xff] %v3806
        %3920 = vst [vmem:[%s3889 + $0xf0] sm:$0xff] %v2846
        %3921 = vst [vmem:[%s3889 + $0xf8] sm:$0xff] %v2953
        %3922 = vst [vmem:[%s3889 + $0x100] sm:$0xff] %v3060
        %3923 = vst [vmem:[%s3889 + $0x108] sm:$0xff] %v3167
        %3924 = vst [vmem:[%s3889 + $0x110] sm:$0xff] %v3274
        %3925 = vst [vmem:[%s3889 + $0x118] sm:$0xff] %v3381
        %3926 = vst [vmem:[%s3889 + $0x120] sm:$0xff] %v3488
        %3927 = vst [vmem:[%s3889 + $0x128] sm:$0xff] %v3595
        %3928 = vst [vmem:[%s3889 + $0x130] sm:$0xff] %v3702
        %3929 = vst [vmem:[%s3889 + $0x138] sm:$0xff] %v3809
        %3930 = vst [vmem:[%s3889 + $0x140] sm:$0xff] %v2849
        %3931 = vst [vmem:[%s3889 + $0x148] sm:$0xff] %v2956
        %3932 = vst [vmem:[%s3889 + $0x150] sm:$0xff] %v3063
        %3933 = vst [vmem:[%s3889 + $0x158] sm:$0xff] %v3170
        %3934 = vst [vmem:[%s3889 + $0x160] sm:$0xff] %v3277
        %3935 = vst [vmem:[%s3889 + $0x168] sm:$0xff] %v3384
        %3936 = vst [vmem:[%s3889 + $0x170] sm:$0xff] %v3491
        %3937 = vst [vmem:[%s3889 + $0x178] sm:$0xff] %v3598
        %3938 = vst [vmem:[%s3889 + $0x180] sm:$0xff] %v3705
        %3939 = vst [vmem:[%s3889 + $0x188] sm:$0xff] %v3812
        %3940 = vst [vmem:[%s3889 + $0x190] sm:$0xff] %v2852
        %3941 = vst [vmem:[%s3889 + $0x198] sm:$0xff] %v2959
        %3942 = vst [vmem:[%s3889 + $0x1a0] sm:$0xff] %v3066
        %3943 = vst [vmem:[%s3889 + $0x1a8] sm:$0xff] %v3173
        %3944 = vst [vmem:[%s3889 + $0x1b0] sm:$0xff] %v3280
        %3945 = vst [vmem:[%s3889 + $0x1b8] sm:$0xff] %v3387
        %3946 = vst [vmem:[%s3889 + $0x1c0] sm:$0xff] %v3494
        %3947 = vst [vmem:[%s3889 + $0x1c8] sm:$0xff] %v3601
        %3948 = vst [vmem:[%s3889 + $0x1d0] sm:$0xff] %v3708
        %3949 = vst [vmem:[%s3889 + $0x1d8] sm:$0xff] %v3815
        %3950 = vst [vmem:[%s3889 + $0x1e0] sm:$0xff] %v2855
        %3951 = vst [vmem:[%s3889 + $0x1e8] sm:$0xff] %v2962
        %3952 = vst [vmem:[%s3889 + $0x1f0] sm:$0xff] %v3069
        %3953 = vst [vmem:[%s3889 + $0x1f8] sm:$0xff] %v3176
        %3954 = vst [vmem:[%s3889 + $0x200] sm:$0xff] %v3283
        %3955 = vst [vmem:[%s3889 + $0x208] sm:$0xff] %v3390
        %3956 = vst [vmem:[%s3889 + $0x210] sm:$0xff] %v3497
        %3957 = vst [vmem:[%s3889 + $0x218] sm:$0xff] %v3604
        %3958 = vst [vmem:[%s3889 + $0x220] sm:$0xff] %v3711
        %3959 = vst [vmem:[%s3889 + $0x228] sm:$0xff] %v3818
        %3960 = vst [vmem:[%s3889 + $0x230] sm:$0xff] %v2858
        %3961 = vst [vmem:[%s3889 + $0x238] sm:$0xff] %v2965
        %3962 = vst [vmem:[%s3889 + $0x240] sm:$0xff] %v3072
        %3963 = vst [vmem:[%s3889 + $0x248] sm:$0xff] %v3179
        %3964 = vst [vmem:[%s3889 + $0x250] sm:$0xff] %v3286
        %3965 = vst [vmem:[%s3889 + $0x258] sm:$0xff] %v3393
        %3966 = vst [vmem:[%s3889 + $0x260] sm:$0xff] %v3500
        %3967 = vst [vmem:[%s3889 + $0x268] sm:$0xff] %v3607
        %3968 = vst [vmem:[%s3889 + $0x270] sm:$0xff] %v3714
        %3969 = vst [vmem:[%s3889 + $0x278] sm:$0xff] %v3821
        %3970 = vst [vmem:[%s3889 + $0x280] sm:$0xff] %v2861
        %3971 = vst [vmem:[%s3889 + $0x288] sm:$0xff] %v2968
        %3972 = vst [vmem:[%s3889 + $0x290] sm:$0xff] %v3075
        %3973 = vst [vmem:[%s3889 + $0x298] sm:$0xff] %v3182
        %3974 = vst [vmem:[%s3889 + $0x2a0] sm:$0xff] %v3289
        %3975 = vst [vmem:[%s3889 + $0x2a8] sm:$0xff] %v3396
        %3976 = vst [vmem:[%s3889 + $0x2b0] sm:$0xff] %v3503
        %3977 = vst [vmem:[%s3889 + $0x2b8] sm:$0xff] %v3610
        %3978 = vst [vmem:[%s3889 + $0x2c0] sm:$0xff] %v3717
        %3979 = vst [vmem:[%s3889 + $0x2c8] sm:$0xff] %v3824
        %3980 = vst [vmem:[%s3889 + $0x2d0] sm:$0xff] %v2864
        %3981 = vst [vmem:[%s3889 + $0x2d8] sm:$0xff] %v2971
        %3982 = vst [vmem:[%s3889 + $0x2e0] sm:$0xff] %v3078
        %3983 = vst [vmem:[%s3889 + $0x2e8] sm:$0xff] %v3185
        %3984 = vst [vmem:[%s3889 + $0x2f0] sm:$0xff] %v3292
        %3985 = vst [vmem:[%s3889 + $0x2f8] sm:$0xff] %v3399
        %3986 = vst [vmem:[%s3889 + $0x300] sm:$0xff] %v3506
        %3987 = vst [vmem:[%s3889 + $0x308] sm:$0xff] %v3613
        %3988 = vst [vmem:[%s3889 + $0x310] sm:$0xff] %v3720
        %3989 = vst [vmem:[%s3889 + $0x318] sm:$0xff] %v3827
        %3990 = vst [vmem:[%s3889 + $0x320] sm:$0xff] %v2867
        %3991 = vst [vmem:[%s3889 + $0x328] sm:$0xff] %v2974
        %3992 = vst [vmem:[%s3889 + $0x330] sm:$0xff] %v3081
        %3993 = vst [vmem:[%s3889 + $0x338] sm:$0xff] %v3188
        %3994 = vst [vmem:[%s3889 + $0x340] sm:$0xff] %v3295
        %3995 = vst [vmem:[%s3889 + $0x348] sm:$0xff] %v3402
        %3996 = vst [vmem:[%s3889 + $0x350] sm:$0xff] %v3509
        %3997 = vst [vmem:[%s3889 + $0x358] sm:$0xff] %v3616
        %3998 = vst [vmem:[%s3889 + $0x360] sm:$0xff] %v3723
        %3999 = vst [vmem:[%s3889 + $0x368] sm:$0xff] %v3830
        %4000 = vst [vmem:[%s3889 + $0x370] sm:$0xff] %v2870
        %4001 = vst [vmem:[%s3889 + $0x378] sm:$0xff] %v2977
        %4002 = vst [vmem:[%s3889 + $0x380] sm:$0xff] %v3084
        %4003 = vst [vmem:[%s3889 + $0x388] sm:$0xff] %v3191
        %4004 = vst [vmem:[%s3889 + $0x390] sm:$0xff] %v3298
        %4005 = vst [vmem:[%s3889 + $0x398] sm:$0xff] %v3405
        %4006 = vst [vmem:[%s3889 + $0x3a0] sm:$0xff] %v3512
        %4007 = vst [vmem:[%s3889 + $0x3a8] sm:$0xff] %v3619
        %4008 = vst [vmem:[%s3889 + $0x3b0] sm:$0xff] %v3726
        %4009 = vst [vmem:[%s3889 + $0x3b8] sm:$0xff] %v3833
        %4010 = vst [vmem:[%s3889 + $0x3c0] sm:$0xff] %v2873
        %4011 = vst [vmem:[%s3889 + $0x3c8] sm:$0xff] %v2980
        %4012 = vst [vmem:[%s3889 + $0x3d0] sm:$0xff] %v3087
        %4013 = vst [vmem:[%s3889 + $0x3d8] sm:$0xff] %v3194
        %4014 = vst [vmem:[%s3889 + $0x3e0] sm:$0xff] %v3301
        %4015 = vst [vmem:[%s3889 + $0x3e8] sm:$0xff] %v3408
        %4016 = vst [vmem:[%s3889 + $0x3f0] sm:$0xff] %v3515
        %4017 = vst [vmem:[%s3889 + $0x3f8] sm:$0xff] %v3622
        %4018 = vst [vmem:[%s3889 + $0x400] sm:$0xff] %v3729
        %4019 = vst [vmem:[%s3889 + $0x408] sm:$0xff] %v3836
        %4020 = vst [vmem:[%s3889 + $0x410] sm:$0xff] %v2876
        %4021 = vst [vmem:[%s3889 + $0x418] sm:$0xff] %v2983
        %4022 = vst [vmem:[%s3889 + $0x420] sm:$0xff] %v3090
        %4023 = vst [vmem:[%s3889 + $0x428] sm:$0xff] %v3197
        %4024 = vst [vmem:[%s3889 + $0x430] sm:$0xff] %v3304
        %4025 = vst [vmem:[%s3889 + $0x438] sm:$0xff] %v3411
        %4026 = vst [vmem:[%s3889 + $0x440] sm:$0xff] %v3518
        %4027 = vst [vmem:[%s3889 + $0x448] sm:$0xff] %v3625
        %4028 = vst [vmem:[%s3889 + $0x450] sm:$0xff] %v3732
        %4029 = vst [vmem:[%s3889 + $0x458] sm:$0xff] %v3839
        %4030 = vst [vmem:[%s3889 + $0x460] sm:$0xff] %v2879
        %4031 = vst [vmem:[%s3889 + $0x468] sm:$0xff] %v2986
        %4032 = vst [vmem:[%s3889 + $0x470] sm:$0xff] %v3093
        %4033 = vst [vmem:[%s3889 + $0x478] sm:$0xff] %v3200
        %4034 = vst [vmem:[%s3889 + $0x480] sm:$0xff] %v3307
        %4035 = vst [vmem:[%s3889 + $0x488] sm:$0xff] %v3414
        %4036 = vst [vmem:[%s3889 + $0x490] sm:$0xff] %v3521
        %4037 = vst [vmem:[%s3889 + $0x498] sm:$0xff] %v3628
        %4038 = vst [vmem:[%s3889 + $0x4a0] sm:$0xff] %v3735
        %4039 = vst [vmem:[%s3889 + $0x4a8] sm:$0xff] %v3842
        %4040 = vst [vmem:[%s3889 + $0x4b0] sm:$0xff] %v2882
        %4041 = vst [vmem:[%s3889 + $0x4b8] sm:$0xff] %v2989
        %4042 = vst [vmem:[%s3889 + $0x4c0] sm:$0xff] %v3096
        %4043 = vst [vmem:[%s3889 + $0x4c8] sm:$0xff] %v3203
        %4044 = vst [vmem:[%s3889 + $0x4d0] sm:$0xff] %v3310
        %4045 = vst [vmem:[%s3889 + $0x4d8] sm:$0xff] %v3417
        %4046 = vst [vmem:[%s3889 + $0x4e0] sm:$0xff] %v3524
        %4047 = vst [vmem:[%s3889 + $0x4e8] sm:$0xff] %v3631
        %4048 = vst [vmem:[%s3889 + $0x4f0] sm:$0xff] %v3738
        %4049 = vst [vmem:[%s3889 + $0x4f8] sm:$0xff] %v3845
        %4050 = vst [vmem:[%s3889 + $0x500] sm:$0xff] %v2885
        %4051 = vst [vmem:[%s3889 + $0x508] sm:$0xff] %v2992
        %4052 = vst [vmem:[%s3889 + $0x510] sm:$0xff] %v3099
        %4053 = vst [vmem:[%s3889 + $0x518] sm:$0xff] %v3206
        %4054 = vst [vmem:[%s3889 + $0x520] sm:$0xff] %v3313
        %4055 = vst [vmem:[%s3889 + $0x528] sm:$0xff] %v3420
        %4056 = vst [vmem:[%s3889 + $0x530] sm:$0xff] %v3527
        %4057 = vst [vmem:[%s3889 + $0x538] sm:$0xff] %v3634
        %4058 = vst [vmem:[%s3889 + $0x540] sm:$0xff] %v3741
        %4059 = vst [vmem:[%s3889 + $0x548] sm:$0xff] %v3848
        %4060 = vst [vmem:[%s3889 + $0x550] sm:$0xff] %v2888
        %4061 = vst [vmem:[%s3889 + $0x558] sm:$0xff] %v2995
        %4062 = vst [vmem:[%s3889 + $0x560] sm:$0xff] %v3102
        %4063 = vst [vmem:[%s3889 + $0x568] sm:$0xff] %v3209
        %4064 = vst [vmem:[%s3889 + $0x570] sm:$0xff] %v3316
        %4065 = vst [vmem:[%s3889 + $0x578] sm:$0xff] %v3423
        %4066 = vst [vmem:[%s3889 + $0x580] sm:$0xff] %v3530
        %4067 = vst [vmem:[%s3889 + $0x588] sm:$0xff] %v3637
        %4068 = vst [vmem:[%s3889 + $0x590] sm:$0xff] %v3744
        %4069 = vst [vmem:[%s3889 + $0x598] sm:$0xff] %v3851
        %4070 = vst [vmem:[%s3889 + $0x5a0] sm:$0xff] %v2891
        %4071 = vst [vmem:[%s3889 + $0x5a8] sm:$0xff] %v2998
        %4072 = vst [vmem:[%s3889 + $0x5b0] sm:$0xff] %v3105
        %4073 = vst [vmem:[%s3889 + $0x5b8] sm:$0xff] %v3212
        %4074 = vst [vmem:[%s3889 + $0x5c0] sm:$0xff] %v3319
        %4075 = vst [vmem:[%s3889 + $0x5c8] sm:$0xff] %v3426
        %4076 = vst [vmem:[%s3889 + $0x5d0] sm:$0xff] %v3533
        %4077 = vst [vmem:[%s3889 + $0x5d8] sm:$0xff] %v3640
        %4078 = vst [vmem:[%s3889 + $0x5e0] sm:$0xff] %v3747
        %4079 = vst [vmem:[%s3889 + $0x5e8] sm:$0xff] %v3854
        %4080 = vst [vmem:[%s3889 + $0x5f0] sm:$0xff] %v2894
        %4081 = vst [vmem:[%s3889 + $0x5f8] sm:$0xff] %v3001
        %4082 = vst [vmem:[%s3889 + $0x600] sm:$0xff] %v3108
        %4083 = vst [vmem:[%s3889 + $0x608] sm:$0xff] %v3215
        %4084 = vst [vmem:[%s3889 + $0x610] sm:$0xff] %v3322
        %4085 = vst [vmem:[%s3889 + $0x618] sm:$0xff] %v3429
        %4086 = vst [vmem:[%s3889 + $0x620] sm:$0xff] %v3536
        %4087 = vst [vmem:[%s3889 + $0x628] sm:$0xff] %v3643
        %4088 = vst [vmem:[%s3889 + $0x630] sm:$0xff] %v3750
        %4089 = vst [vmem:[%s3889 + $0x638] sm:$0xff] %v3857
        %4090 = vst [vmem:[%s3889 + $0x640] sm:$0xff] %v2897
        %4091 = vst [vmem:[%s3889 + $0x648] sm:$0xff] %v3004
        %4092 = vst [vmem:[%s3889 + $0x650] sm:$0xff] %v3111
        %4093 = vst [vmem:[%s3889 + $0x658] sm:$0xff] %v3218
        %4094 = vst [vmem:[%s3889 + $0x660] sm:$0xff] %v3325
        %4095 = vst [vmem:[%s3889 + $0x668] sm:$0xff] %v3432
        %4096 = vst [vmem:[%s3889 + $0x670] sm:$0xff] %v3539
        %4097 = vst [vmem:[%s3889 + $0x678] sm:$0xff] %v3646
        %4098 = vst [vmem:[%s3889 + $0x680] sm:$0xff] %v3753
        %4099 = vst [vmem:[%s3889 + $0x688] sm:$0xff] %v3860
        %4100 = vst [vmem:[%s3889 + $0x690] sm:$0xff] %v2900
        %4101 = vst [vmem:[%s3889 + $0x698] sm:$0xff] %v3007
        %4102 = vst [vmem:[%s3889 + $0x6a0] sm:$0xff] %v3114
        %4103 = vst [vmem:[%s3889 + $0x6a8] sm:$0xff] %v3221
        %4104 = vst [vmem:[%s3889 + $0x6b0] sm:$0xff] %v3328
        %4105 = vst [vmem:[%s3889 + $0x6b8] sm:$0xff] %v3435
        %4106 = vst [vmem:[%s3889 + $0x6c0] sm:$0xff] %v3542
        %4107 = vst [vmem:[%s3889 + $0x6c8] sm:$0xff] %v3649
        %4108 = vst [vmem:[%s3889 + $0x6d0] sm:$0xff] %v3756
        %4109 = vst [vmem:[%s3889 + $0x6d8] sm:$0xff] %v3863
        %4110 = vst [vmem:[%s3889 + $0x6e0] sm:$0xff] %v2903
        %4111 = vst [vmem:[%s3889 + $0x6e8] sm:$0xff] %v3010
        %4112 = vst [vmem:[%s3889 + $0x6f0] sm:$0xff] %v3117
        %4113 = vst [vmem:[%s3889 + $0x6f8] sm:$0xff] %v3224
        %4114 = vst [vmem:[%s3889 + $0x700] sm:$0xff] %v3331
        %4115 = vst [vmem:[%s3889 + $0x708] sm:$0xff] %v3438
        %4116 = vst [vmem:[%s3889 + $0x710] sm:$0xff] %v3545
        %4117 = vst [vmem:[%s3889 + $0x718] sm:$0xff] %v3652
        %4118 = vst [vmem:[%s3889 + $0x720] sm:$0xff] %v3759
        %4119 = vst [vmem:[%s3889 + $0x728] sm:$0xff] %v3866
        %4120 = vst [vmem:[%s3889 + $0x730] sm:$0xff] %v2906
        %4121 = vst [vmem:[%s3889 + $0x738] sm:$0xff] %v3013
        %4122 = vst [vmem:[%s3889 + $0x740] sm:$0xff] %v3120
        %4123 = vst [vmem:[%s3889 + $0x748] sm:$0xff] %v3227
        %4124 = vst [vmem:[%s3889 + $0x750] sm:$0xff] %v3334
        %4125 = vst [vmem:[%s3889 + $0x758] sm:$0xff] %v3441
        %4126 = vst [vmem:[%s3889 + $0x760] sm:$0xff] %v3548
        %4127 = vst [vmem:[%s3889 + $0x768] sm:$0xff] %v3655
        %4128 = vst [vmem:[%s3889 + $0x770] sm:$0xff] %v3762
        %4129 = vst [vmem:[%s3889 + $0x778] sm:$0xff] %v3869
        %4130 = vst [vmem:[%s3889 + $0x780] sm:$0xff] %v2909
        %4131 = vst [vmem:[%s3889 + $0x788] sm:$0xff] %v3016
        %4132 = vst [vmem:[%s3889 + $0x790] sm:$0xff] %v3123
        %4133 = vst [vmem:[%s3889 + $0x798] sm:$0xff] %v3230
        %4134 = vst [vmem:[%s3889 + $0x7a0] sm:$0xff] %v3337
        %4135 = vst [vmem:[%s3889 + $0x7a8] sm:$0xff] %v3444
        %4136 = vst [vmem:[%s3889 + $0x7b0] sm:$0xff] %v3551
        %4137 = vst [vmem:[%s3889 + $0x7b8] sm:$0xff] %v3658
        %4138 = vst [vmem:[%s3889 + $0x7c0] sm:$0xff] %v3765
        %4139 = vst [vmem:[%s3889 + $0x7c8] sm:$0xff] %v3872
        %4140 = vst [vmem:[%s3889 + $0x7d0] sm:$0xff] %v2912
        %4141 = vst [vmem:[%s3889 + $0x7d8] sm:$0xff] %v3019
        %4142 = vst [vmem:[%s3889 + $0x7e0] sm:$0xff] %v3126
        %4143 = vst [vmem:[%s3889 + $0x7e8] sm:$0xff] %v3233
        %4144 = vst [vmem:[%s3889 + $0x7f0] sm:$0xff] %v3340
        %4145 = vst [vmem:[%s3889 + $0x7f8] sm:$0xff] %v3447
        %4146 = vst [vmem:[%s3889 + $0x800] sm:$0xff] %v3554
        %4147 = vst [vmem:[%s3889 + $0x808] sm:$0xff] %v3661
        %4148 = vst [vmem:[%s3889 + $0x810] sm:$0xff] %v3768
        %4149 = vst [vmem:[%s3889 + $0x818] sm:$0xff] %v3875
        %4150 = vst [vmem:[%s3889 + $0x820] sm:$0xff] %v2915
        %4151 = vst [vmem:[%s3889 + $0x828] sm:$0xff] %v3022
        %4152 = vst [vmem:[%s3889 + $0x830] sm:$0xff] %v3129
        %4153 = vst [vmem:[%s3889 + $0x838] sm:$0xff] %v3236
        %4154 = vst [vmem:[%s3889 + $0x840] sm:$0xff] %v3343
        %4155 = vst [vmem:[%s3889 + $0x848] sm:$0xff] %v3450
        %4156 = vst [vmem:[%s3889 + $0x850] sm:$0xff] %v3557
        %4157 = vst [vmem:[%s3889 + $0x858] sm:$0xff] %v3664
        %4158 = vst [vmem:[%s3889 + $0x860] sm:$0xff] %v3771
        %4159 = vst [vmem:[%s3889 + $0x868] sm:$0xff] %v3878
        %4160 = vst [vmem:[%s3889 + $0x870] sm:$0xff] %v2918
        %4161 = vst [vmem:[%s3889 + $0x878] sm:$0xff] %v3025
        %4162 = vst [vmem:[%s3889 + $0x880] sm:$0xff] %v3132
        %4163 = vst [vmem:[%s3889 + $0x888] sm:$0xff] %v3239
        %4164 = vst [vmem:[%s3889 + $0x890] sm:$0xff] %v3346
        %4165 = vst [vmem:[%s3889 + $0x898] sm:$0xff] %v3453
        %4166 = vst [vmem:[%s3889 + $0x8a0] sm:$0xff] %v3560
        %4167 = vst [vmem:[%s3889 + $0x8a8] sm:$0xff] %v3667
        %4168 = vst [vmem:[%s3889 + $0x8b0] sm:$0xff] %v3774
        %4169 = vst [vmem:[%s3889 + $0x8b8] sm:$0xff] %v3881
        %4170 = vst [vmem:[%s3889 + $0x8c0] sm:$0xff] %v2921
        %4171 = vst [vmem:[%s3889 + $0x8c8] sm:$0xff] %v3028
        %4172 = vst [vmem:[%s3889 + $0x8d0] sm:$0xff] %v3135
        %4173 = vst [vmem:[%s3889 + $0x8d8] sm:$0xff] %v3242
        %4174 = vst [vmem:[%s3889 + $0x8e0] sm:$0xff] %v3349
        %4175 = vst [vmem:[%s3889 + $0x8e8] sm:$0xff] %v3456
        %4176 = vst [vmem:[%s3889 + $0x8f0] sm:$0xff] %v3563
        %4177 = vst [vmem:[%s3889 + $0x8f8] sm:$0xff] %v3670
        %4178 = vst [vmem:[%s3889 + $0x900] sm:$0xff] %v3777
        %4179 = vst [vmem:[%s3889 + $0x908] sm:$0xff] %v3884
        %4180 = vst [vmem:[%s3889 + $0x910] sm:$0xff] %v2924
        %4181 = vst [vmem:[%s3889 + $0x918] sm:$0xff] %v3031
        %4182 = vst [vmem:[%s3889 + $0x920] sm:$0xff] %v3138
        %4183 = vst [vmem:[%s3889 + $0x928] sm:$0xff] %v3245
        %4184 = vst [vmem:[%s3889 + $0x930] sm:$0xff] %v3352
        %4185 = vst [vmem:[%s3889 + $0x938] sm:$0xff] %v3459
        %4186 = vst [vmem:[%s3889 + $0x940] sm:$0xff] %v3566
        %4187 = vst [vmem:[%s3889 + $0x948] sm:$0xff] %v3673
        %4188 = vst [vmem:[%s3889 + $0x950] sm:$0xff] %v3780
        %4189 = vst [vmem:[%s3889 + $0x958] sm:$0xff] %v3887
        %4190 = vmatpush.msra.mxu0 0.0
        %4191 = vmatpush.msra.mxu0 0.0
        %4192 = vmatpush.msra.mxu0 0.0
        %4193 = vmatpush.msra.mxu0 0.0
        %4194 = vmatpush.msra.mxu0 0.0
        %4195 = vmatpush.msra.mxu0 0.0
        %4196 = vmatpush.msra.mxu0 0.0
        %4197 = vmatpush.msra.mxu0 0.0
        %4198 = vmatpush.msra.mxu0 0.0
        %4199 = vmatpush.msra.mxu0 0.0
        %4200 = vmatpush.msra.mxu0 0.0
        %4201 = vmatpush.msra.mxu0 0.0
        %4202 = vmatpush.msra.mxu0 0.0
        %4203 = vmatpush.msra.mxu0 0.0
        %4204 = vmatpush.msra.mxu0 %v1012
        %4205 = vmatpush.msra.mxu0 %v1009
        %4206 = vmatmul.f32.gmra.mxu0 %v1360
        %v4207 = vpop.f32.mrf.mxu0
        %v4208 = vadd.f32 0.0, %v4207
        %4209 = vmatmul.f32.gmra.mxu0 %v1363
        %v4210 = vpop.f32.mrf.mxu0
        %v4211 = vadd.f32 0.0, %v4210
        %4212 = vmatmul.f32.gmra.mxu0 %v1366
        %v4213 = vpop.f32.mrf.mxu0
        %v4214 = vadd.f32 0.0, %v4213
        %4215 = vmatmul.f32.gmra.mxu0 %v1369
        %v4216 = vpop.f32.mrf.mxu0
        %v4217 = vadd.f32 0.0, %v4216
        %4218 = vmatmul.f32.gmra.mxu0 %v1372
        %v4219 = vpop.f32.mrf.mxu0
        %v4220 = vadd.f32 0.0, %v4219
        %4221 = vmatmul.f32.gmra.mxu0 %v1375
        %v4222 = vpop.f32.mrf.mxu0
        %v4223 = vadd.f32 0.0, %v4222
        %4224 = vmatmul.f32.gmra.mxu0 %v1378
        %v4225 = vpop.f32.mrf.mxu0
        %v4226 = vadd.f32 0.0, %v4225
        %4227 = vmatmul.f32.gmra.mxu0 %v1381
        %v4228 = vpop.f32.mrf.mxu0
        %v4229 = vadd.f32 0.0, %v4228
        %4230 = vmatmul.f32.gmra.mxu0 %v1384
        %v4231 = vpop.f32.mrf.mxu0
        %v4232 = vadd.f32 0.0, %v4231
        %4233 = vmatmul.f32.gmra.mxu0 %v1387
        %v4234 = vpop.f32.mrf.mxu0
        %v4235 = vadd.f32 0.0, %v4234
        %4236 = vmatmul.f32.gmra.mxu0 %v1390
        %v4237 = vpop.f32.mrf.mxu0
        %v4238 = vadd.f32 0.0, %v4237
        %4239 = vmatmul.f32.gmra.mxu0 %v1393
        %v4240 = vpop.f32.mrf.mxu0
        %v4241 = vadd.f32 0.0, %v4240
        %4242 = vmatmul.f32.gmra.mxu0 %v1396
        %v4243 = vpop.f32.mrf.mxu0
        %v4244 = vadd.f32 0.0, %v4243
        %4245 = vmatmul.f32.gmra.mxu0 %v1399
        %v4246 = vpop.f32.mrf.mxu0
        %v4247 = vadd.f32 0.0, %v4246
        %4248 = vmatmul.f32.gmra.mxu0 %v1402
        %v4249 = vpop.f32.mrf.mxu0
        %v4250 = vadd.f32 0.0, %v4249
        %4251 = vmatmul.f32.gmra.mxu0 %v1405
        %v4252 = vpop.f32.mrf.mxu0
        %v4253 = vadd.f32 0.0, %v4252
        %4254 = vmatmul.f32.gmra.mxu0 %v1408
        %v4255 = vpop.f32.mrf.mxu0
        %v4256 = vadd.f32 0.0, %v4255
        %4257 = vmatmul.f32.gmra.mxu0 %v1411
        %v4258 = vpop.f32.mrf.mxu0
        %v4259 = vadd.f32 0.0, %v4258
        %4260 = vmatmul.f32.gmra.mxu0 %v1414
        %v4261 = vpop.f32.mrf.mxu0
        %v4262 = vadd.f32 0.0, %v4261
        %4263 = vmatmul.f32.gmra.mxu0 %v1417
        %v4264 = vpop.f32.mrf.mxu0
        %v4265 = vadd.f32 0.0, %v4264
        %4266 = vmatmul.f32.gmra.mxu0 %v1420
        %v4267 = vpop.f32.mrf.mxu0
        %v4268 = vadd.f32 0.0, %v4267
        %4269 = vmatmul.f32.gmra.mxu0 %v1423
        %v4270 = vpop.f32.mrf.mxu0
        %v4271 = vadd.f32 0.0, %v4270
        %4272 = vmatmul.f32.gmra.mxu0 %v1426
        %v4273 = vpop.f32.mrf.mxu0
        %v4274 = vadd.f32 0.0, %v4273
        %4275 = vmatmul.f32.gmra.mxu0 %v1429
        %v4276 = vpop.f32.mrf.mxu0
        %v4277 = vadd.f32 0.0, %v4276
        %4278 = vmatmul.f32.gmra.mxu0 %v1432
        %v4279 = vpop.f32.mrf.mxu0
        %v4280 = vadd.f32 0.0, %v4279
        %4281 = vmatmul.f32.gmra.mxu0 %v1435
        %v4282 = vpop.f32.mrf.mxu0
        %v4283 = vadd.f32 0.0, %v4282
        %4284 = vmatmul.f32.gmra.mxu0 %v1438
        %v4285 = vpop.f32.mrf.mxu0
        %v4286 = vadd.f32 0.0, %v4285
        %4287 = vmatmul.f32.gmra.mxu0 %v1441
        %v4288 = vpop.f32.mrf.mxu0
        %v4289 = vadd.f32 0.0, %v4288
        %4290 = vmatmul.f32.gmra.mxu0 %v1444
        %v4291 = vpop.f32.mrf.mxu0
        %v4292 = vadd.f32 0.0, %v4291
        %4293 = vmatmul.f32.gmra.mxu0 %v1447
        %v4294 = vpop.f32.mrf.mxu0
        %v4295 = vadd.f32 0.0, %v4294
        %4296 = vdwg.mxu0
        %4297 = vmatpush.msra.mxu0 0.0
        %4298 = vmatpush.msra.mxu0 0.0
        %4299 = vmatpush.msra.mxu0 0.0
        %4300 = vmatpush.msra.mxu0 0.0
        %4301 = vmatpush.msra.mxu0 0.0
        %4302 = vmatpush.msra.mxu0 0.0
        %4303 = vmatpush.msra.mxu0 0.0
        %4304 = vmatpush.msra.mxu0 0.0
        %4305 = vmatpush.msra.mxu0 0.0
        %4306 = vmatpush.msra.mxu0 0.0
        %4307 = vmatpush.msra.mxu0 0.0
        %4308 = vmatpush.msra.mxu0 0.0
        %4309 = vmatpush.msra.mxu0 0.0
        %4310 = vmatpush.msra.mxu0 0.0
        %4311 = vmatpush.msra.mxu0 %v1047
        %4312 = vmatpush.msra.mxu0 %v1044
        %4313 = vmatmul.f32.gmra.mxu0 %v1360
        %v4314 = vpop.f32.mrf.mxu0
        %v4315 = vadd.f32 0.0, %v4314
        %4316 = vmatmul.f32.gmra.mxu0 %v1363
        %v4317 = vpop.f32.mrf.mxu0
        %v4318 = vadd.f32 0.0, %v4317
        %4319 = vmatmul.f32.gmra.mxu0 %v1366
        %v4320 = vpop.f32.mrf.mxu0
        %v4321 = vadd.f32 0.0, %v4320
        %4322 = vmatmul.f32.gmra.mxu0 %v1369
        %v4323 = vpop.f32.mrf.mxu0
        %v4324 = vadd.f32 0.0, %v4323
        %4325 = vmatmul.f32.gmra.mxu0 %v1372
        %v4326 = vpop.f32.mrf.mxu0
        %v4327 = vadd.f32 0.0, %v4326
        %4328 = vmatmul.f32.gmra.mxu0 %v1375
        %v4329 = vpop.f32.mrf.mxu0
        %v4330 = vadd.f32 0.0, %v4329
        %4331 = vmatmul.f32.gmra.mxu0 %v1378
        %v4332 = vpop.f32.mrf.mxu0
        %v4333 = vadd.f32 0.0, %v4332
        %4334 = vmatmul.f32.gmra.mxu0 %v1381
        %v4335 = vpop.f32.mrf.mxu0
        %v4336 = vadd.f32 0.0, %v4335
        %4337 = vmatmul.f32.gmra.mxu0 %v1384
        %v4338 = vpop.f32.mrf.mxu0
        %v4339 = vadd.f32 0.0, %v4338
        %4340 = vmatmul.f32.gmra.mxu0 %v1387
        %v4341 = vpop.f32.mrf.mxu0
        %v4342 = vadd.f32 0.0, %v4341
        %4343 = vmatmul.f32.gmra.mxu0 %v1390
        %v4344 = vpop.f32.mrf.mxu0
        %v4345 = vadd.f32 0.0, %v4344
        %4346 = vmatmul.f32.gmra.mxu0 %v1393
        %v4347 = vpop.f32.mrf.mxu0
        %v4348 = vadd.f32 0.0, %v4347
        %4349 = vmatmul.f32.gmra.mxu0 %v1396
        %v4350 = vpop.f32.mrf.mxu0
        %v4351 = vadd.f32 0.0, %v4350
        %4352 = vmatmul.f32.gmra.mxu0 %v1399
        %v4353 = vpop.f32.mrf.mxu0
        %v4354 = vadd.f32 0.0, %v4353
        %4355 = vmatmul.f32.gmra.mxu0 %v1402
        %v4356 = vpop.f32.mrf.mxu0
        %v4357 = vadd.f32 0.0, %v4356
        %4358 = vmatmul.f32.gmra.mxu0 %v1405
        %v4359 = vpop.f32.mrf.mxu0
        %v4360 = vadd.f32 0.0, %v4359
        %4361 = vmatmul.f32.gmra.mxu0 %v1408
        %v4362 = vpop.f32.mrf.mxu0
        %v4363 = vadd.f32 0.0, %v4362
        %4364 = vmatmul.f32.gmra.mxu0 %v1411
        %v4365 = vpop.f32.mrf.mxu0
        %v4366 = vadd.f32 0.0, %v4365
        %4367 = vmatmul.f32.gmra.mxu0 %v1414
        %v4368 = vpop.f32.mrf.mxu0
        %v4369 = vadd.f32 0.0, %v4368
        %4370 = vmatmul.f32.gmra.mxu0 %v1417
        %v4371 = vpop.f32.mrf.mxu0
        %v4372 = vadd.f32 0.0, %v4371
        %4373 = vmatmul.f32.gmra.mxu0 %v1420
        %v4374 = vpop.f32.mrf.mxu0
        %v4375 = vadd.f32 0.0, %v4374
        %4376 = vmatmul.f32.gmra.mxu0 %v1423
        %v4377 = vpop.f32.mrf.mxu0
        %v4378 = vadd.f32 0.0, %v4377
        %4379 = vmatmul.f32.gmra.mxu0 %v1426
        %v4380 = vpop.f32.mrf.mxu0
        %v4381 = vadd.f32 0.0, %v4380
        %4382 = vmatmul.f32.gmra.mxu0 %v1429
        %v4383 = vpop.f32.mrf.mxu0
        %v4384 = vadd.f32 0.0, %v4383
        %4385 = vmatmul.f32.gmra.mxu0 %v1432
        %v4386 = vpop.f32.mrf.mxu0
        %v4387 = vadd.f32 0.0, %v4386
        %4388 = vmatmul.f32.gmra.mxu0 %v1435
        %v4389 = vpop.f32.mrf.mxu0
        %v4390 = vadd.f32 0.0, %v4389
        %4391 = vmatmul.f32.gmra.mxu0 %v1438
        %v4392 = vpop.f32.mrf.mxu0
        %v4393 = vadd.f32 0.0, %v4392
        %4394 = vmatmul.f32.gmra.mxu0 %v1441
        %v4395 = vpop.f32.mrf.mxu0
        %v4396 = vadd.f32 0.0, %v4395
        %4397 = vmatmul.f32.gmra.mxu0 %v1444
        %v4398 = vpop.f32.mrf.mxu0
        %v4399 = vadd.f32 0.0, %v4398
        %4400 = vmatmul.f32.gmra.mxu0 %v1447
        %v4401 = vpop.f32.mrf.mxu0
        %v4402 = vadd.f32 0.0, %v4401
        %4403 = vdwg.mxu0
        %4404 = vmatpush.msra.mxu0 0.0
        %4405 = vmatpush.msra.mxu0 0.0
        %4406 = vmatpush.msra.mxu0 0.0
        %4407 = vmatpush.msra.mxu0 0.0
        %4408 = vmatpush.msra.mxu0 0.0
        %4409 = vmatpush.msra.mxu0 0.0
        %4410 = vmatpush.msra.mxu0 0.0
        %4411 = vmatpush.msra.mxu0 0.0
        %4412 = vmatpush.msra.mxu0 0.0
        %4413 = vmatpush.msra.mxu0 0.0
        %4414 = vmatpush.msra.mxu0 0.0
        %4415 = vmatpush.msra.mxu0 0.0
        %4416 = vmatpush.msra.mxu0 0.0
        %4417 = vmatpush.msra.mxu0 0.0
        %4418 = vmatpush.msra.mxu0 %v1082
        %4419 = vmatpush.msra.mxu0 %v1079
        %4420 = vmatmul.f32.gmra.mxu0 %v1360
        %v4421 = vpop.f32.mrf.mxu0
        %v4422 = vadd.f32 0.0, %v4421
        %4423 = vmatmul.f32.gmra.mxu0 %v1363
        %v4424 = vpop.f32.mrf.mxu0
        %v4425 = vadd.f32 0.0, %v4424
        %4426 = vmatmul.f32.gmra.mxu0 %v1366
        %v4427 = vpop.f32.mrf.mxu0
        %v4428 = vadd.f32 0.0, %v4427
        %4429 = vmatmul.f32.gmra.mxu0 %v1369
        %v4430 = vpop.f32.mrf.mxu0
        %v4431 = vadd.f32 0.0, %v4430
        %4432 = vmatmul.f32.gmra.mxu0 %v1372
        %v4433 = vpop.f32.mrf.mxu0
        %v4434 = vadd.f32 0.0, %v4433
        %4435 = vmatmul.f32.gmra.mxu0 %v1375
        %v4436 = vpop.f32.mrf.mxu0
        %v4437 = vadd.f32 0.0, %v4436
        %4438 = vmatmul.f32.gmra.mxu0 %v1378
        %v4439 = vpop.f32.mrf.mxu0
        %v4440 = vadd.f32 0.0, %v4439
        %4441 = vmatmul.f32.gmra.mxu0 %v1381
        %v4442 = vpop.f32.mrf.mxu0
        %v4443 = vadd.f32 0.0, %v4442
        %4444 = vmatmul.f32.gmra.mxu0 %v1384
        %v4445 = vpop.f32.mrf.mxu0
        %v4446 = vadd.f32 0.0, %v4445
        %4447 = vmatmul.f32.gmra.mxu0 %v1387
        %v4448 = vpop.f32.mrf.mxu0
        %v4449 = vadd.f32 0.0, %v4448
        %4450 = vmatmul.f32.gmra.mxu0 %v1390
        %v4451 = vpop.f32.mrf.mxu0
        %v4452 = vadd.f32 0.0, %v4451
        %4453 = vmatmul.f32.gmra.mxu0 %v1393
        %v4454 = vpop.f32.mrf.mxu0
        %v4455 = vadd.f32 0.0, %v4454
        %4456 = vmatmul.f32.gmra.mxu0 %v1396
        %v4457 = vpop.f32.mrf.mxu0
        %v4458 = vadd.f32 0.0, %v4457
        %4459 = vmatmul.f32.gmra.mxu0 %v1399
        %v4460 = vpop.f32.mrf.mxu0
        %v4461 = vadd.f32 0.0, %v4460
        %4462 = vmatmul.f32.gmra.mxu0 %v1402
        %v4463 = vpop.f32.mrf.mxu0
        %v4464 = vadd.f32 0.0, %v4463
        %4465 = vmatmul.f32.gmra.mxu0 %v1405
        %v4466 = vpop.f32.mrf.mxu0
        %v4467 = vadd.f32 0.0, %v4466
        %4468 = vmatmul.f32.gmra.mxu0 %v1408
        %v4469 = vpop.f32.mrf.mxu0
        %v4470 = vadd.f32 0.0, %v4469
        %4471 = vmatmul.f32.gmra.mxu0 %v1411
        %v4472 = vpop.f32.mrf.mxu0
        %v4473 = vadd.f32 0.0, %v4472
        %4474 = vmatmul.f32.gmra.mxu0 %v1414
        %v4475 = vpop.f32.mrf.mxu0
        %v4476 = vadd.f32 0.0, %v4475
        %4477 = vmatmul.f32.gmra.mxu0 %v1417
        %v4478 = vpop.f32.mrf.mxu0
        %v4479 = vadd.f32 0.0, %v4478
        %4480 = vmatmul.f32.gmra.mxu0 %v1420
        %v4481 = vpop.f32.mrf.mxu0
        %v4482 = vadd.f32 0.0, %v4481
        %4483 = vmatmul.f32.gmra.mxu0 %v1423
        %v4484 = vpop.f32.mrf.mxu0
        %v4485 = vadd.f32 0.0, %v4484
        %4486 = vmatmul.f32.gmra.mxu0 %v1426
        %v4487 = vpop.f32.mrf.mxu0
        %v4488 = vadd.f32 0.0, %v4487
        %4489 = vmatmul.f32.gmra.mxu0 %v1429
        %v4490 = vpop.f32.mrf.mxu0
        %v4491 = vadd.f32 0.0, %v4490
        %4492 = vmatmul.f32.gmra.mxu0 %v1432
        %v4493 = vpop.f32.mrf.mxu0
        %v4494 = vadd.f32 0.0, %v4493
        %4495 = vmatmul.f32.gmra.mxu0 %v1435
        %v4496 = vpop.f32.mrf.mxu0
        %v4497 = vadd.f32 0.0, %v4496
        %4498 = vmatmul.f32.gmra.mxu0 %v1438
        %v4499 = vpop.f32.mrf.mxu0
        %v4500 = vadd.f32 0.0, %v4499
        %4501 = vmatmul.f32.gmra.mxu0 %v1441
        %v4502 = vpop.f32.mrf.mxu0
        %v4503 = vadd.f32 0.0, %v4502
        %4504 = vmatmul.f32.gmra.mxu0 %v1444
        %v4505 = vpop.f32.mrf.mxu0
        %v4506 = vadd.f32 0.0, %v4505
        %4507 = vmatmul.f32.gmra.mxu0 %v1447
        %v4508 = vpop.f32.mrf.mxu0
        %v4509 = vadd.f32 0.0, %v4508
        %4510 = vdwg.mxu0
        %4511 = vmatpush.msra.mxu0 0.0
        %4512 = vmatpush.msra.mxu0 0.0
        %4513 = vmatpush.msra.mxu0 0.0
        %4514 = vmatpush.msra.mxu0 0.0
        %4515 = vmatpush.msra.mxu0 0.0
        %4516 = vmatpush.msra.mxu0 0.0
        %4517 = vmatpush.msra.mxu0 0.0
        %4518 = vmatpush.msra.mxu0 0.0
        %4519 = vmatpush.msra.mxu0 0.0
        %4520 = vmatpush.msra.mxu0 0.0
        %4521 = vmatpush.msra.mxu0 0.0
        %4522 = vmatpush.msra.mxu0 0.0
        %4523 = vmatpush.msra.mxu0 0.0
        %4524 = vmatpush.msra.mxu0 0.0
        %4525 = vmatpush.msra.mxu0 %v1117
        %4526 = vmatpush.msra.mxu0 %v1114
        %4527 = vmatmul.f32.gmra.mxu0 %v1360
        %v4528 = vpop.f32.mrf.mxu0
        %v4529 = vadd.f32 0.0, %v4528
        %4530 = vmatmul.f32.gmra.mxu0 %v1363
        %v4531 = vpop.f32.mrf.mxu0
        %v4532 = vadd.f32 0.0, %v4531
        %4533 = vmatmul.f32.gmra.mxu0 %v1366
        %v4534 = vpop.f32.mrf.mxu0
        %v4535 = vadd.f32 0.0, %v4534
        %4536 = vmatmul.f32.gmra.mxu0 %v1369
        %v4537 = vpop.f32.mrf.mxu0
        %v4538 = vadd.f32 0.0, %v4537
        %4539 = vmatmul.f32.gmra.mxu0 %v1372
        %v4540 = vpop.f32.mrf.mxu0
        %v4541 = vadd.f32 0.0, %v4540
        %4542 = vmatmul.f32.gmra.mxu0 %v1375
        %v4543 = vpop.f32.mrf.mxu0
        %v4544 = vadd.f32 0.0, %v4543
        %4545 = vmatmul.f32.gmra.mxu0 %v1378
        %v4546 = vpop.f32.mrf.mxu0
        %v4547 = vadd.f32 0.0, %v4546
        %4548 = vmatmul.f32.gmra.mxu0 %v1381
        %v4549 = vpop.f32.mrf.mxu0
        %v4550 = vadd.f32 0.0, %v4549
        %4551 = vmatmul.f32.gmra.mxu0 %v1384
        %v4552 = vpop.f32.mrf.mxu0
        %v4553 = vadd.f32 0.0, %v4552
        %4554 = vmatmul.f32.gmra.mxu0 %v1387
        %v4555 = vpop.f32.mrf.mxu0
        %v4556 = vadd.f32 0.0, %v4555
        %4557 = vmatmul.f32.gmra.mxu0 %v1390
        %v4558 = vpop.f32.mrf.mxu0
        %v4559 = vadd.f32 0.0, %v4558
        %4560 = vmatmul.f32.gmra.mxu0 %v1393
        %v4561 = vpop.f32.mrf.mxu0
        %v4562 = vadd.f32 0.0, %v4561
        %4563 = vmatmul.f32.gmra.mxu0 %v1396
        %v4564 = vpop.f32.mrf.mxu0
        %v4565 = vadd.f32 0.0, %v4564
        %4566 = vmatmul.f32.gmra.mxu0 %v1399
        %v4567 = vpop.f32.mrf.mxu0
        %v4568 = vadd.f32 0.0, %v4567
        %4569 = vmatmul.f32.gmra.mxu0 %v1402
        %v4570 = vpop.f32.mrf.mxu0
        %v4571 = vadd.f32 0.0, %v4570
        %4572 = vmatmul.f32.gmra.mxu0 %v1405
        %v4573 = vpop.f32.mrf.mxu0
        %v4574 = vadd.f32 0.0, %v4573
        %4575 = vmatmul.f32.gmra.mxu0 %v1408
        %v4576 = vpop.f32.mrf.mxu0
        %v4577 = vadd.f32 0.0, %v4576
        %4578 = vmatmul.f32.gmra.mxu0 %v1411
        %v4579 = vpop.f32.mrf.mxu0
        %v4580 = vadd.f32 0.0, %v4579
        %4581 = vmatmul.f32.gmra.mxu0 %v1414
        %v4582 = vpop.f32.mrf.mxu0
        %v4583 = vadd.f32 0.0, %v4582
        %4584 = vmatmul.f32.gmra.mxu0 %v1417
        %v4585 = vpop.f32.mrf.mxu0
        %v4586 = vadd.f32 0.0, %v4585
        %4587 = vmatmul.f32.gmra.mxu0 %v1420
        %v4588 = vpop.f32.mrf.mxu0
        %v4589 = vadd.f32 0.0, %v4588
        %4590 = vmatmul.f32.gmra.mxu0 %v1423
        %v4591 = vpop.f32.mrf.mxu0
        %v4592 = vadd.f32 0.0, %v4591
        %4593 = vmatmul.f32.gmra.mxu0 %v1426
        %v4594 = vpop.f32.mrf.mxu0
        %v4595 = vadd.f32 0.0, %v4594
        %4596 = vmatmul.f32.gmra.mxu0 %v1429
        %v4597 = vpop.f32.mrf.mxu0
        %v4598 = vadd.f32 0.0, %v4597
        %4599 = vmatmul.f32.gmra.mxu0 %v1432
        %v4600 = vpop.f32.mrf.mxu0
        %v4601 = vadd.f32 0.0, %v4600
        %4602 = vmatmul.f32.gmra.mxu0 %v1435
        %v4603 = vpop.f32.mrf.mxu0
        %v4604 = vadd.f32 0.0, %v4603
        %4605 = vmatmul.f32.gmra.mxu0 %v1438
        %v4606 = vpop.f32.mrf.mxu0
        %v4607 = vadd.f32 0.0, %v4606
        %4608 = vmatmul.f32.gmra.mxu0 %v1441
        %v4609 = vpop.f32.mrf.mxu0
        %v4610 = vadd.f32 0.0, %v4609
        %4611 = vmatmul.f32.gmra.mxu0 %v1444
        %v4612 = vpop.f32.mrf.mxu0
        %v4613 = vadd.f32 0.0, %v4612
        %4614 = vmatmul.f32.gmra.mxu0 %v1447
        %v4615 = vpop.f32.mrf.mxu0
        %v4616 = vadd.f32 0.0, %v4615
        %4617 = vdwg.mxu0
        %4618 = vmatpush.msra.mxu0 0.0
        %4619 = vmatpush.msra.mxu0 0.0
        %4620 = vmatpush.msra.mxu0 0.0
        %4621 = vmatpush.msra.mxu0 0.0
        %4622 = vmatpush.msra.mxu0 0.0
        %4623 = vmatpush.msra.mxu0 0.0
        %4624 = vmatpush.msra.mxu0 0.0
        %4625 = vmatpush.msra.mxu0 0.0
        %4626 = vmatpush.msra.mxu0 0.0
        %4627 = vmatpush.msra.mxu0 0.0
        %4628 = vmatpush.msra.mxu0 0.0
        %4629 = vmatpush.msra.mxu0 0.0
        %4630 = vmatpush.msra.mxu0 0.0
        %4631 = vmatpush.msra.mxu0 0.0
        %4632 = vmatpush.msra.mxu0 %v1152
        %4633 = vmatpush.msra.mxu0 %v1149
        %4634 = vmatmul.f32.gmra.mxu0 %v1360
        %v4635 = vpop.f32.mrf.mxu0
        %v4636 = vadd.f32 0.0, %v4635
        %4637 = vmatmul.f32.gmra.mxu0 %v1363
        %v4638 = vpop.f32.mrf.mxu0
        %v4639 = vadd.f32 0.0, %v4638
        %4640 = vmatmul.f32.gmra.mxu0 %v1366
        %v4641 = vpop.f32.mrf.mxu0
        %v4642 = vadd.f32 0.0, %v4641
        %4643 = vmatmul.f32.gmra.mxu0 %v1369
        %v4644 = vpop.f32.mrf.mxu0
        %v4645 = vadd.f32 0.0, %v4644
        %4646 = vmatmul.f32.gmra.mxu0 %v1372
        %v4647 = vpop.f32.mrf.mxu0
        %v4648 = vadd.f32 0.0, %v4647
        %4649 = vmatmul.f32.gmra.mxu0 %v1375
        %v4650 = vpop.f32.mrf.mxu0
        %v4651 = vadd.f32 0.0, %v4650
        %4652 = vmatmul.f32.gmra.mxu0 %v1378
        %v4653 = vpop.f32.mrf.mxu0
        %v4654 = vadd.f32 0.0, %v4653
        %4655 = vmatmul.f32.gmra.mxu0 %v1381
        %v4656 = vpop.f32.mrf.mxu0
        %v4657 = vadd.f32 0.0, %v4656
        %4658 = vmatmul.f32.gmra.mxu0 %v1384
        %v4659 = vpop.f32.mrf.mxu0
        %v4660 = vadd.f32 0.0, %v4659
        %4661 = vmatmul.f32.gmra.mxu0 %v1387
        %v4662 = vpop.f32.mrf.mxu0
        %v4663 = vadd.f32 0.0, %v4662
        %4664 = vmatmul.f32.gmra.mxu0 %v1390
        %v4665 = vpop.f32.mrf.mxu0
        %v4666 = vadd.f32 0.0, %v4665
        %4667 = vmatmul.f32.gmra.mxu0 %v1393
        %v4668 = vpop.f32.mrf.mxu0
        %v4669 = vadd.f32 0.0, %v4668
        %4670 = vmatmul.f32.gmra.mxu0 %v1396
        %v4671 = vpop.f32.mrf.mxu0
        %v4672 = vadd.f32 0.0, %v4671
        %4673 = vmatmul.f32.gmra.mxu0 %v1399
        %v4674 = vpop.f32.mrf.mxu0
        %v4675 = vadd.f32 0.0, %v4674
        %4676 = vmatmul.f32.gmra.mxu0 %v1402
        %v4677 = vpop.f32.mrf.mxu0
        %v4678 = vadd.f32 0.0, %v4677
        %4679 = vmatmul.f32.gmra.mxu0 %v1405
        %v4680 = vpop.f32.mrf.mxu0
        %v4681 = vadd.f32 0.0, %v4680
        %4682 = vmatmul.f32.gmra.mxu0 %v1408
        %v4683 = vpop.f32.mrf.mxu0
        %v4684 = vadd.f32 0.0, %v4683
        %4685 = vmatmul.f32.gmra.mxu0 %v1411
        %v4686 = vpop.f32.mrf.mxu0
        %v4687 = vadd.f32 0.0, %v4686
        %4688 = vmatmul.f32.gmra.mxu0 %v1414
        %v4689 = vpop.f32.mrf.mxu0
        %v4690 = vadd.f32 0.0, %v4689
        %4691 = vmatmul.f32.gmra.mxu0 %v1417
        %v4692 = vpop.f32.mrf.mxu0
        %v4693 = vadd.f32 0.0, %v4692
        %4694 = vmatmul.f32.gmra.mxu0 %v1420
        %v4695 = vpop.f32.mrf.mxu0
        %v4696 = vadd.f32 0.0, %v4695
        %4697 = vmatmul.f32.gmra.mxu0 %v1423
        %v4698 = vpop.f32.mrf.mxu0
        %v4699 = vadd.f32 0.0, %v4698
        %4700 = vmatmul.f32.gmra.mxu0 %v1426
        %v4701 = vpop.f32.mrf.mxu0
        %v4702 = vadd.f32 0.0, %v4701
        %4703 = vmatmul.f32.gmra.mxu0 %v1429
        %v4704 = vpop.f32.mrf.mxu0
        %v4705 = vadd.f32 0.0, %v4704
        %4706 = vmatmul.f32.gmra.mxu0 %v1432
        %v4707 = vpop.f32.mrf.mxu0
        %v4708 = vadd.f32 0.0, %v4707
        %4709 = vmatmul.f32.gmra.mxu0 %v1435
        %v4710 = vpop.f32.mrf.mxu0
        %v4711 = vadd.f32 0.0, %v4710
        %4712 = vmatmul.f32.gmra.mxu0 %v1438
        %v4713 = vpop.f32.mrf.mxu0
        %v4714 = vadd.f32 0.0, %v4713
        %4715 = vmatmul.f32.gmra.mxu0 %v1441
        %v4716 = vpop.f32.mrf.mxu0
        %v4717 = vadd.f32 0.0, %v4716
        %4718 = vmatmul.f32.gmra.mxu0 %v1444
        %v4719 = vpop.f32.mrf.mxu0
        %v4720 = vadd.f32 0.0, %v4719
        %4721 = vmatmul.f32.gmra.mxu0 %v1447
        %v4722 = vpop.f32.mrf.mxu0
        %v4723 = vadd.f32 0.0, %v4722
        %4724 = vdwg.mxu0
        %4725 = vmatpush.msra.mxu0 0.0
        %4726 = vmatpush.msra.mxu0 0.0
        %4727 = vmatpush.msra.mxu0 0.0
        %4728 = vmatpush.msra.mxu0 0.0
        %4729 = vmatpush.msra.mxu0 0.0
        %4730 = vmatpush.msra.mxu0 0.0
        %4731 = vmatpush.msra.mxu0 0.0
        %4732 = vmatpush.msra.mxu0 0.0
        %4733 = vmatpush.msra.mxu0 0.0
        %4734 = vmatpush.msra.mxu0 0.0
        %4735 = vmatpush.msra.mxu0 0.0
        %4736 = vmatpush.msra.mxu0 0.0
        %4737 = vmatpush.msra.mxu0 0.0
        %4738 = vmatpush.msra.mxu0 0.0
        %4739 = vmatpush.msra.mxu0 %v1187
        %4740 = vmatpush.msra.mxu0 %v1184
        %4741 = vmatmul.f32.gmra.mxu0 %v1360
        %v4742 = vpop.f32.mrf.mxu0
        %v4743 = vadd.f32 0.0, %v4742
        %4744 = vmatmul.f32.gmra.mxu0 %v1363
        %v4745 = vpop.f32.mrf.mxu0
        %v4746 = vadd.f32 0.0, %v4745
        %4747 = vmatmul.f32.gmra.mxu0 %v1366
        %v4748 = vpop.f32.mrf.mxu0
        %v4749 = vadd.f32 0.0, %v4748
        %4750 = vmatmul.f32.gmra.mxu0 %v1369
        %v4751 = vpop.f32.mrf.mxu0
        %v4752 = vadd.f32 0.0, %v4751
        %4753 = vmatmul.f32.gmra.mxu0 %v1372
        %v4754 = vpop.f32.mrf.mxu0
        %v4755 = vadd.f32 0.0, %v4754
        %4756 = vmatmul.f32.gmra.mxu0 %v1375
        %v4757 = vpop.f32.mrf.mxu0
        %v4758 = vadd.f32 0.0, %v4757
        %4759 = vmatmul.f32.gmra.mxu0 %v1378
        %v4760 = vpop.f32.mrf.mxu0
        %v4761 = vadd.f32 0.0, %v4760
        %4762 = vmatmul.f32.gmra.mxu0 %v1381
        %v4763 = vpop.f32.mrf.mxu0
        %v4764 = vadd.f32 0.0, %v4763
        %4765 = vmatmul.f32.gmra.mxu0 %v1384
        %v4766 = vpop.f32.mrf.mxu0
        %v4767 = vadd.f32 0.0, %v4766
        %4768 = vmatmul.f32.gmra.mxu0 %v1387
        %v4769 = vpop.f32.mrf.mxu0
        %v4770 = vadd.f32 0.0, %v4769
        %4771 = vmatmul.f32.gmra.mxu0 %v1390
        %v4772 = vpop.f32.mrf.mxu0
        %v4773 = vadd.f32 0.0, %v4772
        %4774 = vmatmul.f32.gmra.mxu0 %v1393
        %v4775 = vpop.f32.mrf.mxu0
        %v4776 = vadd.f32 0.0, %v4775
        %4777 = vmatmul.f32.gmra.mxu0 %v1396
        %v4778 = vpop.f32.mrf.mxu0
        %v4779 = vadd.f32 0.0, %v4778
        %4780 = vmatmul.f32.gmra.mxu0 %v1399
        %v4781 = vpop.f32.mrf.mxu0
        %v4782 = vadd.f32 0.0, %v4781
        %4783 = vmatmul.f32.gmra.mxu0 %v1402
        %v4784 = vpop.f32.mrf.mxu0
        %v4785 = vadd.f32 0.0, %v4784
        %4786 = vmatmul.f32.gmra.mxu0 %v1405
        %v4787 = vpop.f32.mrf.mxu0
        %v4788 = vadd.f32 0.0, %v4787
        %4789 = vmatmul.f32.gmra.mxu0 %v1408
        %v4790 = vpop.f32.mrf.mxu0
        %v4791 = vadd.f32 0.0, %v4790
        %4792 = vmatmul.f32.gmra.mxu0 %v1411
        %v4793 = vpop.f32.mrf.mxu0
        %v4794 = vadd.f32 0.0, %v4793
        %4795 = vmatmul.f32.gmra.mxu0 %v1414
        %v4796 = vpop.f32.mrf.mxu0
        %v4797 = vadd.f32 0.0, %v4796
        %4798 = vmatmul.f32.gmra.mxu0 %v1417
        %v4799 = vpop.f32.mrf.mxu0
        %v4800 = vadd.f32 0.0, %v4799
        %4801 = vmatmul.f32.gmra.mxu0 %v1420
        %v4802 = vpop.f32.mrf.mxu0
        %v4803 = vadd.f32 0.0, %v4802
        %4804 = vmatmul.f32.gmra.mxu0 %v1423
        %v4805 = vpop.f32.mrf.mxu0
        %v4806 = vadd.f32 0.0, %v4805
        %4807 = vmatmul.f32.gmra.mxu0 %v1426
        %v4808 = vpop.f32.mrf.mxu0
        %v4809 = vadd.f32 0.0, %v4808
        %4810 = vmatmul.f32.gmra.mxu0 %v1429
        %v4811 = vpop.f32.mrf.mxu0
        %v4812 = vadd.f32 0.0, %v4811
        %4813 = vmatmul.f32.gmra.mxu0 %v1432
        %v4814 = vpop.f32.mrf.mxu0
        %v4815 = vadd.f32 0.0, %v4814
        %4816 = vmatmul.f32.gmra.mxu0 %v1435
        %v4817 = vpop.f32.mrf.mxu0
        %v4818 = vadd.f32 0.0, %v4817
        %4819 = vmatmul.f32.gmra.mxu0 %v1438
        %v4820 = vpop.f32.mrf.mxu0
        %v4821 = vadd.f32 0.0, %v4820
        %4822 = vmatmul.f32.gmra.mxu0 %v1441
        %v4823 = vpop.f32.mrf.mxu0
        %v4824 = vadd.f32 0.0, %v4823
        %4825 = vmatmul.f32.gmra.mxu0 %v1444
        %v4826 = vpop.f32.mrf.mxu0
        %v4827 = vadd.f32 0.0, %v4826
        %4828 = vmatmul.f32.gmra.mxu0 %v1447
        %v4829 = vpop.f32.mrf.mxu0
        %v4830 = vadd.f32 0.0, %v4829
        %4831 = vdwg.mxu0
        %4832 = vmatpush.msra.mxu0 0.0
        %4833 = vmatpush.msra.mxu0 0.0
        %4834 = vmatpush.msra.mxu0 0.0
        %4835 = vmatpush.msra.mxu0 0.0
        %4836 = vmatpush.msra.mxu0 0.0
        %4837 = vmatpush.msra.mxu0 0.0
        %4838 = vmatpush.msra.mxu0 0.0
        %4839 = vmatpush.msra.mxu0 0.0
        %4840 = vmatpush.msra.mxu0 0.0
        %4841 = vmatpush.msra.mxu0 0.0
        %4842 = vmatpush.msra.mxu0 0.0
        %4843 = vmatpush.msra.mxu0 0.0
        %4844 = vmatpush.msra.mxu0 0.0
        %4845 = vmatpush.msra.mxu0 0.0
        %4846 = vmatpush.msra.mxu0 %v1222
        %4847 = vmatpush.msra.mxu0 %v1219
        %4848 = vmatmul.f32.gmra.mxu0 %v1360
        %v4849 = vpop.f32.mrf.mxu0
        %v4850 = vadd.f32 0.0, %v4849
        %4851 = vmatmul.f32.gmra.mxu0 %v1363
        %v4852 = vpop.f32.mrf.mxu0
        %v4853 = vadd.f32 0.0, %v4852
        %4854 = vmatmul.f32.gmra.mxu0 %v1366
        %v4855 = vpop.f32.mrf.mxu0
        %v4856 = vadd.f32 0.0, %v4855
        %4857 = vmatmul.f32.gmra.mxu0 %v1369
        %v4858 = vpop.f32.mrf.mxu0
        %v4859 = vadd.f32 0.0, %v4858
        %4860 = vmatmul.f32.gmra.mxu0 %v1372
        %v4861 = vpop.f32.mrf.mxu0
        %v4862 = vadd.f32 0.0, %v4861
        %4863 = vmatmul.f32.gmra.mxu0 %v1375
        %v4864 = vpop.f32.mrf.mxu0
        %v4865 = vadd.f32 0.0, %v4864
        %4866 = vmatmul.f32.gmra.mxu0 %v1378
        %v4867 = vpop.f32.mrf.mxu0
        %v4868 = vadd.f32 0.0, %v4867
        %4869 = vmatmul.f32.gmra.mxu0 %v1381
        %v4870 = vpop.f32.mrf.mxu0
        %v4871 = vadd.f32 0.0, %v4870
        %4872 = vmatmul.f32.gmra.mxu0 %v1384
        %v4873 = vpop.f32.mrf.mxu0
        %v4874 = vadd.f32 0.0, %v4873
        %4875 = vmatmul.f32.gmra.mxu0 %v1387
        %v4876 = vpop.f32.mrf.mxu0
        %v4877 = vadd.f32 0.0, %v4876
        %4878 = vmatmul.f32.gmra.mxu0 %v1390
        %v4879 = vpop.f32.mrf.mxu0
        %v4880 = vadd.f32 0.0, %v4879
        %4881 = vmatmul.f32.gmra.mxu0 %v1393
        %v4882 = vpop.f32.mrf.mxu0
        %v4883 = vadd.f32 0.0, %v4882
        %4884 = vmatmul.f32.gmra.mxu0 %v1396
        %v4885 = vpop.f32.mrf.mxu0
        %v4886 = vadd.f32 0.0, %v4885
        %4887 = vmatmul.f32.gmra.mxu0 %v1399
        %v4888 = vpop.f32.mrf.mxu0
        %v4889 = vadd.f32 0.0, %v4888
        %4890 = vmatmul.f32.gmra.mxu0 %v1402
        %v4891 = vpop.f32.mrf.mxu0
        %v4892 = vadd.f32 0.0, %v4891
        %4893 = vmatmul.f32.gmra.mxu0 %v1405
        %v4894 = vpop.f32.mrf.mxu0
        %v4895 = vadd.f32 0.0, %v4894
        %4896 = vmatmul.f32.gmra.mxu0 %v1408
        %v4897 = vpop.f32.mrf.mxu0
        %v4898 = vadd.f32 0.0, %v4897
        %4899 = vmatmul.f32.gmra.mxu0 %v1411
        %v4900 = vpop.f32.mrf.mxu0
        %v4901 = vadd.f32 0.0, %v4900
        %4902 = vmatmul.f32.gmra.mxu0 %v1414
        %v4903 = vpop.f32.mrf.mxu0
        %v4904 = vadd.f32 0.0, %v4903
        %4905 = vmatmul.f32.gmra.mxu0 %v1417
        %v4906 = vpop.f32.mrf.mxu0
        %v4907 = vadd.f32 0.0, %v4906
        %4908 = vmatmul.f32.gmra.mxu0 %v1420
        %v4909 = vpop.f32.mrf.mxu0
        %v4910 = vadd.f32 0.0, %v4909
        %4911 = vmatmul.f32.gmra.mxu0 %v1423
        %v4912 = vpop.f32.mrf.mxu0
        %v4913 = vadd.f32 0.0, %v4912
        %4914 = vmatmul.f32.gmra.mxu0 %v1426
        %v4915 = vpop.f32.mrf.mxu0
        %v4916 = vadd.f32 0.0, %v4915
        %4917 = vmatmul.f32.gmra.mxu0 %v1429
        %v4918 = vpop.f32.mrf.mxu0
        %v4919 = vadd.f32 0.0, %v4918
        %4920 = vmatmul.f32.gmra.mxu0 %v1432
        %v4921 = vpop.f32.mrf.mxu0
        %v4922 = vadd.f32 0.0, %v4921
        %4923 = vmatmul.f32.gmra.mxu0 %v1435
        %v4924 = vpop.f32.mrf.mxu0
        %v4925 = vadd.f32 0.0, %v4924
        %4926 = vmatmul.f32.gmra.mxu0 %v1438
        %v4927 = vpop.f32.mrf.mxu0
        %v4928 = vadd.f32 0.0, %v4927
        %4929 = vmatmul.f32.gmra.mxu0 %v1441
        %v4930 = vpop.f32.mrf.mxu0
        %v4931 = vadd.f32 0.0, %v4930
        %4932 = vmatmul.f32.gmra.mxu0 %v1444
        %v4933 = vpop.f32.mrf.mxu0
        %v4934 = vadd.f32 0.0, %v4933
        %4935 = vmatmul.f32.gmra.mxu0 %v1447
        %v4936 = vpop.f32.mrf.mxu0
        %v4937 = vadd.f32 0.0, %v4936
        %4938 = vdwg.mxu0
        %4939 = vmatpush.msra.mxu0 0.0
        %4940 = vmatpush.msra.mxu0 0.0
        %4941 = vmatpush.msra.mxu0 0.0
        %4942 = vmatpush.msra.mxu0 0.0
        %4943 = vmatpush.msra.mxu0 0.0
        %4944 = vmatpush.msra.mxu0 0.0
        %4945 = vmatpush.msra.mxu0 0.0
        %4946 = vmatpush.msra.mxu0 0.0
        %4947 = vmatpush.msra.mxu0 0.0
        %4948 = vmatpush.msra.mxu0 0.0
        %4949 = vmatpush.msra.mxu0 0.0
        %4950 = vmatpush.msra.mxu0 0.0
        %4951 = vmatpush.msra.mxu0 0.0
        %4952 = vmatpush.msra.mxu0 0.0
        %4953 = vmatpush.msra.mxu0 %v1257
        %4954 = vmatpush.msra.mxu0 %v1254
        %4955 = vmatmul.f32.gmra.mxu0 %v1360
        %v4956 = vpop.f32.mrf.mxu0
        %v4957 = vadd.f32 0.0, %v4956
        %4958 = vmatmul.f32.gmra.mxu0 %v1363
        %v4959 = vpop.f32.mrf.mxu0
        %v4960 = vadd.f32 0.0, %v4959
        %4961 = vmatmul.f32.gmra.mxu0 %v1366
        %v4962 = vpop.f32.mrf.mxu0
        %v4963 = vadd.f32 0.0, %v4962
        %4964 = vmatmul.f32.gmra.mxu0 %v1369
        %v4965 = vpop.f32.mrf.mxu0
        %v4966 = vadd.f32 0.0, %v4965
        %4967 = vmatmul.f32.gmra.mxu0 %v1372
        %v4968 = vpop.f32.mrf.mxu0
        %v4969 = vadd.f32 0.0, %v4968
        %4970 = vmatmul.f32.gmra.mxu0 %v1375
        %v4971 = vpop.f32.mrf.mxu0
        %v4972 = vadd.f32 0.0, %v4971
        %4973 = vmatmul.f32.gmra.mxu0 %v1378
        %v4974 = vpop.f32.mrf.mxu0
        %v4975 = vadd.f32 0.0, %v4974
        %4976 = vmatmul.f32.gmra.mxu0 %v1381
        %v4977 = vpop.f32.mrf.mxu0
        %v4978 = vadd.f32 0.0, %v4977
        %4979 = vmatmul.f32.gmra.mxu0 %v1384
        %v4980 = vpop.f32.mrf.mxu0
        %v4981 = vadd.f32 0.0, %v4980
        %4982 = vmatmul.f32.gmra.mxu0 %v1387
        %v4983 = vpop.f32.mrf.mxu0
        %v4984 = vadd.f32 0.0, %v4983
        %4985 = vmatmul.f32.gmra.mxu0 %v1390
        %v4986 = vpop.f32.mrf.mxu0
        %v4987 = vadd.f32 0.0, %v4986
        %4988 = vmatmul.f32.gmra.mxu0 %v1393
        %v4989 = vpop.f32.mrf.mxu0
        %v4990 = vadd.f32 0.0, %v4989
        %4991 = vmatmul.f32.gmra.mxu0 %v1396
        %v4992 = vpop.f32.mrf.mxu0
        %v4993 = vadd.f32 0.0, %v4992
        %4994 = vmatmul.f32.gmra.mxu0 %v1399
        %v4995 = vpop.f32.mrf.mxu0
        %v4996 = vadd.f32 0.0, %v4995
        %4997 = vmatmul.f32.gmra.mxu0 %v1402
        %v4998 = vpop.f32.mrf.mxu0
        %v4999 = vadd.f32 0.0, %v4998
        %5000 = vmatmul.f32.gmra.mxu0 %v1405
        %v5001 = vpop.f32.mrf.mxu0
        %v5002 = vadd.f32 0.0, %v5001
        %5003 = vmatmul.f32.gmra.mxu0 %v1408
        %v5004 = vpop.f32.mrf.mxu0
        %v5005 = vadd.f32 0.0, %v5004
        %5006 = vmatmul.f32.gmra.mxu0 %v1411
        %v5007 = vpop.f32.mrf.mxu0
        %v5008 = vadd.f32 0.0, %v5007
        %5009 = vmatmul.f32.gmra.mxu0 %v1414
        %v5010 = vpop.f32.mrf.mxu0
        %v5011 = vadd.f32 0.0, %v5010
        %5012 = vmatmul.f32.gmra.mxu0 %v1417
        %v5013 = vpop.f32.mrf.mxu0
        %v5014 = vadd.f32 0.0, %v5013
        %5015 = vmatmul.f32.gmra.mxu0 %v1420
        %v5016 = vpop.f32.mrf.mxu0
        %v5017 = vadd.f32 0.0, %v5016
        %5018 = vmatmul.f32.gmra.mxu0 %v1423
        %v5019 = vpop.f32.mrf.mxu0
        %v5020 = vadd.f32 0.0, %v5019
        %5021 = vmatmul.f32.gmra.mxu0 %v1426
        %v5022 = vpop.f32.mrf.mxu0
        %v5023 = vadd.f32 0.0, %v5022
        %5024 = vmatmul.f32.gmra.mxu0 %v1429
        %v5025 = vpop.f32.mrf.mxu0
        %v5026 = vadd.f32 0.0, %v5025
        %5027 = vmatmul.f32.gmra.mxu0 %v1432
        %v5028 = vpop.f32.mrf.mxu0
        %v5029 = vadd.f32 0.0, %v5028
        %5030 = vmatmul.f32.gmra.mxu0 %v1435
        %v5031 = vpop.f32.mrf.mxu0
        %v5032 = vadd.f32 0.0, %v5031
        %5033 = vmatmul.f32.gmra.mxu0 %v1438
        %v5034 = vpop.f32.mrf.mxu0
        %v5035 = vadd.f32 0.0, %v5034
        %5036 = vmatmul.f32.gmra.mxu0 %v1441
        %v5037 = vpop.f32.mrf.mxu0
        %v5038 = vadd.f32 0.0, %v5037
        %5039 = vmatmul.f32.gmra.mxu0 %v1444
        %v5040 = vpop.f32.mrf.mxu0
        %v5041 = vadd.f32 0.0, %v5040
        %5042 = vmatmul.f32.gmra.mxu0 %v1447
        %v5043 = vpop.f32.mrf.mxu0
        %v5044 = vadd.f32 0.0, %v5043
        %5045 = vdwg.mxu0
        %5046 = vmatpush.msra.mxu0 0.0
        %5047 = vmatpush.msra.mxu0 0.0
        %5048 = vmatpush.msra.mxu0 0.0
        %5049 = vmatpush.msra.mxu0 0.0
        %5050 = vmatpush.msra.mxu0 0.0
        %5051 = vmatpush.msra.mxu0 0.0
        %5052 = vmatpush.msra.mxu0 0.0
        %5053 = vmatpush.msra.mxu0 0.0
        %5054 = vmatpush.msra.mxu0 0.0
        %5055 = vmatpush.msra.mxu0 0.0
        %5056 = vmatpush.msra.mxu0 0.0
        %5057 = vmatpush.msra.mxu0 0.0
        %5058 = vmatpush.msra.mxu0 0.0
        %5059 = vmatpush.msra.mxu0 0.0
        %5060 = vmatpush.msra.mxu0 %v1292
        %5061 = vmatpush.msra.mxu0 %v1289
        %5062 = vmatmul.f32.gmra.mxu0 %v1360
        %v5063 = vpop.f32.mrf.mxu0
        %v5064 = vadd.f32 0.0, %v5063
        %5065 = vmatmul.f32.gmra.mxu0 %v1363
        %v5066 = vpop.f32.mrf.mxu0
        %v5067 = vadd.f32 0.0, %v5066
        %5068 = vmatmul.f32.gmra.mxu0 %v1366
        %v5069 = vpop.f32.mrf.mxu0
        %v5070 = vadd.f32 0.0, %v5069
        %5071 = vmatmul.f32.gmra.mxu0 %v1369
        %v5072 = vpop.f32.mrf.mxu0
        %v5073 = vadd.f32 0.0, %v5072
        %5074 = vmatmul.f32.gmra.mxu0 %v1372
        %v5075 = vpop.f32.mrf.mxu0
        %v5076 = vadd.f32 0.0, %v5075
        %5077 = vmatmul.f32.gmra.mxu0 %v1375
        %v5078 = vpop.f32.mrf.mxu0
        %v5079 = vadd.f32 0.0, %v5078
        %5080 = vmatmul.f32.gmra.mxu0 %v1378
        %v5081 = vpop.f32.mrf.mxu0
        %v5082 = vadd.f32 0.0, %v5081
        %5083 = vmatmul.f32.gmra.mxu0 %v1381
        %v5084 = vpop.f32.mrf.mxu0
        %v5085 = vadd.f32 0.0, %v5084
        %5086 = vmatmul.f32.gmra.mxu0 %v1384
        %v5087 = vpop.f32.mrf.mxu0
        %v5088 = vadd.f32 0.0, %v5087
        %5089 = vmatmul.f32.gmra.mxu0 %v1387
        %v5090 = vpop.f32.mrf.mxu0
        %v5091 = vadd.f32 0.0, %v5090
        %5092 = vmatmul.f32.gmra.mxu0 %v1390
        %v5093 = vpop.f32.mrf.mxu0
        %v5094 = vadd.f32 0.0, %v5093
        %5095 = vmatmul.f32.gmra.mxu0 %v1393
        %v5096 = vpop.f32.mrf.mxu0
        %v5097 = vadd.f32 0.0, %v5096
        %5098 = vmatmul.f32.gmra.mxu0 %v1396
        %v5099 = vpop.f32.mrf.mxu0
        %v5100 = vadd.f32 0.0, %v5099
        %5101 = vmatmul.f32.gmra.mxu0 %v1399
        %v5102 = vpop.f32.mrf.mxu0
        %v5103 = vadd.f32 0.0, %v5102
        %5104 = vmatmul.f32.gmra.mxu0 %v1402
        %v5105 = vpop.f32.mrf.mxu0
        %v5106 = vadd.f32 0.0, %v5105
        %5107 = vmatmul.f32.gmra.mxu0 %v1405
        %v5108 = vpop.f32.mrf.mxu0
        %v5109 = vadd.f32 0.0, %v5108
        %5110 = vmatmul.f32.gmra.mxu0 %v1408
        %v5111 = vpop.f32.mrf.mxu0
        %v5112 = vadd.f32 0.0, %v5111
        %5113 = vmatmul.f32.gmra.mxu0 %v1411
        %v5114 = vpop.f32.mrf.mxu0
        %v5115 = vadd.f32 0.0, %v5114
        %5116 = vmatmul.f32.gmra.mxu0 %v1414
        %v5117 = vpop.f32.mrf.mxu0
        %v5118 = vadd.f32 0.0, %v5117
        %5119 = vmatmul.f32.gmra.mxu0 %v1417
        %v5120 = vpop.f32.mrf.mxu0
        %v5121 = vadd.f32 0.0, %v5120
        %5122 = vmatmul.f32.gmra.mxu0 %v1420
        %v5123 = vpop.f32.mrf.mxu0
        %v5124 = vadd.f32 0.0, %v5123
        %5125 = vmatmul.f32.gmra.mxu0 %v1423
        %v5126 = vpop.f32.mrf.mxu0
        %v5127 = vadd.f32 0.0, %v5126
        %5128 = vmatmul.f32.gmra.mxu0 %v1426
        %v5129 = vpop.f32.mrf.mxu0
        %v5130 = vadd.f32 0.0, %v5129
        %5131 = vmatmul.f32.gmra.mxu0 %v1429
        %v5132 = vpop.f32.mrf.mxu0
        %v5133 = vadd.f32 0.0, %v5132
        %5134 = vmatmul.f32.gmra.mxu0 %v1432
        %v5135 = vpop.f32.mrf.mxu0
        %v5136 = vadd.f32 0.0, %v5135
        %5137 = vmatmul.f32.gmra.mxu0 %v1435
        %v5138 = vpop.f32.mrf.mxu0
        %v5139 = vadd.f32 0.0, %v5138
        %5140 = vmatmul.f32.gmra.mxu0 %v1438
        %v5141 = vpop.f32.mrf.mxu0
        %v5142 = vadd.f32 0.0, %v5141
        %5143 = vmatmul.f32.gmra.mxu0 %v1441
        %v5144 = vpop.f32.mrf.mxu0
        %v5145 = vadd.f32 0.0, %v5144
        %5146 = vmatmul.f32.gmra.mxu0 %v1444
        %v5147 = vpop.f32.mrf.mxu0
        %v5148 = vadd.f32 0.0, %v5147
        %5149 = vmatmul.f32.gmra.mxu0 %v1447
        %v5150 = vpop.f32.mrf.mxu0
        %v5151 = vadd.f32 0.0, %v5150
        %5152 = vdwg.mxu0
        %5153 = vmatpush.msra.mxu0 0.0
        %5154 = vmatpush.msra.mxu0 0.0
        %5155 = vmatpush.msra.mxu0 0.0
        %5156 = vmatpush.msra.mxu0 0.0
        %5157 = vmatpush.msra.mxu0 0.0
        %5158 = vmatpush.msra.mxu0 0.0
        %5159 = vmatpush.msra.mxu0 0.0
        %5160 = vmatpush.msra.mxu0 0.0
        %5161 = vmatpush.msra.mxu0 0.0
        %5162 = vmatpush.msra.mxu0 0.0
        %5163 = vmatpush.msra.mxu0 0.0
        %5164 = vmatpush.msra.mxu0 0.0
        %5165 = vmatpush.msra.mxu0 0.0
        %5166 = vmatpush.msra.mxu0 0.0
        %5167 = vmatpush.msra.mxu0 %v1327
        %5168 = vmatpush.msra.mxu0 %v1324
        %5169 = vmatmul.f32.gmra.mxu0 %v1360
        %v5170 = vpop.f32.mrf.mxu0
        %v5171 = vadd.f32 0.0, %v5170
        %5172 = vmatmul.f32.gmra.mxu0 %v1363
        %v5173 = vpop.f32.mrf.mxu0
        %v5174 = vadd.f32 0.0, %v5173
        %5175 = vmatmul.f32.gmra.mxu0 %v1366
        %v5176 = vpop.f32.mrf.mxu0
        %v5177 = vadd.f32 0.0, %v5176
        %5178 = vmatmul.f32.gmra.mxu0 %v1369
        %v5179 = vpop.f32.mrf.mxu0
        %v5180 = vadd.f32 0.0, %v5179
        %5181 = vmatmul.f32.gmra.mxu0 %v1372
        %v5182 = vpop.f32.mrf.mxu0
        %v5183 = vadd.f32 0.0, %v5182
        %5184 = vmatmul.f32.gmra.mxu0 %v1375
        %v5185 = vpop.f32.mrf.mxu0
        %v5186 = vadd.f32 0.0, %v5185
        %5187 = vmatmul.f32.gmra.mxu0 %v1378
        %v5188 = vpop.f32.mrf.mxu0
        %v5189 = vadd.f32 0.0, %v5188
        %5190 = vmatmul.f32.gmra.mxu0 %v1381
        %v5191 = vpop.f32.mrf.mxu0
        %v5192 = vadd.f32 0.0, %v5191
        %5193 = vmatmul.f32.gmra.mxu0 %v1384
        %v5194 = vpop.f32.mrf.mxu0
        %v5195 = vadd.f32 0.0, %v5194
        %5196 = vmatmul.f32.gmra.mxu0 %v1387
        %v5197 = vpop.f32.mrf.mxu0
        %v5198 = vadd.f32 0.0, %v5197
        %5199 = vmatmul.f32.gmra.mxu0 %v1390
        %v5200 = vpop.f32.mrf.mxu0
        %v5201 = vadd.f32 0.0, %v5200
        %5202 = vmatmul.f32.gmra.mxu0 %v1393
        %v5203 = vpop.f32.mrf.mxu0
        %v5204 = vadd.f32 0.0, %v5203
        %5205 = vmatmul.f32.gmra.mxu0 %v1396
        %v5206 = vpop.f32.mrf.mxu0
        %v5207 = vadd.f32 0.0, %v5206
        %5208 = vmatmul.f32.gmra.mxu0 %v1399
        %v5209 = vpop.f32.mrf.mxu0
        %v5210 = vadd.f32 0.0, %v5209
        %5211 = vmatmul.f32.gmra.mxu0 %v1402
        %v5212 = vpop.f32.mrf.mxu0
        %v5213 = vadd.f32 0.0, %v5212
        %5214 = vmatmul.f32.gmra.mxu0 %v1405
        %v5215 = vpop.f32.mrf.mxu0
        %v5216 = vadd.f32 0.0, %v5215
        %5217 = vmatmul.f32.gmra.mxu0 %v1408
        %v5218 = vpop.f32.mrf.mxu0
        %v5219 = vadd.f32 0.0, %v5218
        %5220 = vmatmul.f32.gmra.mxu0 %v1411
        %v5221 = vpop.f32.mrf.mxu0
        %v5222 = vadd.f32 0.0, %v5221
        %5223 = vmatmul.f32.gmra.mxu0 %v1414
        %v5224 = vpop.f32.mrf.mxu0
        %v5225 = vadd.f32 0.0, %v5224
        %5226 = vmatmul.f32.gmra.mxu0 %v1417
        %v5227 = vpop.f32.mrf.mxu0
        %v5228 = vadd.f32 0.0, %v5227
        %5229 = vmatmul.f32.gmra.mxu0 %v1420
        %v5230 = vpop.f32.mrf.mxu0
        %v5231 = vadd.f32 0.0, %v5230
        %5232 = vmatmul.f32.gmra.mxu0 %v1423
        %v5233 = vpop.f32.mrf.mxu0
        %v5234 = vadd.f32 0.0, %v5233
        %5235 = vmatmul.f32.gmra.mxu0 %v1426
        %v5236 = vpop.f32.mrf.mxu0
        %v5237 = vadd.f32 0.0, %v5236
        %5238 = vmatmul.f32.gmra.mxu0 %v1429
        %v5239 = vpop.f32.mrf.mxu0
        %v5240 = vadd.f32 0.0, %v5239
        %5241 = vmatmul.f32.gmra.mxu0 %v1432
        %v5242 = vpop.f32.mrf.mxu0
        %v5243 = vadd.f32 0.0, %v5242
        %5244 = vmatmul.f32.gmra.mxu0 %v1435
        %v5245 = vpop.f32.mrf.mxu0
        %v5246 = vadd.f32 0.0, %v5245
        %5247 = vmatmul.f32.gmra.mxu0 %v1438
        %v5248 = vpop.f32.mrf.mxu0
        %v5249 = vadd.f32 0.0, %v5248
        %5250 = vmatmul.f32.gmra.mxu0 %v1441
        %v5251 = vpop.f32.mrf.mxu0
        %v5252 = vadd.f32 0.0, %v5251
        %5253 = vmatmul.f32.gmra.mxu0 %v1444
        %v5254 = vpop.f32.mrf.mxu0
        %v5255 = vadd.f32 0.0, %v5254
        %5256 = vmatmul.f32.gmra.mxu0 %v1447
        %v5257 = vpop.f32.mrf.mxu0
        %v5258 = vadd.f32 0.0, %v5257
        %5259 = vdwg.mxu0
        %s5260 = scalar_lea.vmem %s251, 4800 [#allocation7]
        %5261 = vst [vmem:[%s5260] sm:$0xff] %v4208
        %5262 = vst [vmem:[%s5260 + $0x8] sm:$0xff] %v4315
        %5263 = vst [vmem:[%s5260 + $0x10] sm:$0xff] %v4422
        %5264 = vst [vmem:[%s5260 + $0x18] sm:$0xff] %v4529
        %5265 = vst [vmem:[%s5260 + $0x20] sm:$0xff] %v4636
        %5266 = vst [vmem:[%s5260 + $0x28] sm:$0xff] %v4743
        %5267 = vst [vmem:[%s5260 + $0x30] sm:$0xff] %v4850
        %5268 = vst [vmem:[%s5260 + $0x38] sm:$0xff] %v4957
        %5269 = vst [vmem:[%s5260 + $0x40] sm:$0xff] %v5064
        %5270 = vst [vmem:[%s5260 + $0x48] sm:$0xff] %v5171
        %5271 = vst [vmem:[%s5260 + $0x50] sm:$0xff] %v4211
        %5272 = vst [vmem:[%s5260 + $0x58] sm:$0xff] %v4318
        %5273 = vst [vmem:[%s5260 + $0x60] sm:$0xff] %v4425
        %5274 = vst [vmem:[%s5260 + $0x68] sm:$0xff] %v4532
        %5275 = vst [vmem:[%s5260 + $0x70] sm:$0xff] %v4639
        %5276 = vst [vmem:[%s5260 + $0x78] sm:$0xff] %v4746
        %5277 = vst [vmem:[%s5260 + $0x80] sm:$0xff] %v4853
        %5278 = vst [vmem:[%s5260 + $0x88] sm:$0xff] %v4960
        %5279 = vst [vmem:[%s5260 + $0x90] sm:$0xff] %v5067
        %5280 = vst [vmem:[%s5260 + $0x98] sm:$0xff] %v5174
        %5281 = vst [vmem:[%s5260 + $0xa0] sm:$0xff] %v4214
        %5282 = vst [vmem:[%s5260 + $0xa8] sm:$0xff] %v4321
        %5283 = vst [vmem:[%s5260 + $0xb0] sm:$0xff] %v4428
        %5284 = vst [vmem:[%s5260 + $0xb8] sm:$0xff] %v4535
        %5285 = vst [vmem:[%s5260 + $0xc0] sm:$0xff] %v4642
        %5286 = vst [vmem:[%s5260 + $0xc8] sm:$0xff] %v4749
        %5287 = vst [vmem:[%s5260 + $0xd0] sm:$0xff] %v4856
        %5288 = vst [vmem:[%s5260 + $0xd8] sm:$0xff] %v4963
        %5289 = vst [vmem:[%s5260 + $0xe0] sm:$0xff] %v5070
        %5290 = vst [vmem:[%s5260 + $0xe8] sm:$0xff] %v5177
        %5291 = vst [vmem:[%s5260 + $0xf0] sm:$0xff] %v4217
        %5292 = vst [vmem:[%s5260 + $0xf8] sm:$0xff] %v4324
        %5293 = vst [vmem:[%s5260 + $0x100] sm:$0xff] %v4431
        %5294 = vst [vmem:[%s5260 + $0x108] sm:$0xff] %v4538
        %5295 = vst [vmem:[%s5260 + $0x110] sm:$0xff] %v4645
        %5296 = vst [vmem:[%s5260 + $0x118] sm:$0xff] %v4752
        %5297 = vst [vmem:[%s5260 + $0x120] sm:$0xff] %v4859
        %5298 = vst [vmem:[%s5260 + $0x128] sm:$0xff] %v4966
        %5299 = vst [vmem:[%s5260 + $0x130] sm:$0xff] %v5073
        %5300 = vst [vmem:[%s5260 + $0x138] sm:$0xff] %v5180
        %5301 = vst [vmem:[%s5260 + $0x140] sm:$0xff] %v4220
        %5302 = vst [vmem:[%s5260 + $0x148] sm:$0xff] %v4327
        %5303 = vst [vmem:[%s5260 + $0x150] sm:$0xff] %v4434
        %5304 = vst [vmem:[%s5260 + $0x158] sm:$0xff] %v4541
        %5305 = vst [vmem:[%s5260 + $0x160] sm:$0xff] %v4648
        %5306 = vst [vmem:[%s5260 + $0x168] sm:$0xff] %v4755
        %5307 = vst [vmem:[%s5260 + $0x170] sm:$0xff] %v4862
        %5308 = vst [vmem:[%s5260 + $0x178] sm:$0xff] %v4969
        %5309 = vst [vmem:[%s5260 + $0x180] sm:$0xff] %v5076
        %5310 = vst [vmem:[%s5260 + $0x188] sm:$0xff] %v5183
        %5311 = vst [vmem:[%s5260 + $0x190] sm:$0xff] %v4223
        %5312 = vst [vmem:[%s5260 + $0x198] sm:$0xff] %v4330
        %5313 = vst [vmem:[%s5260 + $0x1a0] sm:$0xff] %v4437
        %5314 = vst [vmem:[%s5260 + $0x1a8] sm:$0xff] %v4544
        %5315 = vst [vmem:[%s5260 + $0x1b0] sm:$0xff] %v4651
        %5316 = vst [vmem:[%s5260 + $0x1b8] sm:$0xff] %v4758
        %5317 = vst [vmem:[%s5260 + $0x1c0] sm:$0xff] %v4865
        %5318 = vst [vmem:[%s5260 + $0x1c8] sm:$0xff] %v4972
        %5319 = vst [vmem:[%s5260 + $0x1d0] sm:$0xff] %v5079
        %5320 = vst [vmem:[%s5260 + $0x1d8] sm:$0xff] %v5186
        %5321 = vst [vmem:[%s5260 + $0x1e0] sm:$0xff] %v4226
        %5322 = vst [vmem:[%s5260 + $0x1e8] sm:$0xff] %v4333
        %5323 = vst [vmem:[%s5260 + $0x1f0] sm:$0xff] %v4440
        %5324 = vst [vmem:[%s5260 + $0x1f8] sm:$0xff] %v4547
        %5325 = vst [vmem:[%s5260 + $0x200] sm:$0xff] %v4654
        %5326 = vst [vmem:[%s5260 + $0x208] sm:$0xff] %v4761
        %5327 = vst [vmem:[%s5260 + $0x210] sm:$0xff] %v4868
        %5328 = vst [vmem:[%s5260 + $0x218] sm:$0xff] %v4975
        %5329 = vst [vmem:[%s5260 + $0x220] sm:$0xff] %v5082
        %5330 = vst [vmem:[%s5260 + $0x228] sm:$0xff] %v5189
        %5331 = vst [vmem:[%s5260 + $0x230] sm:$0xff] %v4229
        %5332 = vst [vmem:[%s5260 + $0x238] sm:$0xff] %v4336
        %5333 = vst [vmem:[%s5260 + $0x240] sm:$0xff] %v4443
        %5334 = vst [vmem:[%s5260 + $0x248] sm:$0xff] %v4550
        %5335 = vst [vmem:[%s5260 + $0x250] sm:$0xff] %v4657
        %5336 = vst [vmem:[%s5260 + $0x258] sm:$0xff] %v4764
        %5337 = vst [vmem:[%s5260 + $0x260] sm:$0xff] %v4871
        %5338 = vst [vmem:[%s5260 + $0x268] sm:$0xff] %v4978
        %5339 = vst [vmem:[%s5260 + $0x270] sm:$0xff] %v5085
        %5340 = vst [vmem:[%s5260 + $0x278] sm:$0xff] %v5192
        %5341 = vst [vmem:[%s5260 + $0x280] sm:$0xff] %v4232
        %5342 = vst [vmem:[%s5260 + $0x288] sm:$0xff] %v4339
        %5343 = vst [vmem:[%s5260 + $0x290] sm:$0xff] %v4446
        %5344 = vst [vmem:[%s5260 + $0x298] sm:$0xff] %v4553
        %5345 = vst [vmem:[%s5260 + $0x2a0] sm:$0xff] %v4660
        %5346 = vst [vmem:[%s5260 + $0x2a8] sm:$0xff] %v4767
        %5347 = vst [vmem:[%s5260 + $0x2b0] sm:$0xff] %v4874
        %5348 = vst [vmem:[%s5260 + $0x2b8] sm:$0xff] %v4981
        %5349 = vst [vmem:[%s5260 + $0x2c0] sm:$0xff] %v5088
        %5350 = vst [vmem:[%s5260 + $0x2c8] sm:$0xff] %v5195
        %5351 = vst [vmem:[%s5260 + $0x2d0] sm:$0xff] %v4235
        %5352 = vst [vmem:[%s5260 + $0x2d8] sm:$0xff] %v4342
        %5353 = vst [vmem:[%s5260 + $0x2e0] sm:$0xff] %v4449
        %5354 = vst [vmem:[%s5260 + $0x2e8] sm:$0xff] %v4556
        %5355 = vst [vmem:[%s5260 + $0x2f0] sm:$0xff] %v4663
        %5356 = vst [vmem:[%s5260 + $0x2f8] sm:$0xff] %v4770
        %5357 = vst [vmem:[%s5260 + $0x300] sm:$0xff] %v4877
        %5358 = vst [vmem:[%s5260 + $0x308] sm:$0xff] %v4984
        %5359 = vst [vmem:[%s5260 + $0x310] sm:$0xff] %v5091
        %5360 = vst [vmem:[%s5260 + $0x318] sm:$0xff] %v5198
        %5361 = vst [vmem:[%s5260 + $0x320] sm:$0xff] %v4238
        %5362 = vst [vmem:[%s5260 + $0x328] sm:$0xff] %v4345
        %5363 = vst [vmem:[%s5260 + $0x330] sm:$0xff] %v4452
        %5364 = vst [vmem:[%s5260 + $0x338] sm:$0xff] %v4559
        %5365 = vst [vmem:[%s5260 + $0x340] sm:$0xff] %v4666
        %5366 = vst [vmem:[%s5260 + $0x348] sm:$0xff] %v4773
        %5367 = vst [vmem:[%s5260 + $0x350] sm:$0xff] %v4880
        %5368 = vst [vmem:[%s5260 + $0x358] sm:$0xff] %v4987
        %5369 = vst [vmem:[%s5260 + $0x360] sm:$0xff] %v5094
        %5370 = vst [vmem:[%s5260 + $0x368] sm:$0xff] %v5201
        %5371 = vst [vmem:[%s5260 + $0x370] sm:$0xff] %v4241
        %5372 = vst [vmem:[%s5260 + $0x378] sm:$0xff] %v4348
        %5373 = vst [vmem:[%s5260 + $0x380] sm:$0xff] %v4455
        %5374 = vst [vmem:[%s5260 + $0x388] sm:$0xff] %v4562
        %5375 = vst [vmem:[%s5260 + $0x390] sm:$0xff] %v4669
        %5376 = vst [vmem:[%s5260 + $0x398] sm:$0xff] %v4776
        %5377 = vst [vmem:[%s5260 + $0x3a0] sm:$0xff] %v4883
        %5378 = vst [vmem:[%s5260 + $0x3a8] sm:$0xff] %v4990
        %5379 = vst [vmem:[%s5260 + $0x3b0] sm:$0xff] %v5097
        %5380 = vst [vmem:[%s5260 + $0x3b8] sm:$0xff] %v5204
        %5381 = vst [vmem:[%s5260 + $0x3c0] sm:$0xff] %v4244
        %5382 = vst [vmem:[%s5260 + $0x3c8] sm:$0xff] %v4351
        %5383 = vst [vmem:[%s5260 + $0x3d0] sm:$0xff] %v4458
        %5384 = vst [vmem:[%s5260 + $0x3d8] sm:$0xff] %v4565
        %5385 = vst [vmem:[%s5260 + $0x3e0] sm:$0xff] %v4672
        %5386 = vst [vmem:[%s5260 + $0x3e8] sm:$0xff] %v4779
        %5387 = vst [vmem:[%s5260 + $0x3f0] sm:$0xff] %v4886
        %5388 = vst [vmem:[%s5260 + $0x3f8] sm:$0xff] %v4993
        %5389 = vst [vmem:[%s5260 + $0x400] sm:$0xff] %v5100
        %5390 = vst [vmem:[%s5260 + $0x408] sm:$0xff] %v5207
        %5391 = vst [vmem:[%s5260 + $0x410] sm:$0xff] %v4247
        %5392 = vst [vmem:[%s5260 + $0x418] sm:$0xff] %v4354
        %5393 = vst [vmem:[%s5260 + $0x420] sm:$0xff] %v4461
        %5394 = vst [vmem:[%s5260 + $0x428] sm:$0xff] %v4568
        %5395 = vst [vmem:[%s5260 + $0x430] sm:$0xff] %v4675
        %5396 = vst [vmem:[%s5260 + $0x438] sm:$0xff] %v4782
        %5397 = vst [vmem:[%s5260 + $0x440] sm:$0xff] %v4889
        %5398 = vst [vmem:[%s5260 + $0x448] sm:$0xff] %v4996
        %5399 = vst [vmem:[%s5260 + $0x450] sm:$0xff] %v5103
        %5400 = vst [vmem:[%s5260 + $0x458] sm:$0xff] %v5210
        %5401 = vst [vmem:[%s5260 + $0x460] sm:$0xff] %v4250
        %5402 = vst [vmem:[%s5260 + $0x468] sm:$0xff] %v4357
        %5403 = vst [vmem:[%s5260 + $0x470] sm:$0xff] %v4464
        %5404 = vst [vmem:[%s5260 + $0x478] sm:$0xff] %v4571
        %5405 = vst [vmem:[%s5260 + $0x480] sm:$0xff] %v4678
        %5406 = vst [vmem:[%s5260 + $0x488] sm:$0xff] %v4785
        %5407 = vst [vmem:[%s5260 + $0x490] sm:$0xff] %v4892
        %5408 = vst [vmem:[%s5260 + $0x498] sm:$0xff] %v4999
        %5409 = vst [vmem:[%s5260 + $0x4a0] sm:$0xff] %v5106
        %5410 = vst [vmem:[%s5260 + $0x4a8] sm:$0xff] %v5213
        %5411 = vst [vmem:[%s5260 + $0x4b0] sm:$0xff] %v4253
        %5412 = vst [vmem:[%s5260 + $0x4b8] sm:$0xff] %v4360
        %5413 = vst [vmem:[%s5260 + $0x4c0] sm:$0xff] %v4467
        %5414 = vst [vmem:[%s5260 + $0x4c8] sm:$0xff] %v4574
        %5415 = vst [vmem:[%s5260 + $0x4d0] sm:$0xff] %v4681
        %5416 = vst [vmem:[%s5260 + $0x4d8] sm:$0xff] %v4788
        %5417 = vst [vmem:[%s5260 + $0x4e0] sm:$0xff] %v4895
        %5418 = vst [vmem:[%s5260 + $0x4e8] sm:$0xff] %v5002
        %5419 = vst [vmem:[%s5260 + $0x4f0] sm:$0xff] %v5109
        %5420 = vst [vmem:[%s5260 + $0x4f8] sm:$0xff] %v5216
        %5421 = vst [vmem:[%s5260 + $0x500] sm:$0xff] %v4256
        %5422 = vst [vmem:[%s5260 + $0x508] sm:$0xff] %v4363
        %5423 = vst [vmem:[%s5260 + $0x510] sm:$0xff] %v4470
        %5424 = vst [vmem:[%s5260 + $0x518] sm:$0xff] %v4577
        %5425 = vst [vmem:[%s5260 + $0x520] sm:$0xff] %v4684
        %5426 = vst [vmem:[%s5260 + $0x528] sm:$0xff] %v4791
        %5427 = vst [vmem:[%s5260 + $0x530] sm:$0xff] %v4898
        %5428 = vst [vmem:[%s5260 + $0x538] sm:$0xff] %v5005
        %5429 = vst [vmem:[%s5260 + $0x540] sm:$0xff] %v5112
        %5430 = vst [vmem:[%s5260 + $0x548] sm:$0xff] %v5219
        %5431 = vst [vmem:[%s5260 + $0x550] sm:$0xff] %v4259
        %5432 = vst [vmem:[%s5260 + $0x558] sm:$0xff] %v4366
        %5433 = vst [vmem:[%s5260 + $0x560] sm:$0xff] %v4473
        %5434 = vst [vmem:[%s5260 + $0x568] sm:$0xff] %v4580
        %5435 = vst [vmem:[%s5260 + $0x570] sm:$0xff] %v4687
        %5436 = vst [vmem:[%s5260 + $0x578] sm:$0xff] %v4794
        %5437 = vst [vmem:[%s5260 + $0x580] sm:$0xff] %v4901
        %5438 = vst [vmem:[%s5260 + $0x588] sm:$0xff] %v5008
        %5439 = vst [vmem:[%s5260 + $0x590] sm:$0xff] %v5115
        %5440 = vst [vmem:[%s5260 + $0x598] sm:$0xff] %v5222
        %5441 = vst [vmem:[%s5260 + $0x5a0] sm:$0xff] %v4262
        %5442 = vst [vmem:[%s5260 + $0x5a8] sm:$0xff] %v4369
        %5443 = vst [vmem:[%s5260 + $0x5b0] sm:$0xff] %v4476
        %5444 = vst [vmem:[%s5260 + $0x5b8] sm:$0xff] %v4583
        %5445 = vst [vmem:[%s5260 + $0x5c0] sm:$0xff] %v4690
        %5446 = vst [vmem:[%s5260 + $0x5c8] sm:$0xff] %v4797
        %5447 = vst [vmem:[%s5260 + $0x5d0] sm:$0xff] %v4904
        %5448 = vst [vmem:[%s5260 + $0x5d8] sm:$0xff] %v5011
        %5449 = vst [vmem:[%s5260 + $0x5e0] sm:$0xff] %v5118
        %5450 = vst [vmem:[%s5260 + $0x5e8] sm:$0xff] %v5225
        %5451 = vst [vmem:[%s5260 + $0x5f0] sm:$0xff] %v4265
        %5452 = vst [vmem:[%s5260 + $0x5f8] sm:$0xff] %v4372
        %5453 = vst [vmem:[%s5260 + $0x600] sm:$0xff] %v4479
        %5454 = vst [vmem:[%s5260 + $0x608] sm:$0xff] %v4586
        %5455 = vst [vmem:[%s5260 + $0x610] sm:$0xff] %v4693
        %5456 = vst [vmem:[%s5260 + $0x618] sm:$0xff] %v4800
        %5457 = vst [vmem:[%s5260 + $0x620] sm:$0xff] %v4907
        %5458 = vst [vmem:[%s5260 + $0x628] sm:$0xff] %v5014
        %5459 = vst [vmem:[%s5260 + $0x630] sm:$0xff] %v5121
        %5460 = vst [vmem:[%s5260 + $0x638] sm:$0xff] %v5228
        %5461 = vst [vmem:[%s5260 + $0x640] sm:$0xff] %v4268
        %5462 = vst [vmem:[%s5260 + $0x648] sm:$0xff] %v4375
        %5463 = vst [vmem:[%s5260 + $0x650] sm:$0xff] %v4482
        %5464 = vst [vmem:[%s5260 + $0x658] sm:$0xff] %v4589
        %5465 = vst [vmem:[%s5260 + $0x660] sm:$0xff] %v4696
        %5466 = vst [vmem:[%s5260 + $0x668] sm:$0xff] %v4803
        %5467 = vst [vmem:[%s5260 + $0x670] sm:$0xff] %v4910
        %5468 = vst [vmem:[%s5260 + $0x678] sm:$0xff] %v5017
        %5469 = vst [vmem:[%s5260 + $0x680] sm:$0xff] %v5124
        %5470 = vst [vmem:[%s5260 + $0x688] sm:$0xff] %v5231
        %5471 = vst [vmem:[%s5260 + $0x690] sm:$0xff] %v4271
        %5472 = vst [vmem:[%s5260 + $0x698] sm:$0xff] %v4378
        %5473 = vst [vmem:[%s5260 + $0x6a0] sm:$0xff] %v4485
        %5474 = vst [vmem:[%s5260 + $0x6a8] sm:$0xff] %v4592
        %5475 = vst [vmem:[%s5260 + $0x6b0] sm:$0xff] %v4699
        %5476 = vst [vmem:[%s5260 + $0x6b8] sm:$0xff] %v4806
        %5477 = vst [vmem:[%s5260 + $0x6c0] sm:$0xff] %v4913
        %5478 = vst [vmem:[%s5260 + $0x6c8] sm:$0xff] %v5020
        %5479 = vst [vmem:[%s5260 + $0x6d0] sm:$0xff] %v5127
        %5480 = vst [vmem:[%s5260 + $0x6d8] sm:$0xff] %v5234
        %5481 = vst [vmem:[%s5260 + $0x6e0] sm:$0xff] %v4274
        %5482 = vst [vmem:[%s5260 + $0x6e8] sm:$0xff] %v4381
        %5483 = vst [vmem:[%s5260 + $0x6f0] sm:$0xff] %v4488
        %5484 = vst [vmem:[%s5260 + $0x6f8] sm:$0xff] %v4595
        %5485 = vst [vmem:[%s5260 + $0x700] sm:$0xff] %v4702
        %5486 = vst [vmem:[%s5260 + $0x708] sm:$0xff] %v4809
        %5487 = vst [vmem:[%s5260 + $0x710] sm:$0xff] %v4916
        %5488 = vst [vmem:[%s5260 + $0x718] sm:$0xff] %v5023
        %5489 = vst [vmem:[%s5260 + $0x720] sm:$0xff] %v5130
        %5490 = vst [vmem:[%s5260 + $0x728] sm:$0xff] %v5237
        %5491 = vst [vmem:[%s5260 + $0x730] sm:$0xff] %v4277
        %5492 = vst [vmem:[%s5260 + $0x738] sm:$0xff] %v4384
        %5493 = vst [vmem:[%s5260 + $0x740] sm:$0xff] %v4491
        %5494 = vst [vmem:[%s5260 + $0x748] sm:$0xff] %v4598
        %5495 = vst [vmem:[%s5260 + $0x750] sm:$0xff] %v4705
        %5496 = vst [vmem:[%s5260 + $0x758] sm:$0xff] %v4812
        %5497 = vst [vmem:[%s5260 + $0x760] sm:$0xff] %v4919
        %5498 = vst [vmem:[%s5260 + $0x768] sm:$0xff] %v5026
        %5499 = vst [vmem:[%s5260 + $0x770] sm:$0xff] %v5133
        %5500 = vst [vmem:[%s5260 + $0x778] sm:$0xff] %v5240
        %5501 = vst [vmem:[%s5260 + $0x780] sm:$0xff] %v4280
        %5502 = vst [vmem:[%s5260 + $0x788] sm:$0xff] %v4387
        %5503 = vst [vmem:[%s5260 + $0x790] sm:$0xff] %v4494
        %5504 = vst [vmem:[%s5260 + $0x798] sm:$0xff] %v4601
        %5505 = vst [vmem:[%s5260 + $0x7a0] sm:$0xff] %v4708
        %5506 = vst [vmem:[%s5260 + $0x7a8] sm:$0xff] %v4815
        %5507 = vst [vmem:[%s5260 + $0x7b0] sm:$0xff] %v4922
        %5508 = vst [vmem:[%s5260 + $0x7b8] sm:$0xff] %v5029
        %5509 = vst [vmem:[%s5260 + $0x7c0] sm:$0xff] %v5136
        %5510 = vst [vmem:[%s5260 + $0x7c8] sm:$0xff] %v5243
        %5511 = vst [vmem:[%s5260 + $0x7d0] sm:$0xff] %v4283
        %5512 = vst [vmem:[%s5260 + $0x7d8] sm:$0xff] %v4390
        %5513 = vst [vmem:[%s5260 + $0x7e0] sm:$0xff] %v4497
        %5514 = vst [vmem:[%s5260 + $0x7e8] sm:$0xff] %v4604
        %5515 = vst [vmem:[%s5260 + $0x7f0] sm:$0xff] %v4711
        %5516 = vst [vmem:[%s5260 + $0x7f8] sm:$0xff] %v4818
        %5517 = vst [vmem:[%s5260 + $0x800] sm:$0xff] %v4925
        %5518 = vst [vmem:[%s5260 + $0x808] sm:$0xff] %v5032
        %5519 = vst [vmem:[%s5260 + $0x810] sm:$0xff] %v5139
        %5520 = vst [vmem:[%s5260 + $0x818] sm:$0xff] %v5246
        %5521 = vst [vmem:[%s5260 + $0x820] sm:$0xff] %v4286
        %5522 = vst [vmem:[%s5260 + $0x828] sm:$0xff] %v4393
        %5523 = vst [vmem:[%s5260 + $0x830] sm:$0xff] %v4500
        %5524 = vst [vmem:[%s5260 + $0x838] sm:$0xff] %v4607
        %5525 = vst [vmem:[%s5260 + $0x840] sm:$0xff] %v4714
        %5526 = vst [vmem:[%s5260 + $0x848] sm:$0xff] %v4821
        %5527 = vst [vmem:[%s5260 + $0x850] sm:$0xff] %v4928
        %5528 = vst [vmem:[%s5260 + $0x858] sm:$0xff] %v5035
        %5529 = vst [vmem:[%s5260 + $0x860] sm:$0xff] %v5142
        %5530 = vst [vmem:[%s5260 + $0x868] sm:$0xff] %v5249
        %5531 = vst [vmem:[%s5260 + $0x870] sm:$0xff] %v4289
        %5532 = vst [vmem:[%s5260 + $0x878] sm:$0xff] %v4396
        %5533 = vst [vmem:[%s5260 + $0x880] sm:$0xff] %v4503
        %5534 = vst [vmem:[%s5260 + $0x888] sm:$0xff] %v4610
        %5535 = vst [vmem:[%s5260 + $0x890] sm:$0xff] %v4717
        %5536 = vst [vmem:[%s5260 + $0x898] sm:$0xff] %v4824
        %5537 = vst [vmem:[%s5260 + $0x8a0] sm:$0xff] %v4931
        %5538 = vst [vmem:[%s5260 + $0x8a8] sm:$0xff] %v5038
        %5539 = vst [vmem:[%s5260 + $0x8b0] sm:$0xff] %v5145
        %5540 = vst [vmem:[%s5260 + $0x8b8] sm:$0xff] %v5252
        %5541 = vst [vmem:[%s5260 + $0x8c0] sm:$0xff] %v4292
        %5542 = vst [vmem:[%s5260 + $0x8c8] sm:$0xff] %v4399
        %5543 = vst [vmem:[%s5260 + $0x8d0] sm:$0xff] %v4506
        %5544 = vst [vmem:[%s5260 + $0x8d8] sm:$0xff] %v4613
        %5545 = vst [vmem:[%s5260 + $0x8e0] sm:$0xff] %v4720
        %5546 = vst [vmem:[%s5260 + $0x8e8] sm:$0xff] %v4827
        %5547 = vst [vmem:[%s5260 + $0x8f0] sm:$0xff] %v4934
        %5548 = vst [vmem:[%s5260 + $0x8f8] sm:$0xff] %v5041
        %5549 = vst [vmem:[%s5260 + $0x900] sm:$0xff] %v5148
        %5550 = vst [vmem:[%s5260 + $0x908] sm:$0xff] %v5255
        %5551 = vst [vmem:[%s5260 + $0x910] sm:$0xff] %v4295
        %5552 = vst [vmem:[%s5260 + $0x918] sm:$0xff] %v4402
        %5553 = vst [vmem:[%s5260 + $0x920] sm:$0xff] %v4509
        %5554 = vst [vmem:[%s5260 + $0x928] sm:$0xff] %v4616
        %5555 = vst [vmem:[%s5260 + $0x930] sm:$0xff] %v4723
        %5556 = vst [vmem:[%s5260 + $0x938] sm:$0xff] %v4830
        %5557 = vst [vmem:[%s5260 + $0x940] sm:$0xff] %v4937
        %5558 = vst [vmem:[%s5260 + $0x948] sm:$0xff] %v5044
        %5559 = vst [vmem:[%s5260 + $0x950] sm:$0xff] %v5151
        %5560 = vst [vmem:[%s5260 + $0x958] sm:$0xff] %v5258
        %s5561 = sand.u32 %s136, 1
        %s5562 = scalar_lea.sflag [#allocation4], %s5561
        %s5563 = sand.u32 %s136, 1
        %s5564 = smul.addr %s5563, 7200
        %s5565 = scalar_lea.vmem [#allocation7], %s5564
        // Predicated region
        $region45: #{tpu_custom_call.1} parent=35 // pred_check
          %p5566 = pneg %p146
        $region46: #{tpu_custom_call.1} parent=35 // pred_check_branch
          %5568 = sbr.rel (%p5566) target = $region48
        $region47: #{tpu_custom_call.1} parent=35 // pred_region
          #allocation9 [shape = 'u32[6]{0}', space=smem, size = 0x18, scoped, tag = 'DMA stride descriptor']
          %s5569 = smul.u32 30, %s25
          %5571 = vsyncadd %s5562, 0
          %s5572 = smul.addr %s5569, 10
          %s5573 = smul.addr %s24, 2700
          %s5574 = sadd.s32 %s5572, %s5573
          %s5575 = smul.addr %s5574, 8
          %s5576 = scalar_lea.hbm %s4, %s5575
          %s5578 = sshll.u32 1, 14
          %s5579 = sxor.u32 4294967295, %s5578
          %s5582 = sshll.u32 7, 18
          %s5583 = sxor.u32 4294967295, %s5582
          %s5584 = sand.u32 0, %s5583
          %s5586 = sor.u32 %s5584, 0
          %s5587 = sshll.u32 %s5565, 4
          %s5588 = int_to_ptr.vmem [resolvable:$true] %s5587
          %s5589 = sshll.u32 %s5576, 4
          %s5590 = int_to_ptr.hbm [resolvable:$true] %s5589
          %5596 = sst [smem:[#allocation9]] 38400
          %s5597 = scalar_lea.smem [#allocation9], 1
          %5598 = sst [smem:[%s5597]] 115200
          %s5599 = scalar_lea.smem [#allocation9], 2
          %5600 = sst [smem:[%s5599]] 30
          %s5601 = scalar_lea.smem [#allocation9], 3
          %5602 = sst [smem:[%s5601]] 1280
          %s5603 = scalar_lea.smem [#allocation9], 4
          %5604 = sst [smem:[%s5603]] 1280
          %s5605 = scalar_lea.smem [#allocation9], 5
          %5606 = sst [smem:[%s5605]] 80
          %5608 = dma.general %s5588, 115200, %s5590, %s5562, [#allocation8], [#allocation9], %s5586, 0
        $region48: #{tpu_custom_call.1} parent=35 // pred_fallthru
          _
      $region36: #{tpu_custom_call.1} parent=5 // pred_fallthru
        _
      %p5609 = scmp.le.s32.totalorder 2, %s15
      // Predicated region
      $region49: #{tpu_custom_call.1} parent=5 // pred_check
        %p5610 = pneg %p5609
      $region50: #{tpu_custom_call.1} parent=5 // pred_check_branch
        %5612 = sbr.rel (%p5610) target = $region52
      $region51: #{tpu_custom_call.1} parent=5 // pred_region
        %s5613 = ssub.s32 %s15, 2
        // Predicated region
        $region53: #{tpu_custom_call.1} parent=51 // pred_check
          %p5614 = pneg %p152
        $region54: #{tpu_custom_call.1} parent=51 // pred_check_branch
          %5616 = sbr.rel (%p5614) target = $region56
        $region55: #{tpu_custom_call.1} parent=51 // pred_region
          %s5617 = sand.u32 %s137, 1
          %s5618 = scalar_lea.sflag [#allocation4], %s5617
          %s5619 = sand.u32 %s137, 1
          %s5620 = smul.addr %s5619, 7200
          %s5621 = scalar_lea.vmem [#allocation7], %s5620
          %5623 = dma.done %s5618, 115200
        $region56: #{tpu_custom_call.1} parent=51 // pred_fallthru
          _
      $region52: #{tpu_custom_call.1} parent=5 // pred_fallthru
        _
    $region6: #{tpu_custom_call.1} parent=1 // loop_footer
      %s19 = sadd.s32 1, %s15
    $region7: #{tpu_custom_call.1} parent=1 // loop_footer_branch
      %14 = sbr.rel target = $region3
    $region8: #{tpu_custom_call.1} parent=1 // loop_exit
      _
    %5624 = vsyncpa [#allocation3], 1
    %s5625 = scalar_lea.sflag [#allocation3], 1
    %5626 = vsyncpa %s5625, 1
    %5627 = vsyncpa [#allocation4], 1
    %s5628 = scalar_lea.sflag [#allocation4], 1
    %5629 = vsyncpa %s5628, 1
    %5630 = vsyncpa [#allocation5], 1
    %s5631 = scalar_lea.sflag [#allocation5], 1
    %5632 = vsyncpa %s5631, 1

</llo_original>
